<compile_context>
chip_gen: v6e
topology: v6e:2x2x1
jax: 0.10.0
libtpu: 0.0.40
codegen_flags: <defaults>
</compile_context>

<pallas_src>
import jax
import jax.numpy as jnp
from jax.experimental import pallas as pl
from jax.experimental.pallas import tpu as pltpu

N_CLASS = 2
BN_EPS = 1e-5
LANE = 128        # lane width / MXU alignment

_CPARAMS = pltpu.CompilerParams(
    dimension_semantics=("arbitrary",),      # single-block grid, no sharding
    vmem_limit_bytes=32 * 1024 * 1024,       # worst-case working set << 2 MiB
)


# ----------------------------------------------------------------------------
# small helpers
# ----------------------------------------------------------------------------
def _rup(x, m):
    return (x + m - 1) // m * m


def _pad2(a, rows, cols):
    pr, pc = rows - a.shape[0], cols - a.shape[1]
    if pr == 0 and pc == 0:
        return a
    return jnp.pad(a, ((0, pr), (0, pc)))


def _vspec(a):
    """Full-array VMEM block for a 2-D operand (grid=(1,))."""
    return pl.BlockSpec(a.shape, lambda i: (0, 0))


# ----------------------------------------------------------------------------
# Pallas kernels (all single-block, fused epilogues)
# ----------------------------------------------------------------------------
def _conv_relu_kernel(p_ref, w_ref, b_ref, o_ref):
    """o = relu(P @ W + b)   (backbone stages)."""
    y = jnp.dot(p_ref[...], w_ref[...], preferred_element_type=jnp.float32)
    y = jnp.maximum(y + b_ref[...], 0.0)
    o_ref[...] = y.astype(o_ref.dtype)


def _make_deconv_skip_bn_kernel(m_rows):
    """o = BN(relu(P @ W + b) + skip)  with batch stats computed in-kernel."""
    inv_m = 1.0 / float(m_rows)

    def kernel(p_ref, w_ref, b_ref, skip_ref, g_ref, bt_ref, o_ref):
        y = jnp.dot(p_ref[...], w_ref[...], preferred_element_type=jnp.float32)
        y = jnp.maximum(y + b_ref[...], 0.0)
        y = y + skip_ref[...].astype(jnp.float32)
        # training-mode BatchNorm2d: biased batch stats over all N*H*W rows
        s1 = jnp.sum(y, axis=0, keepdims=True)              # (1, C)
        s2 = jnp.sum(y * y, axis=0, keepdims=True)           # (1, C)
        mean = s1 * inv_m
        var = jnp.maximum(s2 * inv_m - mean * mean, 0.0)
        a = g_ref[...] * jax.lax.rsqrt(var + BN_EPS)          # gamma * invstd
        c = bt_ref[...] - mean * a                            # beta - mean*a
        o_ref[...] = (y * a + c).astype(o_ref.dtype)

    return kernel


def _make_deconv_bn_cls_kernel(m_rows):
    """o = BN(relu(P @ W + b)) @ Wc + bc   (deconv3 + bn3 + 1x1 classifier)."""
    inv_m = 1.0 / float(m_rows)

    def kernel(p_ref, w_ref, b_ref, g_ref, bt_ref, wc_ref, bc_ref, o_ref):
        y = jnp.dot(p_ref[...], w_ref[...], preferred_element_type=jnp.float32)
        y = jnp.maximum(y + b_ref[...], 0.0)
        s1 = jnp.sum(y, axis=0, keepdims=True)
        s2 = jnp.sum(y * y, axis=0, keepdims=True)
        mean = s1 * inv_m
        var = jnp.maximum(s2 * inv_m - mean * mean, 0.0)
        a = g_ref[...] * jax.lax.rsqrt(var + BN_EPS)
        c = bt_ref[...] - mean * a
        yn = (y * a + c).astype(jnp.bfloat16)                 # normalized feats
        out = jnp.dot(yn, wc_ref[...], preferred_element_type=jnp.float32)
        o_ref[...] = out + bc_ref[...]

    return kernel


# ----------------------------------------------------------------------------
# Plain-JAX glue: im2col patch extraction, conv / deconv lowering
# ----------------------------------------------------------------------------
def _im2col(xpad, K, stride, Ho, Wo):
    """(N, Hp, Wp, C) -> (N*Ho*Wo, K*K*C), minor order (kh, kw, c)."""
    N, _, _, C = xpad.shape
    cols = []
    for kh in range(K):
        for kw in range(K):
            cols.append(jax.lax.slice(
                xpad,
                (0, kh, kw, 0),
                (N, kh + (Ho - 1) * stride + 1, kw + (Wo - 1) * stride + 1, C),
                (1, stride, stride, 1)))
    p = jnp.stack(cols, axis=3)                      # (N, Ho, Wo, K*K, C)
    return p.reshape(N * Ho * Wo, K * K * C)


def _conv_prep(x, w_c, K, stride, padding):
    """Regular conv.  x: (N,H,W,Cin) NHWC, w_c: PyTorch (Cout,Cin,K,K)."""
    N, H, W, Cin = x.shape
    Cout = w_c.shape[0]
    xp = jnp.pad(x, ((0, 0), (padding, padding), (padding, padding), (0, 0)))
    Ho = (H + 2 * padding - K) // stride + 1
    Wo = (W + 2 * padding - K) // stride + 1
    w = jnp.transpose(w_c, (2, 3, 1, 0)).reshape(K * K * Cin, Cout)
    return _im2col(xp, K, stride, Ho, Wo), w, Ho, Wo


def _deconv_prep(x, w_t, K, stride, padding, output_padding):
    """ConvTranspose2d lowered to zero-dilation + pad + regular conv with the
    spatially-flipped, channel-swapped weight.  w_t: PyTorch (Cin,Cout,K,K)."""
    N, H, W, Cin = x.shape
    Cout = w_t.shape[1]
    Hd, Wd = (H - 1) * stride + 1, (W - 1) * stride + 1
    xd = jnp.zeros((N, Hd, Wd, Cin), x.dtype).at[:, ::stride, ::stride, :].set(x)
    lo = K - 1 - padding
    hi = K - 1 - padding + output_padding
    xp = jnp.pad(xd, ((0, 0), (lo, hi), (lo, hi), (0, 0)))
    Ho = (H - 1) * stride - 2 * padding + K + output_padding
    Wo = (W - 1) * stride - 2 * padding + K + output_padding
    w = jnp.transpose(jnp.flip(w_t, axis=(2, 3)), (2, 3, 0, 1))  # (K,K,Cin,Cout)
    return _im2col(xp, K, 1, Ho, Wo), w.reshape(K * K * Cin, Cout), Ho, Wo


# ----------------------------------------------------------------------------
# pallas_call wrappers (one fused kernel per network stage)
# ----------------------------------------------------------------------------
def backbone_stage(x, w_c, b):
    """relu(conv3x3 stride-2 pad-1), fused bias+ReLU, bf16 NHWC output."""
    N = x.shape[0]
    Cout = w_c.shape[0]
    p, wm, Ho, Wo = _conv_prep(x, w_c, 3, 2, 1)
    M, Kc = p.shape
    Kc_p, C_p = _rup(Kc, LANE), _rup(Cout, LANE)

    pp = _pad2(p, M, Kc_p).astype(jnp.bfloat16)
    wp = _pad2(wm, Kc_p, C_p).astype(jnp.bfloat16)
    bp = _pad2(b.astype(jnp.float32).reshape(1, -1), 1, C_p)

    y = pl.pallas_call(
        _conv_relu_kernel,
        out_shape=jax.ShapeDtypeStruct((M, C_p), jnp.bfloat16),
        grid=(1,),
        in_specs=[_vspec(pp), _vspec(wp), _vspec(bp)],
        out_specs=pl.BlockSpec((M, C_p), lambda i: (0, 0)),
        compiler_params=_CPARAMS,
    )(pp, wp, bp)
    return y[:, :Cout].reshape(N, Ho, Wo, Cout)


def deconv_skip_bn(x, skip_map, w_t, b, gamma, beta, K):
    """score = bn(relu(deconv(x)) + skip) as ONE fused pallas_call."""
    N, Cout = x.shape[0], w_t.shape[1]
    p, wm, Ho, Wo = _deconv_prep(x, w_t, K, 2, 1, 1)
    assert (Ho, Wo) == (skip_map.shape[1], skip_map.shape[2]), "skip misaligned"
    M, Kc = p.shape
    Kc_p, C_p = _rup(Kc, LANE), _rup(Cout, LANE)

    pp = _pad2(p, M, Kc_p).astype(jnp.bfloat16)
    wp = _pad2(wm, Kc_p, C_p).astype(jnp.bfloat16)
    bp = _pad2(b.astype(jnp.float32).reshape(1, -1), 1, C_p)
    sk = _pad2(skip_map.reshape(M, Cout), M, C_p).astype(jnp.bfloat16)
    gp = _pad2(gamma.astype(jnp.float32).reshape(1, -1), 1, C_p)
    btp = _pad2(beta.astype(jnp.float32).reshape(1, -1), 1, C_p)

    y = pl.pallas_call(
        _make_deconv_skip_bn_kernel(M),
        out_shape=jax.ShapeDtypeStruct((M, C_p), jnp.bfloat16),
        grid=(1,),
        in_specs=[_vspec(pp), _vspec(wp), _vspec(bp),
                  _vspec(sk), _vspec(gp), _vspec(btp)],
        out_specs=pl.BlockSpec((M, C_p), lambda i: (0, 0)),
        compiler_params=_CPARAMS,
    )(pp, wp, bp, sk, gp, btp)
    return y[:, :Cout].reshape(N, Ho, Wo, Cout)


def deconv_bn_classifier(x, w_t, b, gamma, beta, cls_w, cls_b):
    """classifier(bn3(relu(deconv3(x)))) as ONE fused pallas_call (f32 out)."""
    N, Cout = x.shape[0], w_t.shape[1]          # Cout = 16
    p, wm, Ho, Wo = _deconv_prep(x, w_t, 4, 2, 1, 1)
    M, Kc = p.shape
    Kc_p, C_p = _rup(Kc, LANE), _rup(Cout, LANE)
    Ccls_p = _rup(N_CLASS, LANE)                # lane-dense classifier output

    pp = _pad2(p, M, Kc_p).astype(jnp.bfloat16)
    wp = _pad2(wm, Kc_p, C_p).astype(jnp.bfloat16)
    bp = _pad2(b.astype(jnp.float32).reshape(1, -1), 1, C_p)
    gp = _pad2(gamma.astype(jnp.float32).reshape(1, -1), 1, C_p)
    btp = _pad2(beta.astype(jnp.float32).reshape(1, -1), 1, C_p)
    wc = jnp.transpose(cls_w, (2, 3, 1, 0)).reshape(Cout, N_CLASS)
    wcp = _pad2(wc, C_p, Ccls_p).astype(jnp.bfloat16)
    bcp = _pad2(cls_b.astype(jnp.float32).reshape(1, -1), 1, Ccls_p)

    y = pl.pallas_call(
        _make_deconv_bn_cls_kernel(M),
        out_shape=jax.ShapeDtypeStruct((M, Ccls_p), jnp.float32),
        grid=(1,),
        in_specs=[_vspec(pp), _vspec(wp), _vspec(bp),
                  _vspec(gp), _vspec(btp), _vspec(wcp), _vspec(bcp)],
        out_specs=pl.BlockSpec((M, Ccls_p), lambda i: (0, 0)),
        compiler_params=_CPARAMS,
    )(pp, wp, bp, gp, btp, wcp, bcp)
    return y[:, :N_CLASS].reshape(N, Ho, Wo, N_CLASS)


# ----------------------------------------------------------------------------
# Parameters (deterministic, in-script)
# ----------------------------------------------------------------------------
def init_params(key, in_ch=4):
    ks = jax.random.split(key, 16)

    def rnd(k, shape, scale=0.05):
        return scale * jax.random.normal(k, shape, jnp.float32)

    return {
        # synthetic pretrained_net: 3 x (3x3 conv, stride 2, pad 1) + ReLU
        "backbone": [
            (rnd(ks[0], (32, in_ch, 3, 3)), rnd(ks[1], (32,))),
            (rnd(ks[2], (64, 32, 3, 3)), rnd(ks[3], (64,))),
            (rnd(ks[4], (128, 64, 3, 3)), rnd(ks[5], (128,))),
        ],
        "deconv1_w": rnd(ks[6], (128, 64, 3, 3)), "deconv1_b": rnd(ks[7], (64,)),
        "bn1_g": jnp.ones((64,), jnp.float32), "bn1_b": jnp.zeros((64,), jnp.float32),
        "deconv2_w": rnd(ks[8], (64, 32, 3, 3)), "deconv2_b": rnd(ks[9], (32,)),
        "bn2_g": jnp.ones((32,), jnp.float32), "bn2_b": jnp.zeros((32,), jnp.float32),
        "deconv3_w": rnd(ks[10], (32, 16, 4, 4)), "deconv3_b": rnd(ks[11], (16,)),
        "bn3_g": jnp.ones((16,), jnp.float32), "bn3_b": jnp.zeros((16,), jnp.float32),
        "cls_w": rnd(ks[12], (N_CLASS, 16, 1, 1)), "cls_b": rnd(ks[13], (N_CLASS,)),
    }


# ----------------------------------------------------------------------------
# FCN8s forward
# ----------------------------------------------------------------------------
def fcn8s_forward(params, x_nchw):
    x = jnp.transpose(x_nchw, (0, 2, 3, 1)).astype(jnp.bfloat16)   # NCHW -> NHWC

    # ---- pretrained_net(x) -> (x1, x2, x3)
    # TODO(synk): the real pretrained_net is an arbitrary external module; a
    # deterministic 3-stage stride-2 conv+ReLU backbone (run through the same
    # Pallas kernel) stands in for it here.
    feats, h = [], x
    for wc, bc in params["backbone"]:
        h = backbone_stage(h, wc, bc)
        feats.append(h)
    x1, x2, x3 = feats                               # 32@/2, 64@/4, 128@/8

    # ---- score = bn1(relu(deconv1(x3)) + x2)
    score = deconv_skip_bn(x3, x2, params["deconv1_w"], params["deconv1_b"],
                           params["bn1_g"], params["bn1_b"], K=3)
    # ---- score = bn2(relu(deconv2(score)) + x1)
    score = deconv_skip_bn(score, x1, params["deconv2_w"], params["deconv2_b"],
                           params["bn2_g"], params["bn2_b"], K=3)
    # ---- score = classifier(bn3(relu(deconv3(score))))   (single fused kernel)
    out = deconv_bn_classifier(score, params["deconv3_w"], params["deconv3_b"],
                               params["bn3_g"], params["bn3_b"],
                               params["cls_w"], params["cls_b"])

    return jnp.transpose(out, (0, 3, 1, 2)).astype(jnp.float32)    # NHWC -> NCHW


if __name__ == "__main__":
    key = jax.random.PRNGKey(0)
    pkey, xkey = jax.random.split(key)
    params = init_params(pkey, in_ch=4)
    x = jax.random.normal(xkey, (2, 4, 16, 16), jnp.float32)   # NCHW, like PyTorch

    out = jax.jit(fcn8s_forward)(params, x)
    out = jax.block_until_ready(out)

    # deconv3 (k=4,s=2,p=1,op=1) maps 8 -> 17, so final map is 17x17.
    assert out.shape == (2, N_CLASS, 17, 17), out.shape
    assert bool(jnp.all(jnp.isfinite(out)))
    print("KERNEL_OK")
</pallas_src>

<mosaic_0001>
module attributes {stable_mosaic.version = 11 : i64} {
  func.func @_conv_relu_kernel(%arg0: i32, %arg1: memref<128x128xbf16, #tpu.memory_space<vmem>>, %arg2: memref<128x128xbf16, #tpu.memory_space<vmem>>, %arg3: memref<1x128xf32, #tpu.memory_space<vmem>>, %arg4: memref<128x128xbf16, #tpu.memory_space<vmem>>) attributes {dimension_semantics = [#tpu.dimension_semantics<arbitrary>], iteration_bounds = array<i64: 1>, scalar_prefetch = 0 : i64, scratch_operands = 0 : i64, tpu.core_type = #tpu.core_type<tc>, window_params = [{pipeline_mode = #tpu.pipeline_mode<synchronous>, transform_indices = @transform_0, window_bounds = array<i64: 128, 128>}, {pipeline_mode = #tpu.pipeline_mode<synchronous>, transform_indices = @transform_1, window_bounds = array<i64: 128, 128>}, {pipeline_mode = #tpu.pipeline_mode<synchronous>, transform_indices = @transform_2, window_bounds = array<i64: 1, 128>}, {pipeline_mode = #tpu.pipeline_mode<synchronous>, transform_indices = @transform_3, window_bounds = array<i64: 128, 128>}]} {
    %c0 = arith.constant 0 : index
    %c0_0 = arith.constant 0 : index
    %0 = vector.load %arg1[%c0, %c0_0] : memref<128x128xbf16, #tpu.memory_space<vmem>>, vector<128x128xbf16>
    %c0_1 = arith.constant 0 : index
    %c0_2 = arith.constant 0 : index
    %1 = vector.load %arg2[%c0_1, %c0_2] : memref<128x128xbf16, #tpu.memory_space<vmem>>, vector<128x128xbf16>
    %cst = arith.constant dense<0.000000e+00> : vector<128x128xf32>
    %2 = tpu.matmul %0, %1, %cst {dimension_numbers = #tpu.dot_dimension_numbers<[1], [0], [0], [1], [0, 0, 1, 1], [], []>} : vector<128x128xbf16>, vector<128x128xbf16>, vector<128x128xf32> -> vector<128x128xf32>
    %c0_3 = arith.constant 0 : index
    %c0_4 = arith.constant 0 : index
    %3 = vector.load %arg3[%c0_3, %c0_4] : memref<1x128xf32, #tpu.memory_space<vmem>>, vector<1x128xf32>
    %4 = vector.broadcast %3 : vector<1x128xf32> to vector<128x128xf32>
    %5 = arith.addf %2, %4 : vector<128x128xf32>
    %cst_5 = arith.constant 0.000000e+00 : f32
    %6 = vector.broadcast %cst_5 : f32 to vector<128x128xf32>
    %7 = arith.maximumf %5, %6 : vector<128x128xf32>
    %8 = arith.truncf %7 : vector<128x128xf32> to vector<128x128xbf16>
    %c0_6 = arith.constant 0 : index
    %c0_7 = arith.constant 0 : index
    %9 = vector.load %arg4[%c0_6, %c0_7] : memref<128x128xbf16, #tpu.memory_space<vmem>>, vector<128x128xbf16>
    tpu.vector_store %arg4[%c0_6, %c0_7], %8 {strides = array<i32>} : memref<128x128xbf16, #tpu.memory_space<vmem>>, vector<128x128xbf16>,
    return
  }
  func.func @transform_0(%arg0: i32) -> (i32, i32) {
    %c0_i32 = arith.constant 0 : i32
    %c0_i32_0 = arith.constant 0 : i32
    %c0_i32_1 = arith.constant 0 : i32
    return %c0_i32, %c0_i32_0 : i32, i32
  }
  func.func @transform_1(%arg0: i32) -> (i32, i32) {
    %c0_i32 = arith.constant 0 : i32
    %c0_i32_0 = arith.constant 0 : i32
    %c0_i32_1 = arith.constant 0 : i32
    return %c0_i32, %c0_i32_0 : i32, i32
  }
  func.func @transform_2(%arg0: i32) -> (i32, i32) {
    %c0_i32 = arith.constant 0 : i32
    %c0_i32_0 = arith.constant 0 : i32
    %c0_i32_1 = arith.constant 0 : i32
    return %c0_i32, %c0_i32_0 : i32, i32
  }
  func.func @transform_3(%arg0: i32) -> (i32, i32) {
    %c0_i32 = arith.constant 0 : i32
    %c0_i32_0 = arith.constant 0 : i32
    %c0_i32_1 = arith.constant 0 : i32
    return %c0_i32, %c0_i32_0 : i32, i32
  }
}

module attributes {stable_mosaic.version = 11 : i64} {
  func.func @_conv_relu_kernel(%arg0: i32, %arg1: memref<32x384xbf16, #tpu.memory_space<vmem>>, %arg2: memref<384x128xbf16, #tpu.memory_space<vmem>>, %arg3: memref<1x128xf32, #tpu.memory_space<vmem>>, %arg4: memref<32x128xbf16, #tpu.memory_space<vmem>>) attributes {dimension_semantics = [#tpu.dimension_semantics<arbitrary>], iteration_bounds = array<i64: 1>, scalar_prefetch = 0 : i64, scratch_operands = 0 : i64, tpu.core_type = #tpu.core_type<tc>, window_params = [{pipeline_mode = #tpu.pipeline_mode<synchronous>, transform_indices = @transform_0, window_bounds = array<i64: 32, 384>}, {pipeline_mode = #tpu.pipeline_mode<synchronous>, transform_indices = @transform_1, window_bounds = array<i64: 384, 128>}, {pipeline_mode = #tpu.pipeline_mode<synchronous>, transform_indices = @transform_2, window_bounds = array<i64: 1, 128>}, {pipeline_mode = #tpu.pipeline_mode<synchronous>, transform_indices = @transform_3, window_bounds = array<i64: 32, 128>}]} {
    %c0 = arith.constant 0 : index
    %c0_0 = arith.constant 0 : index
    %0 = vector.load %arg1[%c0, %c0_0] : memref<32x384xbf16, #tpu.memory_space<vmem>>, vector<32x384xbf16>
    %c0_1 = arith.constant 0 : index
    %c0_2 = arith.constant 0 : index
    %1 = vector.load %arg2[%c0_1, %c0_2] : memref<384x128xbf16, #tpu.memory_space<vmem>>, vector<384x128xbf16>
    %cst = arith.constant dense<0.000000e+00> : vector<32x128xf32>
    %2 = tpu.matmul %0, %1, %cst {dimension_numbers = #tpu.dot_dimension_numbers<[1], [0], [0], [1], [0, 0, 1, 1], [], []>} : vector<32x384xbf16>, vector<384x128xbf16>, vector<32x128xf32> -> vector<32x128xf32>
    %c0_3 = arith.constant 0 : index
    %c0_4 = arith.constant 0 : index
    %3 = vector.load %arg3[%c0_3, %c0_4] : memref<1x128xf32, #tpu.memory_space<vmem>>, vector<1x128xf32>
    %4 = vector.broadcast %3 : vector<1x128xf32> to vector<32x128xf32>
    %5 = arith.addf %2, %4 : vector<32x128xf32>
    %cst_5 = arith.constant 0.000000e+00 : f32
    %6 = vector.broadcast %cst_5 : f32 to vector<32x128xf32>
    %7 = arith.maximumf %5, %6 : vector<32x128xf32>
    %8 = arith.truncf %7 : vector<32x128xf32> to vector<32x128xbf16>
    %c0_6 = arith.constant 0 : index
    %c0_7 = arith.constant 0 : index
    %9 = vector.load %arg4[%c0_6, %c0_7] : memref<32x128xbf16, #tpu.memory_space<vmem>>, vector<32x128xbf16>
    tpu.vector_store %arg4[%c0_6, %c0_7], %8 {strides = array<i32>} : memref<32x128xbf16, #tpu.memory_space<vmem>>, vector<32x128xbf16>,
    return
  }
  func.func @transform_0(%arg0: i32) -> (i32, i32) {
    %c0_i32 = arith.constant 0 : i32
    %c0_i32_0 = arith.constant 0 : i32
    %c0_i32_1 = arith.constant 0 : i32
    return %c0_i32, %c0_i32_0 : i32, i32
  }
  func.func @transform_1(%arg0: i32) -> (i32, i32) {
    %c0_i32 = arith.constant 0 : i32
    %c0_i32_0 = arith.constant 0 : i32
    %c0_i32_1 = arith.constant 0 : i32
    return %c0_i32, %c0_i32_0 : i32, i32
  }
  func.func @transform_2(%arg0: i32) -> (i32, i32) {
    %c0_i32 = arith.constant 0 : i32
    %c0_i32_0 = arith.constant 0 : i32
    %c0_i32_1 = arith.constant 0 : i32
    return %c0_i32, %c0_i32_0 : i32, i32
  }
  func.func @transform_3(%arg0: i32) -> (i32, i32) {
    %c0_i32 = arith.constant 0 : i32
    %c0_i32_0 = arith.constant 0 : i32
    %c0_i32_1 = arith.constant 0 : i32
    return %c0_i32, %c0_i32_0 : i32, i32
  }
}

module attributes {stable_mosaic.version = 11 : i64} {
  func.func @_conv_relu_kernel(%arg0: i32, %arg1: memref<8x640xbf16, #tpu.memory_space<vmem>>, %arg2: memref<640x128xbf16, #tpu.memory_space<vmem>>, %arg3: memref<1x128xf32, #tpu.memory_space<vmem>>, %arg4: memref<8x128xbf16, #tpu.memory_space<vmem>>) attributes {dimension_semantics = [#tpu.dimension_semantics<arbitrary>], iteration_bounds = array<i64: 1>, scalar_prefetch = 0 : i64, scratch_operands = 0 : i64, tpu.core_type = #tpu.core_type<tc>, window_params = [{pipeline_mode = #tpu.pipeline_mode<synchronous>, transform_indices = @transform_0, window_bounds = array<i64: 8, 640>}, {pipeline_mode = #tpu.pipeline_mode<synchronous>, transform_indices = @transform_1, window_bounds = array<i64: 640, 128>}, {pipeline_mode = #tpu.pipeline_mode<synchronous>, transform_indices = @transform_2, window_bounds = array<i64: 1, 128>}, {pipeline_mode = #tpu.pipeline_mode<synchronous>, transform_indices = @transform_3, window_bounds = array<i64: 8, 128>}]} {
    %c0 = arith.constant 0 : index
    %c0_0 = arith.constant 0 : index
    %0 = vector.load %arg1[%c0, %c0_0] : memref<8x640xbf16, #tpu.memory_space<vmem>>, vector<8x640xbf16>
    %c0_1 = arith.constant 0 : index
    %c0_2 = arith.constant 0 : index
    %1 = vector.load %arg2[%c0_1, %c0_2] : memref<640x128xbf16, #tpu.memory_space<vmem>>, vector<640x128xbf16>
    %cst = arith.constant dense<0.000000e+00> : vector<8x128xf32>
    %2 = tpu.matmul %0, %1, %cst {dimension_numbers = #tpu.dot_dimension_numbers<[1], [0], [0], [1], [0, 0, 1, 1], [], []>} : vector<8x640xbf16>, vector<640x128xbf16>, vector<8x128xf32> -> vector<8x128xf32>
    %c0_3 = arith.constant 0 : index
    %c0_4 = arith.constant 0 : index
    %3 = vector.load %arg3[%c0_3, %c0_4] : memref<1x128xf32, #tpu.memory_space<vmem>>, vector<1x128xf32>
    %4 = vector.broadcast %3 : vector<1x128xf32> to vector<8x128xf32>
    %5 = arith.addf %2, %4 : vector<8x128xf32>
    %cst_5 = arith.constant 0.000000e+00 : f32
    %6 = vector.broadcast %cst_5 : f32 to vector<8x128xf32>
    %7 = arith.maximumf %5, %6 : vector<8x128xf32>
    %8 = arith.truncf %7 : vector<8x128xf32> to vector<8x128xbf16>
    %c0_6 = arith.constant 0 : index
    %c0_7 = arith.constant 0 : index
    %9 = vector.load %arg4[%c0_6, %c0_7] : memref<8x128xbf16, #tpu.memory_space<vmem>>, vector<8x128xbf16>
    tpu.vector_store %arg4[%c0_6, %c0_7], %8 {strides = array<i32>} : memref<8x128xbf16, #tpu.memory_space<vmem>>, vector<8x128xbf16>,
    return
  }
  func.func @transform_0(%arg0: i32) -> (i32, i32) {
    %c0_i32 = arith.constant 0 : i32
    %c0_i32_0 = arith.constant 0 : i32
    %c0_i32_1 = arith.constant 0 : i32
    return %c0_i32, %c0_i32_0 : i32, i32
  }
  func.func @transform_1(%arg0: i32) -> (i32, i32) {
    %c0_i32 = arith.constant 0 : i32
    %c0_i32_0 = arith.constant 0 : i32
    %c0_i32_1 = arith.constant 0 : i32
    return %c0_i32, %c0_i32_0 : i32, i32
  }
  func.func @transform_2(%arg0: i32) -> (i32, i32) {
    %c0_i32 = arith.constant 0 : i32
    %c0_i32_0 = arith.constant 0 : i32
    %c0_i32_1 = arith.constant 0 : i32
    return %c0_i32, %c0_i32_0 : i32, i32
  }
  func.func @transform_3(%arg0: i32) -> (i32, i32) {
    %c0_i32 = arith.constant 0 : i32
    %c0_i32_0 = arith.constant 0 : i32
    %c0_i32_1 = arith.constant 0 : i32
    return %c0_i32, %c0_i32_0 : i32, i32
  }
}

module attributes {stable_mosaic.version = 11 : i64} {
  func.func @kernel(%arg0: i32, %arg1: memref<32x1152xbf16, #tpu.memory_space<vmem>>, %arg2: memref<1152x128xbf16, #tpu.memory_space<vmem>>, %arg3: memref<1x128xf32, #tpu.memory_space<vmem>>, %arg4: memref<32x128xbf16, #tpu.memory_space<vmem>>, %arg5: memref<1x128xf32, #tpu.memory_space<vmem>>, %arg6: memref<1x128xf32, #tpu.memory_space<vmem>>, %arg7: memref<32x128xbf16, #tpu.memory_space<vmem>>) attributes {dimension_semantics = [#tpu.dimension_semantics<arbitrary>], iteration_bounds = array<i64: 1>, scalar_prefetch = 0 : i64, scratch_operands = 0 : i64, tpu.core_type = #tpu.core_type<tc>, window_params = [{pipeline_mode = #tpu.pipeline_mode<synchronous>, transform_indices = @transform_0, window_bounds = array<i64: 32, 1152>}, {pipeline_mode = #tpu.pipeline_mode<synchronous>, transform_indices = @transform_1, window_bounds = array<i64: 1152, 128>}, {pipeline_mode = #tpu.pipeline_mode<synchronous>, transform_indices = @transform_2, window_bounds = array<i64: 1, 128>}, {pipeline_mode = #tpu.pipeline_mode<synchronous>, transform_indices = @transform_3, window_bounds = array<i64: 32, 128>}, {pipeline_mode = #tpu.pipeline_mode<synchronous>, transform_indices = @transform_4, window_bounds = array<i64: 1, 128>}, {pipeline_mode = #tpu.pipeline_mode<synchronous>, transform_indices = @transform_5, window_bounds = array<i64: 1, 128>}, {pipeline_mode = #tpu.pipeline_mode<synchronous>, transform_indices = @transform_6, window_bounds = array<i64: 32, 128>}]} {
    %c0 = arith.constant 0 : index
    %c0_0 = arith.constant 0 : index
    %0 = vector.load %arg1[%c0, %c0_0] : memref<32x1152xbf16, #tpu.memory_space<vmem>>, vector<32x1152xbf16>
    %c0_1 = arith.constant 0 : index
    %c0_2 = arith.constant 0 : index
    %1 = vector.load %arg2[%c0_1, %c0_2] : memref<1152x128xbf16, #tpu.memory_space<vmem>>, vector<1152x128xbf16>
    %cst = arith.constant dense<0.000000e+00> : vector<32x128xf32>
    %2 = tpu.matmul %0, %1, %cst {dimension_numbers = #tpu.dot_dimension_numbers<[1], [0], [0], [1], [0, 0, 1, 1], [], []>} : vector<32x1152xbf16>, vector<1152x128xbf16>, vector<32x128xf32> -> vector<32x128xf32>
    %c0_3 = arith.constant 0 : index
    %c0_4 = arith.constant 0 : index
    %3 = vector.load %arg3[%c0_3, %c0_4] : memref<1x128xf32, #tpu.memory_space<vmem>>, vector<1x128xf32>
    %4 = vector.broadcast %3 : vector<1x128xf32> to vector<32x128xf32>
    %5 = arith.addf %2, %4 : vector<32x128xf32>
    %cst_5 = arith.constant 0.000000e+00 : f32
    %6 = vector.broadcast %cst_5 : f32 to vector<32x128xf32>
    %7 = arith.maximumf %5, %6 : vector<32x128xf32>
    %c0_6 = arith.constant 0 : index
    %c0_7 = arith.constant 0 : index
    %8 = vector.load %arg4[%c0_6, %c0_7] : memref<32x128xbf16, #tpu.memory_space<vmem>>, vector<32x128xbf16>
    %9 = arith.extf %8 : vector<32x128xbf16> to vector<32x128xf32>
    %10 = arith.addf %7, %9 : vector<32x128xf32>
    %cst_8 = arith.constant dense<0.000000e+00> : vector<128xf32>
    %11 = vector.multi_reduction <add>, %10, %cst_8 [0] : vector<32x128xf32> to vector<128xf32>
    %12 = vector.shape_cast %11 : vector<128xf32> to vector<1x128xf32>
    %13 = arith.mulf %10, %10 : vector<32x128xf32>
    %cst_9 = arith.constant dense<0.000000e+00> : vector<128xf32>
    %14 = vector.multi_reduction <add>, %13, %cst_9 [0] : vector<32x128xf32> to vector<128xf32>
    %15 = vector.shape_cast %14 : vector<128xf32> to vector<1x128xf32>
    %cst_10 = arith.constant 3.125000e-02 : f32
    %16 = vector.broadcast %cst_10 : f32 to vector<1x128xf32>
    %17 = arith.mulf %12, %16 : vector<1x128xf32>
    %cst_11 = arith.constant 3.125000e-02 : f32
    %18 = vector.broadcast %cst_11 : f32 to vector<1x128xf32>
    %19 = arith.mulf %15, %18 : vector<1x128xf32>
    %20 = arith.mulf %17, %17 : vector<1x128xf32>
    %21 = arith.subf %19, %20 : vector<1x128xf32>
    %cst_12 = arith.constant 0.000000e+00 : f32
    %22 = vector.broadcast %cst_12 : f32 to vector<1x128xf32>
    %23 = arith.maximumf %21, %22 : vector<1x128xf32>
    %c0_13 = arith.constant 0 : index
    %c0_14 = arith.constant 0 : index
    %24 = vector.load %arg5[%c0_13, %c0_14] : memref<1x128xf32, #tpu.memory_space<vmem>>, vector<1x128xf32>
    %cst_15 = arith.constant 9.99999974E-6 : f32
    %25 = vector.broadcast %cst_15 : f32 to vector<1x128xf32>
    %26 = arith.addf %23, %25 : vector<1x128xf32>
    %27 = math.rsqrt %26 : vector<1x128xf32>
    %28 = arith.mulf %24, %27 : vector<1x128xf32>
    %c0_16 = arith.constant 0 : index
    %c0_17 = arith.constant 0 : index
    %29 = vector.load %arg6[%c0_16, %c0_17] : memref<1x128xf32, #tpu.memory_space<vmem>>, vector<1x128xf32>
    %30 = arith.mulf %17, %28 : vector<1x128xf32>
    %31 = arith.subf %29, %30 : vector<1x128xf32>
    %32 = vector.broadcast %28 : vector<1x128xf32> to vector<32x128xf32>
    %33 = arith.mulf %10, %32 : vector<32x128xf32>
    %34 = vector.broadcast %31 : vector<1x128xf32> to vector<32x128xf32>
    %35 = arith.addf %33, %34 : vector<32x128xf32>
    %36 = arith.truncf %35 : vector<32x128xf32> to vector<32x128xbf16>
    %c0_18 = arith.constant 0 : index
    %c0_19 = arith.constant 0 : index
    %37 = vector.load %arg7[%c0_18, %c0_19] : memref<32x128xbf16, #tpu.memory_space<vmem>>, vector<32x128xbf16>
    tpu.vector_store %arg7[%c0_18, %c0_19], %36 {strides = array<i32>} : memref<32x128xbf16, #tpu.memory_space<vmem>>, vector<32x128xbf16>,
    return
  }
  func.func @transform_0(%arg0: i32) -> (i32, i32) {
    %c0_i32 = arith.constant 0 : i32
    %c0_i32_0 = arith.constant 0 : i32
    %c0_i32_1 = arith.constant 0 : i32
    return %c0_i32, %c0_i32_0 : i32, i32
  }
  func.func @transform_1(%arg0: i32) -> (i32, i32) {
    %c0_i32 = arith.constant 0 : i32
    %c0_i32_0 = arith.constant 0 : i32
    %c0_i32_1 = arith.constant 0 : i32
    return %c0_i32, %c0_i32_0 : i32, i32
  }
  func.func @transform_2(%arg0: i32) -> (i32, i32) {
    %c0_i32 = arith.constant 0 : i32
    %c0_i32_0 = arith.constant 0 : i32
    %c0_i32_1 = arith.constant 0 : i32
    return %c0_i32, %c0_i32_0 : i32, i32
  }
  func.func @transform_3(%arg0: i32) -> (i32, i32) {
    %c0_i32 = arith.constant 0 : i32
    %c0_i32_0 = arith.constant 0 : i32
    %c0_i32_1 = arith.constant 0 : i32
    return %c0_i32, %c0_i32_0 : i32, i32
  }
  func.func @transform_4(%arg0: i32) -> (i32, i32) {
    %c0_i32 = arith.constant 0 : i32
    %c0_i32_0 = arith.constant 0 : i32
    %c0_i32_1 = arith.constant 0 : i32
    return %c0_i32, %c0_i32_0 : i32, i32
  }
  func.func @transform_5(%arg0: i32) -> (i32, i32) {
    %c0_i32 = arith.constant 0 : i32
    %c0_i32_0 = arith.constant 0 : i32
    %c0_i32_1 = arith.constant 0 : i32
    return %c0_i32, %c0_i32_0 : i32, i32
  }
  func.func @transform_6(%arg0: i32) -> (i32, i32) {
    %c0_i32 = arith.constant 0 : i32
    %c0_i32_0 = arith.constant 0 : i32
    %c0_i32_1 = arith.constant 0 : i32
    return %c0_i32, %c0_i32_0 : i32, i32
  }
}

module attributes {stable_mosaic.version = 11 : i64} {
  func.func @kernel(%arg0: i32, %arg1: memref<128x640xbf16, #tpu.memory_space<vmem>>, %arg2: memref<640x128xbf16, #tpu.memory_space<vmem>>, %arg3: memref<1x128xf32, #tpu.memory_space<vmem>>, %arg4: memref<128x128xbf16, #tpu.memory_space<vmem>>, %arg5: memref<1x128xf32, #tpu.memory_space<vmem>>, %arg6: memref<1x128xf32, #tpu.memory_space<vmem>>, %arg7: memref<128x128xbf16, #tpu.memory_space<vmem>>) attributes {dimension_semantics = [#tpu.dimension_semantics<arbitrary>], iteration_bounds = array<i64: 1>, scalar_prefetch = 0 : i64, scratch_operands = 0 : i64, tpu.core_type = #tpu.core_type<tc>, window_params = [{pipeline_mode = #tpu.pipeline_mode<synchronous>, transform_indices = @transform_0, window_bounds = array<i64: 128, 640>}, {pipeline_mode = #tpu.pipeline_mode<synchronous>, transform_indices = @transform_1, window_bounds = array<i64: 640, 128>}, {pipeline_mode = #tpu.pipeline_mode<synchronous>, transform_indices = @transform_2, window_bounds = array<i64: 1, 128>}, {pipeline_mode = #tpu.pipeline_mode<synchronous>, transform_indices = @transform_3, window_bounds = array<i64: 128, 128>}, {pipeline_mode = #tpu.pipeline_mode<synchronous>, transform_indices = @transform_4, window_bounds = array<i64: 1, 128>}, {pipeline_mode = #tpu.pipeline_mode<synchronous>, transform_indices = @transform_5, window_bounds = array<i64: 1, 128>}, {pipeline_mode = #tpu.pipeline_mode<synchronous>, transform_indices = @transform_6, window_bounds = array<i64: 128, 128>}]} {
    %c0 = arith.constant 0 : index
    %c0_0 = arith.constant 0 : index
    %0 = vector.load %arg1[%c0, %c0_0] : memref<128x640xbf16, #tpu.memory_space<vmem>>, vector<128x640xbf16>
    %c0_1 = arith.constant 0 : index
    %c0_2 = arith.constant 0 : index
    %1 = vector.load %arg2[%c0_1, %c0_2] : memref<640x128xbf16, #tpu.memory_space<vmem>>, vector<640x128xbf16>
    %cst = arith.constant dense<0.000000e+00> : vector<128x128xf32>
    %2 = tpu.matmul %0, %1, %cst {dimension_numbers = #tpu.dot_dimension_numbers<[1], [0], [0], [1], [0, 0, 1, 1], [], []>} : vector<128x640xbf16>, vector<640x128xbf16>, vector<128x128xf32> -> vector<128x128xf32>
    %c0_3 = arith.constant 0 : index
    %c0_4 = arith.constant 0 : index
    %3 = vector.load %arg3[%c0_3, %c0_4] : memref<1x128xf32, #tpu.memory_space<vmem>>, vector<1x128xf32>
    %4 = vector.broadcast %3 : vector<1x128xf32> to vector<128x128xf32>
    %5 = arith.addf %2, %4 : vector<128x128xf32>
    %cst_5 = arith.constant 0.000000e+00 : f32
    %6 = vector.broadcast %cst_5 : f32 to vector<128x128xf32>
    %7 = arith.maximumf %5, %6 : vector<128x128xf32>
    %c0_6 = arith.constant 0 : index
    %c0_7 = arith.constant 0 : index
    %8 = vector.load %arg4[%c0_6, %c0_7] : memref<128x128xbf16, #tpu.memory_space<vmem>>, vector<128x128xbf16>
    %9 = arith.extf %8 : vector<128x128xbf16> to vector<128x128xf32>
    %10 = arith.addf %7, %9 : vector<128x128xf32>
    %cst_8 = arith.constant dense<0.000000e+00> : vector<128xf32>
    %11 = vector.multi_reduction <add>, %10, %cst_8 [0] : vector<128x128xf32> to vector<128xf32>
    %12 = vector.shape_cast %11 : vector<128xf32> to vector<1x128xf32>
    %13 = arith.mulf %10, %10 : vector<128x128xf32>
    %cst_9 = arith.constant dense<0.000000e+00> : vector<128xf32>
    %14 = vector.multi_reduction <add>, %13, %cst_9 [0] : vector<128x128xf32> to vector<128xf32>
    %15 = vector.shape_cast %14 : vector<128xf32> to vector<1x128xf32>
    %cst_10 = arith.constant 7.812500e-03 : f32
    %16 = vector.broadcast %cst_10 : f32 to vector<1x128xf32>
    %17 = arith.mulf %12, %16 : vector<1x128xf32>
    %cst_11 = arith.constant 7.812500e-03 : f32
    %18 = vector.broadcast %cst_11 : f32 to vector<1x128xf32>
    %19 = arith.mulf %15, %18 : vector<1x128xf32>
    %20 = arith.mulf %17, %17 : vector<1x128xf32>
    %21 = arith.subf %19, %20 : vector<1x128xf32>
    %cst_12 = arith.constant 0.000000e+00 : f32
    %22 = vector.broadcast %cst_12 : f32 to vector<1x128xf32>
    %23 = arith.maximumf %21, %22 : vector<1x128xf32>
    %c0_13 = arith.constant 0 : index
    %c0_14 = arith.constant 0 : index
    %24 = vector.load %arg5[%c0_13, %c0_14] : memref<1x128xf32, #tpu.memory_space<vmem>>, vector<1x128xf32>
    %cst_15 = arith.constant 9.99999974E-6 : f32
    %25 = vector.broadcast %cst_15 : f32 to vector<1x128xf32>
    %26 = arith.addf %23, %25 : vector<1x128xf32>
    %27 = math.rsqrt %26 : vector<1x128xf32>
    %28 = arith.mulf %24, %27 : vector<1x128xf32>
    %c0_16 = arith.constant 0 : index
    %c0_17 = arith.constant 0 : index
    %29 = vector.load %arg6[%c0_16, %c0_17] : memref<1x128xf32, #tpu.memory_space<vmem>>, vector<1x128xf32>
    %30 = arith.mulf %17, %28 : vector<1x128xf32>
    %31 = arith.subf %29, %30 : vector<1x128xf32>
    %32 = vector.broadcast %28 : vector<1x128xf32> to vector<128x128xf32>
    %33 = arith.mulf %10, %32 : vector<128x128xf32>
    %34 = vector.broadcast %31 : vector<1x128xf32> to vector<128x128xf32>
    %35 = arith.addf %33, %34 : vector<128x128xf32>
    %36 = arith.truncf %35 : vector<128x128xf32> to vector<128x128xbf16>
    %c0_18 = arith.constant 0 : index
    %c0_19 = arith.constant 0 : index
    %37 = vector.load %arg7[%c0_18, %c0_19] : memref<128x128xbf16, #tpu.memory_space<vmem>>, vector<128x128xbf16>
    tpu.vector_store %arg7[%c0_18, %c0_19], %36 {strides = array<i32>} : memref<128x128xbf16, #tpu.memory_space<vmem>>, vector<128x128xbf16>,
    return
  }
  func.func @transform_0(%arg0: i32) -> (i32, i32) {
    %c0_i32 = arith.constant 0 : i32
    %c0_i32_0 = arith.constant 0 : i32
    %c0_i32_1 = arith.constant 0 : i32
    return %c0_i32, %c0_i32_0 : i32, i32
  }
  func.func @transform_1(%arg0: i32) -> (i32, i32) {
    %c0_i32 = arith.constant 0 : i32
    %c0_i32_0 = arith.constant 0 : i32
    %c0_i32_1 = arith.constant 0 : i32
    return %c0_i32, %c0_i32_0 : i32, i32
  }
  func.func @transform_2(%arg0: i32) -> (i32, i32) {
    %c0_i32 = arith.constant 0 : i32
    %c0_i32_0 = arith.constant 0 : i32
    %c0_i32_1 = arith.constant 0 : i32
    return %c0_i32, %c0_i32_0 : i32, i32
  }
  func.func @transform_3(%arg0: i32) -> (i32, i32) {
    %c0_i32 = arith.constant 0 : i32
    %c0_i32_0 = arith.constant 0 : i32
    %c0_i32_1 = arith.constant 0 : i32
    return %c0_i32, %c0_i32_0 : i32, i32
  }
  func.func @transform_4(%arg0: i32) -> (i32, i32) {
    %c0_i32 = arith.constant 0 : i32
    %c0_i32_0 = arith.constant 0 : i32
    %c0_i32_1 = arith.constant 0 : i32
    return %c0_i32, %c0_i32_0 : i32, i32
  }
  func.func @transform_5(%arg0: i32) -> (i32, i32) {
    %c0_i32 = arith.constant 0 : i32
    %c0_i32_0 = arith.constant 0 : i32
    %c0_i32_1 = arith.constant 0 : i32
    return %c0_i32, %c0_i32_0 : i32, i32
  }
  func.func @transform_6(%arg0: i32) -> (i32, i32) {
    %c0_i32 = arith.constant 0 : i32
    %c0_i32_0 = arith.constant 0 : i32
    %c0_i32_1 = arith.constant 0 : i32
    return %c0_i32, %c0_i32_0 : i32, i32
  }
}

module attributes {stable_mosaic.version = 11 : i64} {
  func.func @kernel(%arg0: i32, %arg1: memref<578x512xbf16, #tpu.memory_space<vmem>>, %arg2: memref<512x128xbf16, #tpu.memory_space<vmem>>, %arg3: memref<1x128xf32, #tpu.memory_space<vmem>>, %arg4: memref<1x128xf32, #tpu.memory_space<vmem>>, %arg5: memref<1x128xf32, #tpu.memory_space<vmem>>, %arg6: memref<128x128xbf16, #tpu.memory_space<vmem>>, %arg7: memref<1x128xf32, #tpu.memory_space<vmem>>, %arg8: memref<578x128xf32, #tpu.memory_space<vmem>>) attributes {dimension_semantics = [#tpu.dimension_semantics<arbitrary>], iteration_bounds = array<i64: 1>, scalar_prefetch = 0 : i64, scratch_operands = 0 : i64, tpu.core_type = #tpu.core_type<tc>, window_params = [{pipeline_mode = #tpu.pipeline_mode<synchronous>, transform_indices = @transform_0, window_bounds = array<i64: 578, 512>}, {pipeline_mode = #tpu.pipeline_mode<synchronous>, transform_indices = @transform_1, window_bounds = array<i64: 512, 128>}, {pipeline_mode = #tpu.pipeline_mode<synchronous>, transform_indices = @transform_2, window_bounds = array<i64: 1, 128>}, {pipeline_mode = #tpu.pipeline_mode<synchronous>, transform_indices = @transform_3, window_bounds = array<i64: 1, 128>}, {pipeline_mode = #tpu.pipeline_mode<synchronous>, transform_indices = @transform_4, window_bounds = array<i64: 1, 128>}, {pipeline_mode = #tpu.pipeline_mode<synchronous>, transform_indices = @transform_5, window_bounds = array<i64: 128, 128>}, {pipeline_mode = #tpu.pipeline_mode<synchronous>, transform_indices = @transform_6, window_bounds = array<i64: 1, 128>}, {pipeline_mode = #tpu.pipeline_mode<synchronous>, transform_indices = @transform_7, window_bounds = array<i64: 578, 128>}]} {
    %c0 = arith.constant 0 : index
    %c0_0 = arith.constant 0 : index
    %0 = vector.load %arg1[%c0, %c0_0] : memref<578x512xbf16, #tpu.memory_space<vmem>>, vector<578x512xbf16>
    %c0_1 = arith.constant 0 : index
    %c0_2 = arith.constant 0 : index
    %1 = vector.load %arg2[%c0_1, %c0_2] : memref<512x128xbf16, #tpu.memory_space<vmem>>, vector<512x128xbf16>
    %cst = arith.constant dense<0.000000e+00> : vector<578x128xf32>
    %2 = tpu.matmul %0, %1, %cst {dimension_numbers = #tpu.dot_dimension_numbers<[1], [0], [0], [1], [0, 0, 1, 1], [], []>} : vector<578x512xbf16>, vector<512x128xbf16>, vector<578x128xf32> -> vector<578x128xf32>
    %c0_3 = arith.constant 0 : index
    %c0_4 = arith.constant 0 : index
    %3 = vector.load %arg3[%c0_3, %c0_4] : memref<1x128xf32, #tpu.memory_space<vmem>>, vector<1x128xf32>
    %4 = vector.broadcast %3 : vector<1x128xf32> to vector<578x128xf32>
    %5 = arith.addf %2, %4 : vector<578x128xf32>
    %cst_5 = arith.constant 0.000000e+00 : f32
    %6 = vector.broadcast %cst_5 : f32 to vector<578x128xf32>
    %7 = arith.maximumf %5, %6 : vector<578x128xf32>
    %cst_6 = arith.constant dense<0.000000e+00> : vector<128xf32>
    %8 = vector.multi_reduction <add>, %7, %cst_6 [0] : vector<578x128xf32> to vector<128xf32>
    %9 = vector.shape_cast %8 : vector<128xf32> to vector<1x128xf32>
    %10 = arith.mulf %7, %7 : vector<578x128xf32>
    %cst_7 = arith.constant dense<0.000000e+00> : vector<128xf32>
    %11 = vector.multi_reduction <add>, %10, %cst_7 [0] : vector<578x128xf32> to vector<128xf32>
    %12 = vector.shape_cast %11 : vector<128xf32> to vector<1x128xf32>
    %cst_8 = arith.constant 0.00173010386 : f32
    %13 = vector.broadcast %cst_8 : f32 to vector<1x128xf32>
    %14 = arith.mulf %9, %13 : vector<1x128xf32>
    %cst_9 = arith.constant 0.00173010386 : f32
    %15 = vector.broadcast %cst_9 : f32 to vector<1x128xf32>
    %16 = arith.mulf %12, %15 : vector<1x128xf32>
    %17 = arith.mulf %14, %14 : vector<1x128xf32>
    %18 = arith.subf %16, %17 : vector<1x128xf32>
    %cst_10 = arith.constant 0.000000e+00 : f32
    %19 = vector.broadcast %cst_10 : f32 to vector<1x128xf32>
    %20 = arith.maximumf %18, %19 : vector<1x128xf32>
    %c0_11 = arith.constant 0 : index
    %c0_12 = arith.constant 0 : index
    %21 = vector.load %arg4[%c0_11, %c0_12] : memref<1x128xf32, #tpu.memory_space<vmem>>, vector<1x128xf32>
    %cst_13 = arith.constant 9.99999974E-6 : f32
    %22 = vector.broadcast %cst_13 : f32 to vector<1x128xf32>
    %23 = arith.addf %20, %22 : vector<1x128xf32>
    %24 = math.rsqrt %23 : vector<1x128xf32>
    %25 = arith.mulf %21, %24 : vector<1x128xf32>
    %c0_14 = arith.constant 0 : index
    %c0_15 = arith.constant 0 : index
    %26 = vector.load %arg5[%c0_14, %c0_15] : memref<1x128xf32, #tpu.memory_space<vmem>>, vector<1x128xf32>
    %27 = arith.mulf %14, %25 : vector<1x128xf32>
    %28 = arith.subf %26, %27 : vector<1x128xf32>
    %29 = vector.broadcast %25 : vector<1x128xf32> to vector<578x128xf32>
    %30 = arith.mulf %7, %29 : vector<578x128xf32>
    %31 = vector.broadcast %28 : vector<1x128xf32> to vector<578x128xf32>
    %32 = arith.addf %30, %31 : vector<578x128xf32>
    %33 = arith.truncf %32 : vector<578x128xf32> to vector<578x128xbf16>
    %c0_16 = arith.constant 0 : index
    %c0_17 = arith.constant 0 : index
    %34 = vector.load %arg6[%c0_16, %c0_17] : memref<128x128xbf16, #tpu.memory_space<vmem>>, vector<128x128xbf16>
    %cst_18 = arith.constant dense<0.000000e+00> : vector<578x128xf32>
    %35 = tpu.matmul %33, %34, %cst_18 {dimension_numbers = #tpu.dot_dimension_numbers<[1], [0], [0], [1], [0, 0, 1, 1], [], []>} : vector<578x128xbf16>, vector<128x128xbf16>, vector<578x128xf32> -> vector<578x128xf32>
    %c0_19 = arith.constant 0 : index
    %c0_20 = arith.constant 0 : index
    %36 = vector.load %arg7[%c0_19, %c0_20] : memref<1x128xf32, #tpu.memory_space<vmem>>, vector<1x128xf32>
    %37 = vector.broadcast %36 : vector<1x128xf32> to vector<578x128xf32>
    %38 = arith.addf %35, %37 : vector<578x128xf32>
    %c0_21 = arith.constant 0 : index
    %c0_22 = arith.constant 0 : index
    %39 = vector.load %arg8[%c0_21, %c0_22] : memref<578x128xf32, #tpu.memory_space<vmem>>, vector<578x128xf32>
    tpu.vector_store %arg8[%c0_21, %c0_22], %38 {strides = array<i32>} : memref<578x128xf32, #tpu.memory_space<vmem>>, vector<578x128xf32>,
    return
  }
  func.func @transform_0(%arg0: i32) -> (i32, i32) {
    %c0_i32 = arith.constant 0 : i32
    %c0_i32_0 = arith.constant 0 : i32
    %c0_i32_1 = arith.constant 0 : i32
    return %c0_i32, %c0_i32_0 : i32, i32
  }
  func.func @transform_1(%arg0: i32) -> (i32, i32) {
    %c0_i32 = arith.constant 0 : i32
    %c0_i32_0 = arith.constant 0 : i32
    %c0_i32_1 = arith.constant 0 : i32
    return %c0_i32, %c0_i32_0 : i32, i32
  }
  func.func @transform_2(%arg0: i32) -> (i32, i32) {
    %c0_i32 = arith.constant 0 : i32
    %c0_i32_0 = arith.constant 0 : i32
    %c0_i32_1 = arith.constant 0 : i32
    return %c0_i32, %c0_i32_0 : i32, i32
  }
  func.func @transform_3(%arg0: i32) -> (i32, i32) {
    %c0_i32 = arith.constant 0 : i32
    %c0_i32_0 = arith.constant 0 : i32
    %c0_i32_1 = arith.constant 0 : i32
    return %c0_i32, %c0_i32_0 : i32, i32
  }
  func.func @transform_4(%arg0: i32) -> (i32, i32) {
    %c0_i32 = arith.constant 0 : i32
    %c0_i32_0 = arith.constant 0 : i32
    %c0_i32_1 = arith.constant 0 : i32
    return %c0_i32, %c0_i32_0 : i32, i32
  }
  func.func @transform_5(%arg0: i32) -> (i32, i32) {
    %c0_i32 = arith.constant 0 : i32
    %c0_i32_0 = arith.constant 0 : i32
    %c0_i32_1 = arith.constant 0 : i32
    return %c0_i32, %c0_i32_0 : i32, i32
  }
  func.func @transform_6(%arg0: i32) -> (i32, i32) {
    %c0_i32 = arith.constant 0 : i32
    %c0_i32_0 = arith.constant 0 : i32
    %c0_i32_1 = arith.constant 0 : i32
    return %c0_i32, %c0_i32_0 : i32, i32
  }
  func.func @transform_7(%arg0: i32) -> (i32, i32) {
    %c0_i32 = arith.constant 0 : i32
    %c0_i32_0 = arith.constant 0 : i32
    %c0_i32_1 = arith.constant 0 : i32
    return %c0_i32, %c0_i32_0 : i32, i32
  }
}

</mosaic_0001>

<llo_original>
// kernel: fcn8s_forward.6
$region0: #{fcn8s_forward.6}
  #allocation0 [shape = 'u32[]', space=smem, size = 0x4, offset = 0x4, fixed_abs, tag = 'smem constant byte address 0x4 - core index']
  #allocation1 [shape = 'u32[144,128]{1,0:T(1,128)}', space=vmem, size = 0x12000, scoped, tag = 'internal scratch']
  %s0 = inlined_call_operand.vmem [shape: bf16[128,128], index: 0, kind: input, shape index: {}]
  %s1 = inlined_call_operand.vmem [shape: bf16[128,128], index: 1, kind: input, shape index: {}]
  %s2 = inlined_call_operand.vmem [shape: f32[1,128], index: 2, kind: input, shape index: {}]
  %s3 = inlined_call_operand.vmem [shape: bf16[128,128], index: 3, kind: output, shape index: {}]
  %s4 = sld [smem:[#allocation0]]
  $region22: #{fcn8s_forward.6} parent=0
    _
  %s6 = ssub.s32 1, %s4
  %s7 = scalar_select 0, %s6, %s4
  // Predicated region
  $region2: #{fcn8s_forward.6} parent=0 // pred_check
    _
  $region3: #{fcn8s_forward.6} parent=0 // pred_check_branch
    %9 = sbr.rel (0) target = $region5
  $region4: #{fcn8s_forward.6} parent=0 // pred_region
    _
  $region5: #{fcn8s_forward.6} parent=0 // pred_fallthru
    _
  // Predicated region
  $region6: #{fcn8s_forward.6} parent=0 // pred_check
    _
  $region7: #{fcn8s_forward.6} parent=0 // pred_check_branch
    %11 = sbr.rel (0) target = $region9
  $region8: #{fcn8s_forward.6} parent=0 // pred_region
    _
  $region9: #{fcn8s_forward.6} parent=0 // pred_fallthru
    _
  // Predicated region
  $region10: #{fcn8s_forward.6} parent=0 // pred_check
    _
  $region11: #{fcn8s_forward.6} parent=0 // pred_check_branch
    %13 = sbr.rel (0) target = $region13
  $region12: #{fcn8s_forward.6} parent=0 // pred_region
    _
  $region13: #{fcn8s_forward.6} parent=0 // pred_fallthru
    _
  %v15 = vld [vmem:[%s0] sm:$0xf]
  %v16 = vld [vmem:[%s0 + $0x4] sm:$0xf]
  %v17 = vld [vmem:[%s0 + $0x8] sm:$0xf]
  %v18 = vld [vmem:[%s0 + $0xc] sm:$0xf]
  %v19 = vld [vmem:[%s0 + $0x10] sm:$0xf]
  %v20 = vld [vmem:[%s0 + $0x14] sm:$0xf]
  %v21 = vld [vmem:[%s0 + $0x18] sm:$0xf]
  %v22 = vld [vmem:[%s0 + $0x1c] sm:$0xf]
  %v23 = vld [vmem:[%s0 + $0x20] sm:$0xf]
  %v24 = vld [vmem:[%s0 + $0x24] sm:$0xf]
  %v25 = vld [vmem:[%s0 + $0x28] sm:$0xf]
  %v26 = vld [vmem:[%s0 + $0x2c] sm:$0xf]
  %v27 = vld [vmem:[%s0 + $0x30] sm:$0xf]
  %v28 = vld [vmem:[%s0 + $0x34] sm:$0xf]
  %v29 = vld [vmem:[%s0 + $0x38] sm:$0xf]
  %v30 = vld [vmem:[%s0 + $0x3c] sm:$0xf]
  %v31 = vld [vmem:[%s1] sm:$0xf]
  %v32 = vld [vmem:[%s1 + $0x4] sm:$0xf]
  %v33 = vld [vmem:[%s1 + $0x8] sm:$0xf]
  %v34 = vld [vmem:[%s1 + $0xc] sm:$0xf]
  %v35 = vld [vmem:[%s1 + $0x10] sm:$0xf]
  %v36 = vld [vmem:[%s1 + $0x14] sm:$0xf]
  %v37 = vld [vmem:[%s1 + $0x18] sm:$0xf]
  %v38 = vld [vmem:[%s1 + $0x1c] sm:$0xf]
  %v39 = vld [vmem:[%s1 + $0x20] sm:$0xf]
  %v40 = vld [vmem:[%s1 + $0x24] sm:$0xf]
  %v41 = vld [vmem:[%s1 + $0x28] sm:$0xf]
  %v42 = vld [vmem:[%s1 + $0x2c] sm:$0xf]
  %v43 = vld [vmem:[%s1 + $0x30] sm:$0xf]
  %v44 = vld [vmem:[%s1 + $0x34] sm:$0xf]
  %v45 = vld [vmem:[%s1 + $0x38] sm:$0xf]
  %v46 = vld [vmem:[%s1 + $0x3c] sm:$0xf]
  %v47 = vld [vmem:[%s2] sm:$0x1]
  %v49 = vlaneseq
  %v50 = vshrl.u32 %v49, 7
  %v51 = vsub.s32 0, %v50
  %v52 = vrot.slane %v47, %v51
  %v70 = vunpack.c.l.b16 %v15
  %v71 = vunpack.c.l.b16 %v16
  %v72 = vunpack.c.l.b16 %v17
  %v73 = vunpack.c.l.b16 %v18
  %v74 = vunpack.c.l.b16 %v19
  %v75 = vunpack.c.l.b16 %v20
  %v76 = vunpack.c.l.b16 %v21
  %v77 = vunpack.c.l.b16 %v22
  %v78 = vunpack.c.l.b16 %v23
  %v79 = vunpack.c.l.b16 %v24
  %v80 = vunpack.c.l.b16 %v25
  %v81 = vunpack.c.l.b16 %v26
  %v82 = vunpack.c.l.b16 %v27
  %v83 = vunpack.c.l.b16 %v28
  %v84 = vunpack.c.l.b16 %v29
  %v85 = vunpack.c.l.b16 %v30
  %v86 = vpack.c.b16 %v71, %v70
  %v87 = vpack.c.b16 %v73, %v72
  %v88 = vpack.c.b16 %v75, %v74
  %v89 = vpack.c.b16 %v77, %v76
  %v90 = vpack.c.b16 %v79, %v78
  %v91 = vpack.c.b16 %v81, %v80
  %v92 = vpack.c.b16 %v83, %v82
  %v93 = vpack.c.b16 %v85, %v84
  %v118 = vunpack.c.l.b16 %v31
  %v119 = vunpack.c.l.b16 %v32
  %v120 = vunpack.c.l.b16 %v33
  %v121 = vunpack.c.l.b16 %v34
  %v122 = vunpack.c.l.b16 %v35
  %v123 = vunpack.c.l.b16 %v36
  %v124 = vunpack.c.l.b16 %v37
  %v125 = vunpack.c.l.b16 %v38
  %v126 = vunpack.c.l.b16 %v39
  %v127 = vunpack.c.l.b16 %v40
  %v128 = vunpack.c.l.b16 %v41
  %v129 = vunpack.c.l.b16 %v42
  %v130 = vunpack.c.l.b16 %v43
  %v131 = vunpack.c.l.b16 %v44
  %v132 = vunpack.c.l.b16 %v45
  %v133 = vunpack.c.l.b16 %v46
  %v134 = vpack.c.b16 %v119, %v118
  %v135 = vpack.c.b16 %v121, %v120
  %v136 = vpack.c.b16 %v123, %v122
  %v137 = vpack.c.b16 %v125, %v124
  %v138 = vpack.c.b16 %v127, %v126
  %v139 = vpack.c.b16 %v129, %v128
  %v140 = vpack.c.b16 %v131, %v130
  %v141 = vpack.c.b16 %v133, %v132
  %150 = vmatprep.subr.bf16.mxu0 0
  %151 = vmatpush1.bf16.msra.mxu0 %v141
  %152 = vmatprep.subr.bf16.mxu0 0
  %153 = vmatpush1.bf16.msra.mxu0 %v140
  %154 = vmatprep.subr.bf16.mxu0 0
  %155 = vmatpush1.bf16.msra.mxu0 %v139
  %156 = vmatprep.subr.bf16.mxu0 0
  %157 = vmatpush1.bf16.msra.mxu0 %v138
  %158 = vmatprep.subr.bf16.mxu0 0
  %159 = vmatpush1.bf16.msra.mxu0 %v137
  %160 = vmatprep.subr.bf16.mxu0 0
  %161 = vmatpush1.bf16.msra.mxu0 %v136
  %162 = vmatprep.subr.bf16.mxu0 0
  %163 = vmatpush1.bf16.msra.mxu0 %v135
  %164 = vmatprep.subr.bf16.mxu0 0
  %165 = vmatpush1.bf16.msra.mxu0 %v134
  %166 = vmatprep.subr.bf16.mxu0 0
  %167 = vmatpush2.bf16.msra.mxu0 0
  %168 = vmatprep.subr.bf16.mxu0 0
  %169 = vmatpush2.bf16.msra.mxu0 0
  %170 = vmatprep.subr.bf16.mxu0 0
  %171 = vmatpush2.bf16.msra.mxu0 0
  %172 = vmatprep.subr.bf16.mxu0 0
  %173 = vmatpush2.bf16.msra.mxu0 0
  %174 = vmatprep.subr.bf16.mxu0 0
  %175 = vmatpush2.bf16.msra.mxu0 0
  %176 = vmatprep.subr.bf16.mxu0 0
  %177 = vmatpush2.bf16.msra.mxu0 0
  %178 = vmatprep.subr.bf16.mxu0 0
  %179 = vmatpush2.bf16.msra.mxu0 0
  %180 = vmatprep.subr.bf16.mxu0 0
  %181 = vmatpush2.bf16.msra.mxu0 0
  %182 = vmatprep.mubr.bf16.mxu0 0
  %183 = vmatmul.mubr.bf16.gmra.mxu0 %v86
  %v184 = vpop.f32.mrf.mxu0
  %v185 = vadd.f32 %v52, %v184
  %v186 = vpop.f32.mrf.mxu0
  %v187 = vpop.f32.mrf.mxu0
  %v188 = vadd.f32 %v52, %v187
  %v189 = vpop.f32.mrf.mxu0
  %190 = vmatprep.mubr.bf16.mxu0 0
  %191 = vmatmul.mubr.bf16.gmra.mxu0 %v87
  %v192 = vpop.f32.mrf.mxu0
  %v193 = vadd.f32 %v52, %v192
  %v194 = vpop.f32.mrf.mxu0
  %v195 = vpop.f32.mrf.mxu0
  %v196 = vadd.f32 %v52, %v195
  %v197 = vpop.f32.mrf.mxu0
  %198 = vmatprep.mubr.bf16.mxu0 0
  %199 = vmatmul.mubr.bf16.gmra.mxu0 %v88
  %v200 = vpop.f32.mrf.mxu0
  %v201 = vadd.f32 %v52, %v200
  %v202 = vpop.f32.mrf.mxu0
  %v203 = vpop.f32.mrf.mxu0
  %v204 = vadd.f32 %v52, %v203
  %v205 = vpop.f32.mrf.mxu0
  %206 = vmatprep.mubr.bf16.mxu0 0
  %207 = vmatmul.mubr.bf16.gmra.mxu0 %v89
  %v208 = vpop.f32.mrf.mxu0
  %v209 = vadd.f32 %v52, %v208
  %v210 = vpop.f32.mrf.mxu0
  %v211 = vpop.f32.mrf.mxu0
  %v212 = vadd.f32 %v52, %v211
  %v213 = vpop.f32.mrf.mxu0
  %214 = vmatprep.mubr.bf16.mxu0 0
  %215 = vmatmul.mubr.bf16.gmra.mxu0 %v90
  %v216 = vpop.f32.mrf.mxu0
  %v217 = vadd.f32 %v52, %v216
  %v218 = vpop.f32.mrf.mxu0
  %v219 = vpop.f32.mrf.mxu0
  %v220 = vadd.f32 %v52, %v219
  %v221 = vpop.f32.mrf.mxu0
  %222 = vmatprep.mubr.bf16.mxu0 0
  %223 = vmatmul.mubr.bf16.gmra.mxu0 %v91
  %v224 = vpop.f32.mrf.mxu0
  %v225 = vadd.f32 %v52, %v224
  %v226 = vpop.f32.mrf.mxu0
  %v227 = vpop.f32.mrf.mxu0
  %v228 = vadd.f32 %v52, %v227
  %v229 = vpop.f32.mrf.mxu0
  %230 = vmatprep.mubr.bf16.mxu0 0
  %231 = vmatmul.mubr.bf16.gmra.mxu0 %v92
  %v232 = vpop.f32.mrf.mxu0
  %v233 = vadd.f32 %v52, %v232
  %v234 = vpop.f32.mrf.mxu0
  %v235 = vpop.f32.mrf.mxu0
  %v236 = vadd.f32 %v52, %v235
  %v237 = vpop.f32.mrf.mxu0
  %238 = vmatprep.mubr.bf16.mxu0 0
  %239 = vmatmul.mubr.bf16.gmra.mxu0 %v93
  %v240 = vpop.f32.mrf.mxu0
  %v241 = vadd.f32 %v52, %v240
  %v242 = vpop.f32.mrf.mxu0
  %v243 = vpop.f32.mrf.mxu0
  %v244 = vadd.f32 %v52, %v243
  %v245 = vpop.f32.mrf.mxu0
  %246 = vdwg.mxu0
  %v247 = vmax.f32 %v185, 0.0
  %v248 = vmax.f32 %v188, 0.0
  %v249 = vmax.f32 %v193, 0.0
  %v250 = vmax.f32 %v196, 0.0
  %v251 = vmax.f32 %v201, 0.0
  %v252 = vmax.f32 %v204, 0.0
  %v253 = vmax.f32 %v209, 0.0
  %v254 = vmax.f32 %v212, 0.0
  %v255 = vmax.f32 %v217, 0.0
  %v256 = vmax.f32 %v220, 0.0
  %v257 = vmax.f32 %v225, 0.0
  %v258 = vmax.f32 %v228, 0.0
  %v259 = vmax.f32 %v233, 0.0
  %v260 = vmax.f32 %v236, 0.0
  %v261 = vmax.f32 %v241, 0.0
  %v262 = vmax.f32 %v244, 0.0
  %v263 = vpack.c.bf16 %v248, %v247
  %v264 = vpack.c.bf16 %v250, %v249
  %v265 = vpack.c.bf16 %v252, %v251
  %v266 = vpack.c.bf16 %v254, %v253
  %v267 = vpack.c.bf16 %v256, %v255
  %v268 = vpack.c.bf16 %v258, %v257
  %v269 = vpack.c.bf16 %v260, %v259
  %v270 = vpack.c.bf16 %v262, %v261
  %v279 = vunpack.c.l.b16 %v263
  %v280 = vunpack.c.h.b16 %v263
  %v281 = vunpack.c.l.b16 %v264
  %v282 = vunpack.c.h.b16 %v264
  %v283 = vunpack.c.l.b16 %v265
  %v284 = vunpack.c.h.b16 %v265
  %v285 = vunpack.c.l.b16 %v266
  %v286 = vunpack.c.h.b16 %v266
  %v287 = vunpack.c.l.b16 %v267
  %v288 = vunpack.c.h.b16 %v267
  %v289 = vunpack.c.l.b16 %v268
  %v290 = vunpack.c.h.b16 %v268
  %v291 = vunpack.c.l.b16 %v269
  %v292 = vunpack.c.h.b16 %v269
  %v293 = vunpack.c.l.b16 %v270
  %v294 = vunpack.c.h.b16 %v270
  %v295 = vpack.c.b16 %v279, %v279
  %v296 = vpack.c.b16 %v280, %v280
  %v297 = vpack.c.b16 %v281, %v281
  %v298 = vpack.c.b16 %v282, %v282
  %v299 = vpack.c.b16 %v283, %v283
  %v300 = vpack.c.b16 %v284, %v284
  %v301 = vpack.c.b16 %v285, %v285
  %v302 = vpack.c.b16 %v286, %v286
  %v303 = vpack.c.b16 %v287, %v287
  %v304 = vpack.c.b16 %v288, %v288
  %v305 = vpack.c.b16 %v289, %v289
  %v306 = vpack.c.b16 %v290, %v290
  %v307 = vpack.c.b16 %v291, %v291
  %v308 = vpack.c.b16 %v292, %v292
  %v309 = vpack.c.b16 %v293, %v293
  %v310 = vpack.c.b16 %v294, %v294
  %327 = vst [vmem:[%s3] sm:$0xf] %v295
  %328 = vst [vmem:[%s3 + $0x4] sm:$0xf] %v296
  %329 = vst [vmem:[%s3 + $0x8] sm:$0xf] %v297
  %330 = vst [vmem:[%s3 + $0xc] sm:$0xf] %v298
  %331 = vst [vmem:[%s3 + $0x10] sm:$0xf] %v299
  %332 = vst [vmem:[%s3 + $0x14] sm:$0xf] %v300
  %333 = vst [vmem:[%s3 + $0x18] sm:$0xf] %v301
  %334 = vst [vmem:[%s3 + $0x1c] sm:$0xf] %v302
  %335 = vst [vmem:[%s3 + $0x20] sm:$0xf] %v303
  %336 = vst [vmem:[%s3 + $0x24] sm:$0xf] %v304
  %337 = vst [vmem:[%s3 + $0x28] sm:$0xf] %v305
  %338 = vst [vmem:[%s3 + $0x2c] sm:$0xf] %v306
  %339 = vst [vmem:[%s3 + $0x30] sm:$0xf] %v307
  %340 = vst [vmem:[%s3 + $0x34] sm:$0xf] %v308
  %341 = vst [vmem:[%s3 + $0x38] sm:$0xf] %v309
  %342 = vst [vmem:[%s3 + $0x3c] sm:$0xf] %v310
  // Predicated region
  $region14: #{fcn8s_forward.6} parent=0 // pred_check
    _
  $region15: #{fcn8s_forward.6} parent=0 // pred_check_branch
    %344 = sbr.rel (0) target = $region17
  $region16: #{fcn8s_forward.6} parent=0 // pred_region
    _
  $region17: #{fcn8s_forward.6} parent=0 // pred_fallthru
    _
  // Predicated region
  $region18: #{fcn8s_forward.6} parent=0 // pred_check
    _
  $region19: #{fcn8s_forward.6} parent=0 // pred_check_branch
    %346 = sbr.rel (0) target = $region21
  $region20: #{fcn8s_forward.6} parent=0 // pred_region
    _
  $region21: #{fcn8s_forward.6} parent=0 // pred_fallthru
    _

// kernel: fcn8s_forward.7
$region0: #{fcn8s_forward.7}
  #allocation0 [shape = 'u32[]', space=smem, size = 0x4, offset = 0x4, fixed_abs, tag = 'smem constant byte address 0x4 - core index']
  #allocation1 [shape = 'u32[144,128]{1,0:T(1,128)}', space=vmem, size = 0x12000, scoped, tag = 'internal scratch']
  %s0 = inlined_call_operand.vmem [shape: bf16[32,384], index: 0, kind: input, shape index: {}]
  %s1 = inlined_call_operand.vmem [shape: bf16[384,128], index: 1, kind: input, shape index: {}]
  %s2 = inlined_call_operand.vmem [shape: f32[1,128], index: 2, kind: input, shape index: {}]
  %s3 = inlined_call_operand.vmem [shape: bf16[32,128], index: 3, kind: output, shape index: {}]
  %s4 = sld [smem:[#allocation0]]
  $region22: #{fcn8s_forward.7} parent=0
    _
  %s6 = ssub.s32 1, %s4
  %s7 = scalar_select 0, %s6, %s4
  // Predicated region
  $region2: #{fcn8s_forward.7} parent=0 // pred_check
    _
  $region3: #{fcn8s_forward.7} parent=0 // pred_check_branch
    %9 = sbr.rel (0) target = $region5
  $region4: #{fcn8s_forward.7} parent=0 // pred_region
    _
  $region5: #{fcn8s_forward.7} parent=0 // pred_fallthru
    _
  // Predicated region
  $region6: #{fcn8s_forward.7} parent=0 // pred_check
    _
  $region7: #{fcn8s_forward.7} parent=0 // pred_check_branch
    %11 = sbr.rel (0) target = $region9
  $region8: #{fcn8s_forward.7} parent=0 // pred_region
    _
  $region9: #{fcn8s_forward.7} parent=0 // pred_fallthru
    _
  // Predicated region
  $region10: #{fcn8s_forward.7} parent=0 // pred_check
    _
  $region11: #{fcn8s_forward.7} parent=0 // pred_check_branch
    %13 = sbr.rel (0) target = $region13
  $region12: #{fcn8s_forward.7} parent=0 // pred_region
    _
  $region13: #{fcn8s_forward.7} parent=0 // pred_fallthru
    _
  %v15 = vld [vmem:[%s0] sm:$0xff]
  %v16 = vld [vmem:[%s0 + $0x8] sm:$0xf]
  %v17 = vld [vmem:[%s0 + $0xc] sm:$0xff]
  %v18 = vld [vmem:[%s0 + $0x14] sm:$0xf]
  %v19 = vld [vmem:[%s0 + $0x18] sm:$0xff]
  %v20 = vld [vmem:[%s0 + $0x20] sm:$0xf]
  %v21 = vld [vmem:[%s0 + $0x24] sm:$0xff]
  %v22 = vld [vmem:[%s0 + $0x2c] sm:$0xf]
  %v23 = vld [vmem:[%s1] sm:$0xf]
  %v24 = vld [vmem:[%s1 + $0x4] sm:$0xf]
  %v25 = vld [vmem:[%s1 + $0x8] sm:$0xf]
  %v26 = vld [vmem:[%s1 + $0xc] sm:$0xf]
  %v27 = vld [vmem:[%s1 + $0x10] sm:$0xf]
  %v28 = vld [vmem:[%s1 + $0x14] sm:$0xf]
  %v29 = vld [vmem:[%s1 + $0x18] sm:$0xf]
  %v30 = vld [vmem:[%s1 + $0x1c] sm:$0xf]
  %v31 = vld [vmem:[%s1 + $0x20] sm:$0xf]
  %v32 = vld [vmem:[%s1 + $0x24] sm:$0xf]
  %v33 = vld [vmem:[%s1 + $0x28] sm:$0xf]
  %v34 = vld [vmem:[%s1 + $0x2c] sm:$0xf]
  %v35 = vld [vmem:[%s1 + $0x30] sm:$0xf]
  %v36 = vld [vmem:[%s1 + $0x34] sm:$0xf]
  %v37 = vld [vmem:[%s1 + $0x38] sm:$0xf]
  %v38 = vld [vmem:[%s1 + $0x3c] sm:$0xf]
  %v39 = vld [vmem:[%s1 + $0x40] sm:$0xf]
  %v40 = vld [vmem:[%s1 + $0x44] sm:$0xf]
  %v41 = vld [vmem:[%s1 + $0x48] sm:$0xf]
  %v42 = vld [vmem:[%s1 + $0x4c] sm:$0xf]
  %v43 = vld [vmem:[%s1 + $0x50] sm:$0xf]
  %v44 = vld [vmem:[%s1 + $0x54] sm:$0xf]
  %v45 = vld [vmem:[%s1 + $0x58] sm:$0xf]
  %v46 = vld [vmem:[%s1 + $0x5c] sm:$0xf]
  %v47 = vld [vmem:[%s1 + $0x60] sm:$0xf]
  %v48 = vld [vmem:[%s1 + $0x64] sm:$0xf]
  %v49 = vld [vmem:[%s1 + $0x68] sm:$0xf]
  %v50 = vld [vmem:[%s1 + $0x6c] sm:$0xf]
  %v51 = vld [vmem:[%s1 + $0x70] sm:$0xf]
  %v52 = vld [vmem:[%s1 + $0x74] sm:$0xf]
  %v53 = vld [vmem:[%s1 + $0x78] sm:$0xf]
  %v54 = vld [vmem:[%s1 + $0x7c] sm:$0xf]
  %v55 = vld [vmem:[%s1 + $0x80] sm:$0xf]
  %v56 = vld [vmem:[%s1 + $0x84] sm:$0xf]
  %v57 = vld [vmem:[%s1 + $0x88] sm:$0xf]
  %v58 = vld [vmem:[%s1 + $0x8c] sm:$0xf]
  %v59 = vld [vmem:[%s1 + $0x90] sm:$0xf]
  %v60 = vld [vmem:[%s1 + $0x94] sm:$0xf]
  %v61 = vld [vmem:[%s1 + $0x98] sm:$0xf]
  %v62 = vld [vmem:[%s1 + $0x9c] sm:$0xf]
  %v63 = vld [vmem:[%s1 + $0xa0] sm:$0xf]
  %v64 = vld [vmem:[%s1 + $0xa4] sm:$0xf]
  %v65 = vld [vmem:[%s1 + $0xa8] sm:$0xf]
  %v66 = vld [vmem:[%s1 + $0xac] sm:$0xf]
  %v67 = vld [vmem:[%s1 + $0xb0] sm:$0xf]
  %v68 = vld [vmem:[%s1 + $0xb4] sm:$0xf]
  %v69 = vld [vmem:[%s1 + $0xb8] sm:$0xf]
  %v70 = vld [vmem:[%s1 + $0xbc] sm:$0xf]
  %v71 = vld [vmem:[%s2] sm:$0x1]
  %v73 = vlaneseq
  %v74 = vshrl.u32 %v73, 7
  %v75 = vsub.s32 0, %v74
  %v76 = vrot.slane %v71, %v75
  %v86 = vunpack.c.l.b16 %v15
  %v87 = vunpack.c.h.b16 %v15
  %v88 = vunpack.c.l.b16 %v16
  %v89 = vunpack.c.l.b16 %v17
  %v90 = vunpack.c.h.b16 %v17
  %v91 = vunpack.c.l.b16 %v18
  %v92 = vunpack.c.l.b16 %v19
  %v93 = vunpack.c.h.b16 %v19
  %v94 = vunpack.c.l.b16 %v20
  %v95 = vunpack.c.l.b16 %v21
  %v96 = vunpack.c.h.b16 %v21
  %v97 = vunpack.c.l.b16 %v22
  %v98 = vpack.c.b16 %v89, %v86
  %v99 = vpack.c.b16 %v90, %v87
  %v100 = vpack.c.b16 %v91, %v88
  %v101 = vpack.c.b16 %v95, %v92
  %v102 = vpack.c.b16 %v96, %v93
  %v103 = vpack.c.b16 %v97, %v94
  %v158 = vunpack.c.l.b16 %v23
  %v159 = vunpack.c.l.b16 %v24
  %v160 = vunpack.c.l.b16 %v25
  %v161 = vunpack.c.l.b16 %v26
  %v162 = vunpack.c.l.b16 %v27
  %v163 = vunpack.c.l.b16 %v28
  %v164 = vunpack.c.l.b16 %v29
  %v165 = vunpack.c.l.b16 %v30
  %v166 = vunpack.c.l.b16 %v31
  %v167 = vunpack.c.l.b16 %v32
  %v168 = vunpack.c.l.b16 %v33
  %v169 = vunpack.c.l.b16 %v34
  %v170 = vunpack.c.l.b16 %v35
  %v171 = vunpack.c.l.b16 %v36
  %v172 = vunpack.c.l.b16 %v37
  %v173 = vunpack.c.l.b16 %v38
  %v174 = vunpack.c.l.b16 %v39
  %v175 = vunpack.c.l.b16 %v40
  %v176 = vunpack.c.l.b16 %v41
  %v177 = vunpack.c.l.b16 %v42
  %v178 = vunpack.c.l.b16 %v43
  %v179 = vunpack.c.l.b16 %v44
  %v180 = vunpack.c.l.b16 %v45
  %v181 = vunpack.c.l.b16 %v46
  %v182 = vunpack.c.l.b16 %v47
  %v183 = vunpack.c.l.b16 %v48
  %v184 = vunpack.c.l.b16 %v49
  %v185 = vunpack.c.l.b16 %v50
  %v186 = vunpack.c.l.b16 %v51
  %v187 = vunpack.c.l.b16 %v52
  %v188 = vunpack.c.l.b16 %v53
  %v189 = vunpack.c.l.b16 %v54
  %v190 = vunpack.c.l.b16 %v55
  %v191 = vunpack.c.l.b16 %v56
  %v192 = vunpack.c.l.b16 %v57
  %v193 = vunpack.c.l.b16 %v58
  %v194 = vunpack.c.l.b16 %v59
  %v195 = vunpack.c.l.b16 %v60
  %v196 = vunpack.c.l.b16 %v61
  %v197 = vunpack.c.l.b16 %v62
  %v198 = vunpack.c.l.b16 %v63
  %v199 = vunpack.c.l.b16 %v64
  %v200 = vunpack.c.l.b16 %v65
  %v201 = vunpack.c.l.b16 %v66
  %v202 = vunpack.c.l.b16 %v67
  %v203 = vunpack.c.l.b16 %v68
  %v204 = vunpack.c.l.b16 %v69
  %v205 = vunpack.c.l.b16 %v70
  %v206 = vpack.c.b16 %v159, %v158
  %v207 = vpack.c.b16 %v161, %v160
  %v208 = vpack.c.b16 %v163, %v162
  %v209 = vpack.c.b16 %v165, %v164
  %v210 = vpack.c.b16 %v167, %v166
  %v211 = vpack.c.b16 %v169, %v168
  %v212 = vpack.c.b16 %v171, %v170
  %v213 = vpack.c.b16 %v173, %v172
  %v214 = vpack.c.b16 %v175, %v174
  %v215 = vpack.c.b16 %v177, %v176
  %v216 = vpack.c.b16 %v179, %v178
  %v217 = vpack.c.b16 %v181, %v180
  %v218 = vpack.c.b16 %v183, %v182
  %v219 = vpack.c.b16 %v185, %v184
  %v220 = vpack.c.b16 %v187, %v186
  %v221 = vpack.c.b16 %v189, %v188
  %v222 = vpack.c.b16 %v191, %v190
  %v223 = vpack.c.b16 %v193, %v192
  %v224 = vpack.c.b16 %v195, %v194
  %v225 = vpack.c.b16 %v197, %v196
  %v226 = vpack.c.b16 %v199, %v198
  %v227 = vpack.c.b16 %v201, %v200
  %v228 = vpack.c.b16 %v203, %v202
  %v229 = vpack.c.b16 %v205, %v204
  %254 = vmatprep.subr.bf16.mxu0 0
  %255 = vmatpush1.bf16.msra.mxu0 %v213
  %256 = vmatprep.subr.bf16.mxu0 0
  %257 = vmatpush1.bf16.msra.mxu0 %v212
  %258 = vmatprep.subr.bf16.mxu0 0
  %259 = vmatpush1.bf16.msra.mxu0 %v211
  %260 = vmatprep.subr.bf16.mxu0 0
  %261 = vmatpush1.bf16.msra.mxu0 %v210
  %262 = vmatprep.subr.bf16.mxu0 0
  %263 = vmatpush1.bf16.msra.mxu0 %v209
  %264 = vmatprep.subr.bf16.mxu0 0
  %265 = vmatpush1.bf16.msra.mxu0 %v208
  %266 = vmatprep.subr.bf16.mxu0 0
  %267 = vmatpush1.bf16.msra.mxu0 %v207
  %268 = vmatprep.subr.bf16.mxu0 0
  %269 = vmatpush1.bf16.msra.mxu0 %v206
  %270 = vmatprep.subr.bf16.mxu0 0
  %271 = vmatpush2.bf16.msra.mxu0 %v221
  %272 = vmatprep.subr.bf16.mxu0 0
  %273 = vmatpush2.bf16.msra.mxu0 %v220
  %274 = vmatprep.subr.bf16.mxu0 0
  %275 = vmatpush2.bf16.msra.mxu0 %v219
  %276 = vmatprep.subr.bf16.mxu0 0
  %277 = vmatpush2.bf16.msra.mxu0 %v218
  %278 = vmatprep.subr.bf16.mxu0 0
  %279 = vmatpush2.bf16.msra.mxu0 %v217
  %280 = vmatprep.subr.bf16.mxu0 0
  %281 = vmatpush2.bf16.msra.mxu0 %v216
  %282 = vmatprep.subr.bf16.mxu0 0
  %283 = vmatpush2.bf16.msra.mxu0 %v215
  %284 = vmatprep.subr.bf16.mxu0 0
  %285 = vmatpush2.bf16.msra.mxu0 %v214
  %286 = vmatprep.mubr.bf16.mxu0 %v99
  %287 = vmatmul.mubr.bf16.gmra.mxu0 %v98
  %v288 = vpop.f32.mrf.mxu0
  %v289 = vadd.f32 %v76, %v288
  %v290 = vpop.f32.mrf.mxu0
  %v291 = vpop.f32.mrf.mxu0
  %v292 = vadd.f32 %v76, %v291
  %v293 = vpop.f32.mrf.mxu0
  %294 = vmatprep.mubr.bf16.mxu0 %v102
  %295 = vmatmul.mubr.bf16.gmra.mxu0 %v101
  %v296 = vpop.f32.mrf.mxu0
  %v297 = vadd.f32 %v76, %v296
  %v298 = vpop.f32.mrf.mxu0
  %v299 = vpop.f32.mrf.mxu0
  %v300 = vadd.f32 %v76, %v299
  %v301 = vpop.f32.mrf.mxu0
  %302 = vdwg.mxu0
  %303 = vmatprep.subr.bf16.mxu0 0
  %304 = vmatpush1.bf16.msra.mxu0 %v229
  %305 = vmatprep.subr.bf16.mxu0 0
  %306 = vmatpush1.bf16.msra.mxu0 %v228
  %307 = vmatprep.subr.bf16.mxu0 0
  %308 = vmatpush1.bf16.msra.mxu0 %v227
  %309 = vmatprep.subr.bf16.mxu0 0
  %310 = vmatpush1.bf16.msra.mxu0 %v226
  %311 = vmatprep.subr.bf16.mxu0 0
  %312 = vmatpush1.bf16.msra.mxu0 %v225
  %313 = vmatprep.subr.bf16.mxu0 0
  %314 = vmatpush1.bf16.msra.mxu0 %v224
  %315 = vmatprep.subr.bf16.mxu0 0
  %316 = vmatpush1.bf16.msra.mxu0 %v223
  %317 = vmatprep.subr.bf16.mxu0 0
  %318 = vmatpush1.bf16.msra.mxu0 %v222
  %319 = vmatprep.subr.bf16.mxu0 0
  %320 = vmatpush2.bf16.msra.mxu0 0
  %321 = vmatprep.subr.bf16.mxu0 0
  %322 = vmatpush2.bf16.msra.mxu0 0
  %323 = vmatprep.subr.bf16.mxu0 0
  %324 = vmatpush2.bf16.msra.mxu0 0
  %325 = vmatprep.subr.bf16.mxu0 0
  %326 = vmatpush2.bf16.msra.mxu0 0
  %327 = vmatprep.subr.bf16.mxu0 0
  %328 = vmatpush2.bf16.msra.mxu0 0
  %329 = vmatprep.subr.bf16.mxu0 0
  %330 = vmatpush2.bf16.msra.mxu0 0
  %331 = vmatprep.subr.bf16.mxu0 0
  %332 = vmatpush2.bf16.msra.mxu0 0
  %333 = vmatprep.subr.bf16.mxu0 0
  %334 = vmatpush2.bf16.msra.mxu0 0
  %335 = vmatprep.mubr.bf16.mxu0 0
  %336 = vmatmul.mubr.bf16.gmra.mxu0 %v100
  %v337 = vpop.f32.mrf.mxu0
  %v338 = vadd.f32 %v289, %v337
  %v339 = vpop.f32.mrf.mxu0
  %v340 = vpop.f32.mrf.mxu0
  %v341 = vadd.f32 %v292, %v340
  %v342 = vpop.f32.mrf.mxu0
  %343 = vmatprep.mubr.bf16.mxu0 0
  %344 = vmatmul.mubr.bf16.gmra.mxu0 %v103
  %v345 = vpop.f32.mrf.mxu0
  %v346 = vadd.f32 %v297, %v345
  %v347 = vpop.f32.mrf.mxu0
  %v348 = vpop.f32.mrf.mxu0
  %v349 = vadd.f32 %v300, %v348
  %v350 = vpop.f32.mrf.mxu0
  %351 = vdwg.mxu0
  %v352 = vmax.f32 %v338, 0.0
  %v353 = vmax.f32 %v341, 0.0
  %v354 = vmax.f32 %v346, 0.0
  %v355 = vmax.f32 %v349, 0.0
  %v356 = vpack.c.bf16 %v353, %v352
  %v357 = vpack.c.bf16 %v355, %v354
  %v360 = vunpack.c.l.b16 %v356
  %v361 = vunpack.c.h.b16 %v356
  %v362 = vunpack.c.l.b16 %v357
  %v363 = vunpack.c.h.b16 %v357
  %v364 = vpack.c.b16 %v360, %v360
  %v365 = vpack.c.b16 %v361, %v361
  %v366 = vpack.c.b16 %v362, %v362
  %v367 = vpack.c.b16 %v363, %v363
  %372 = vst [vmem:[%s3] sm:$0xf] %v364
  %373 = vst [vmem:[%s3 + $0x4] sm:$0xf] %v365
  %374 = vst [vmem:[%s3 + $0x8] sm:$0xf] %v366
  %375 = vst [vmem:[%s3 + $0xc] sm:$0xf] %v367
  // Predicated region
  $region14: #{fcn8s_forward.7} parent=0 // pred_check
    _
  $region15: #{fcn8s_forward.7} parent=0 // pred_check_branch
    %377 = sbr.rel (0) target = $region17
  $region16: #{fcn8s_forward.7} parent=0 // pred_region
    _
  $region17: #{fcn8s_forward.7} parent=0 // pred_fallthru
    _
  // Predicated region
  $region18: #{fcn8s_forward.7} parent=0 // pred_check
    _
  $region19: #{fcn8s_forward.7} parent=0 // pred_check_branch
    %379 = sbr.rel (0) target = $region21
  $region20: #{fcn8s_forward.7} parent=0 // pred_region
    _
  $region21: #{fcn8s_forward.7} parent=0 // pred_fallthru
    _

// kernel: fcn8s_forward.8
$region0: #{fcn8s_forward.8}
  #allocation0 [shape = 'u32[]', space=smem, size = 0x4, offset = 0x4, fixed_abs, tag = 'smem constant byte address 0x4 - core index']
  #allocation1 [shape = 'u32[144,128]{1,0:T(1,128)}', space=vmem, size = 0x12000, scoped, tag = 'internal scratch']
  %s0 = inlined_call_operand.vmem [shape: bf16[8,640], index: 0, kind: input, shape index: {}]
  %s1 = inlined_call_operand.vmem [shape: bf16[640,128], index: 1, kind: input, shape index: {}]
  %s2 = inlined_call_operand.vmem [shape: f32[1,128], index: 2, kind: input, shape index: {}]
  %s3 = inlined_call_operand.vmem [shape: bf16[8,128], index: 3, kind: output, shape index: {}]
  %s4 = sld [smem:[#allocation0]]
  $region22: #{fcn8s_forward.8} parent=0
    _
  %s6 = ssub.s32 1, %s4
  %s7 = scalar_select 0, %s6, %s4
  // Predicated region
  $region2: #{fcn8s_forward.8} parent=0 // pred_check
    _
  $region3: #{fcn8s_forward.8} parent=0 // pred_check_branch
    %9 = sbr.rel (0) target = $region5
  $region4: #{fcn8s_forward.8} parent=0 // pred_region
    _
  $region5: #{fcn8s_forward.8} parent=0 // pred_fallthru
    _
  // Predicated region
  $region6: #{fcn8s_forward.8} parent=0 // pred_check
    _
  $region7: #{fcn8s_forward.8} parent=0 // pred_check_branch
    %11 = sbr.rel (0) target = $region9
  $region8: #{fcn8s_forward.8} parent=0 // pred_region
    _
  $region9: #{fcn8s_forward.8} parent=0 // pred_fallthru
    _
  // Predicated region
  $region10: #{fcn8s_forward.8} parent=0 // pred_check
    _
  $region11: #{fcn8s_forward.8} parent=0 // pred_check_branch
    %13 = sbr.rel (0) target = $region13
  $region12: #{fcn8s_forward.8} parent=0 // pred_region
    _
  $region13: #{fcn8s_forward.8} parent=0 // pred_fallthru
    _
  %v15 = vld [vmem:[%s0] sm:$0xff]
  %v16 = vld [vmem:[%s0 + $0x8] sm:$0xff]
  %v17 = vld [vmem:[%s0 + $0x10] sm:$0xf]
  %v18 = vld [vmem:[%s1] sm:$0xf]
  %v19 = vld [vmem:[%s1 + $0x4] sm:$0xf]
  %v20 = vld [vmem:[%s1 + $0x8] sm:$0xf]
  %v21 = vld [vmem:[%s1 + $0xc] sm:$0xf]
  %v22 = vld [vmem:[%s1 + $0x10] sm:$0xf]
  %v23 = vld [vmem:[%s1 + $0x14] sm:$0xf]
  %v24 = vld [vmem:[%s1 + $0x18] sm:$0xf]
  %v25 = vld [vmem:[%s1 + $0x1c] sm:$0xf]
  %v26 = vld [vmem:[%s1 + $0x20] sm:$0xf]
  %v27 = vld [vmem:[%s1 + $0x24] sm:$0xf]
  %v28 = vld [vmem:[%s1 + $0x28] sm:$0xf]
  %v29 = vld [vmem:[%s1 + $0x2c] sm:$0xf]
  %v30 = vld [vmem:[%s1 + $0x30] sm:$0xf]
  %v31 = vld [vmem:[%s1 + $0x34] sm:$0xf]
  %v32 = vld [vmem:[%s1 + $0x38] sm:$0xf]
  %v33 = vld [vmem:[%s1 + $0x3c] sm:$0xf]
  %v34 = vld [vmem:[%s1 + $0x40] sm:$0xf]
  %v35 = vld [vmem:[%s1 + $0x44] sm:$0xf]
  %v36 = vld [vmem:[%s1 + $0x48] sm:$0xf]
  %v37 = vld [vmem:[%s1 + $0x4c] sm:$0xf]
  %v38 = vld [vmem:[%s1 + $0x50] sm:$0xf]
  %v39 = vld [vmem:[%s1 + $0x54] sm:$0xf]
  %v40 = vld [vmem:[%s1 + $0x58] sm:$0xf]
  %v41 = vld [vmem:[%s1 + $0x5c] sm:$0xf]
  %v42 = vld [vmem:[%s1 + $0x60] sm:$0xf]
  %v43 = vld [vmem:[%s1 + $0x64] sm:$0xf]
  %v44 = vld [vmem:[%s1 + $0x68] sm:$0xf]
  %v45 = vld [vmem:[%s1 + $0x6c] sm:$0xf]
  %v46 = vld [vmem:[%s1 + $0x70] sm:$0xf]
  %v47 = vld [vmem:[%s1 + $0x74] sm:$0xf]
  %v48 = vld [vmem:[%s1 + $0x78] sm:$0xf]
  %v49 = vld [vmem:[%s1 + $0x7c] sm:$0xf]
  %v50 = vld [vmem:[%s1 + $0x80] sm:$0xf]
  %v51 = vld [vmem:[%s1 + $0x84] sm:$0xf]
  %v52 = vld [vmem:[%s1 + $0x88] sm:$0xf]
  %v53 = vld [vmem:[%s1 + $0x8c] sm:$0xf]
  %v54 = vld [vmem:[%s1 + $0x90] sm:$0xf]
  %v55 = vld [vmem:[%s1 + $0x94] sm:$0xf]
  %v56 = vld [vmem:[%s1 + $0x98] sm:$0xf]
  %v57 = vld [vmem:[%s1 + $0x9c] sm:$0xf]
  %v58 = vld [vmem:[%s1 + $0xa0] sm:$0xf]
  %v59 = vld [vmem:[%s1 + $0xa4] sm:$0xf]
  %v60 = vld [vmem:[%s1 + $0xa8] sm:$0xf]
  %v61 = vld [vmem:[%s1 + $0xac] sm:$0xf]
  %v62 = vld [vmem:[%s1 + $0xb0] sm:$0xf]
  %v63 = vld [vmem:[%s1 + $0xb4] sm:$0xf]
  %v64 = vld [vmem:[%s1 + $0xb8] sm:$0xf]
  %v65 = vld [vmem:[%s1 + $0xbc] sm:$0xf]
  %v66 = vld [vmem:[%s1 + $0xc0] sm:$0xf]
  %v67 = vld [vmem:[%s1 + $0xc4] sm:$0xf]
  %v68 = vld [vmem:[%s1 + $0xc8] sm:$0xf]
  %v69 = vld [vmem:[%s1 + $0xcc] sm:$0xf]
  %v70 = vld [vmem:[%s1 + $0xd0] sm:$0xf]
  %v71 = vld [vmem:[%s1 + $0xd4] sm:$0xf]
  %v72 = vld [vmem:[%s1 + $0xd8] sm:$0xf]
  %v73 = vld [vmem:[%s1 + $0xdc] sm:$0xf]
  %v74 = vld [vmem:[%s1 + $0xe0] sm:$0xf]
  %v75 = vld [vmem:[%s1 + $0xe4] sm:$0xf]
  %v76 = vld [vmem:[%s1 + $0xe8] sm:$0xf]
  %v77 = vld [vmem:[%s1 + $0xec] sm:$0xf]
  %v78 = vld [vmem:[%s1 + $0xf0] sm:$0xf]
  %v79 = vld [vmem:[%s1 + $0xf4] sm:$0xf]
  %v80 = vld [vmem:[%s1 + $0xf8] sm:$0xf]
  %v81 = vld [vmem:[%s1 + $0xfc] sm:$0xf]
  %v82 = vld [vmem:[%s1 + $0x100] sm:$0xf]
  %v83 = vld [vmem:[%s1 + $0x104] sm:$0xf]
  %v84 = vld [vmem:[%s1 + $0x108] sm:$0xf]
  %v85 = vld [vmem:[%s1 + $0x10c] sm:$0xf]
  %v86 = vld [vmem:[%s1 + $0x110] sm:$0xf]
  %v87 = vld [vmem:[%s1 + $0x114] sm:$0xf]
  %v88 = vld [vmem:[%s1 + $0x118] sm:$0xf]
  %v89 = vld [vmem:[%s1 + $0x11c] sm:$0xf]
  %v90 = vld [vmem:[%s1 + $0x120] sm:$0xf]
  %v91 = vld [vmem:[%s1 + $0x124] sm:$0xf]
  %v92 = vld [vmem:[%s1 + $0x128] sm:$0xf]
  %v93 = vld [vmem:[%s1 + $0x12c] sm:$0xf]
  %v94 = vld [vmem:[%s1 + $0x130] sm:$0xf]
  %v95 = vld [vmem:[%s1 + $0x134] sm:$0xf]
  %v96 = vld [vmem:[%s1 + $0x138] sm:$0xf]
  %v97 = vld [vmem:[%s1 + $0x13c] sm:$0xf]
  %v98 = vld [vmem:[%s2] sm:$0x1]
  %v100 = vlaneseq
  %v101 = vshrl.u32 %v100, 7
  %v102 = vsub.s32 0, %v101
  %v103 = vrot.slane %v98, %v102
  %v108 = vunpack.c.l.b16 %v15
  %v109 = vunpack.c.h.b16 %v15
  %v110 = vunpack.c.l.b16 %v16
  %v111 = vunpack.c.h.b16 %v16
  %v112 = vunpack.c.l.b16 %v17
  %v113 = vpack.c.b16 %v108, %v108
  %v114 = vpack.c.b16 %v109, %v109
  %v115 = vpack.c.b16 %v110, %v110
  %v116 = vpack.c.b16 %v111, %v111
  %v117 = vpack.c.b16 %v112, %v112
  %v203 = vunpack.c.l.b16 %v18
  %v204 = vunpack.c.l.b16 %v19
  %v205 = vunpack.c.l.b16 %v20
  %v206 = vunpack.c.l.b16 %v21
  %v207 = vunpack.c.l.b16 %v22
  %v208 = vunpack.c.l.b16 %v23
  %v209 = vunpack.c.l.b16 %v24
  %v210 = vunpack.c.l.b16 %v25
  %v211 = vunpack.c.l.b16 %v26
  %v212 = vunpack.c.l.b16 %v27
  %v213 = vunpack.c.l.b16 %v28
  %v214 = vunpack.c.l.b16 %v29
  %v215 = vunpack.c.l.b16 %v30
  %v216 = vunpack.c.l.b16 %v31
  %v217 = vunpack.c.l.b16 %v32
  %v218 = vunpack.c.l.b16 %v33
  %v219 = vunpack.c.l.b16 %v34
  %v220 = vunpack.c.l.b16 %v35
  %v221 = vunpack.c.l.b16 %v36
  %v222 = vunpack.c.l.b16 %v37
  %v223 = vunpack.c.l.b16 %v38
  %v224 = vunpack.c.l.b16 %v39
  %v225 = vunpack.c.l.b16 %v40
  %v226 = vunpack.c.l.b16 %v41
  %v227 = vunpack.c.l.b16 %v42
  %v228 = vunpack.c.l.b16 %v43
  %v229 = vunpack.c.l.b16 %v44
  %v230 = vunpack.c.l.b16 %v45
  %v231 = vunpack.c.l.b16 %v46
  %v232 = vunpack.c.l.b16 %v47
  %v233 = vunpack.c.l.b16 %v48
  %v234 = vunpack.c.l.b16 %v49
  %v235 = vunpack.c.l.b16 %v50
  %v236 = vunpack.c.l.b16 %v51
  %v237 = vunpack.c.l.b16 %v52
  %v238 = vunpack.c.l.b16 %v53
  %v239 = vunpack.c.l.b16 %v54
  %v240 = vunpack.c.l.b16 %v55
  %v241 = vunpack.c.l.b16 %v56
  %v242 = vunpack.c.l.b16 %v57
  %v243 = vunpack.c.l.b16 %v58
  %v244 = vunpack.c.l.b16 %v59
  %v245 = vunpack.c.l.b16 %v60
  %v246 = vunpack.c.l.b16 %v61
  %v247 = vunpack.c.l.b16 %v62
  %v248 = vunpack.c.l.b16 %v63
  %v249 = vunpack.c.l.b16 %v64
  %v250 = vunpack.c.l.b16 %v65
  %v251 = vunpack.c.l.b16 %v66
  %v252 = vunpack.c.l.b16 %v67
  %v253 = vunpack.c.l.b16 %v68
  %v254 = vunpack.c.l.b16 %v69
  %v255 = vunpack.c.l.b16 %v70
  %v256 = vunpack.c.l.b16 %v71
  %v257 = vunpack.c.l.b16 %v72
  %v258 = vunpack.c.l.b16 %v73
  %v259 = vunpack.c.l.b16 %v74
  %v260 = vunpack.c.l.b16 %v75
  %v261 = vunpack.c.l.b16 %v76
  %v262 = vunpack.c.l.b16 %v77
  %v263 = vunpack.c.l.b16 %v78
  %v264 = vunpack.c.l.b16 %v79
  %v265 = vunpack.c.l.b16 %v80
  %v266 = vunpack.c.l.b16 %v81
  %v267 = vunpack.c.l.b16 %v82
  %v268 = vunpack.c.l.b16 %v83
  %v269 = vunpack.c.l.b16 %v84
  %v270 = vunpack.c.l.b16 %v85
  %v271 = vunpack.c.l.b16 %v86
  %v272 = vunpack.c.l.b16 %v87
  %v273 = vunpack.c.l.b16 %v88
  %v274 = vunpack.c.l.b16 %v89
  %v275 = vunpack.c.l.b16 %v90
  %v276 = vunpack.c.l.b16 %v91
  %v277 = vunpack.c.l.b16 %v92
  %v278 = vunpack.c.l.b16 %v93
  %v279 = vunpack.c.l.b16 %v94
  %v280 = vunpack.c.l.b16 %v95
  %v281 = vunpack.c.l.b16 %v96
  %v282 = vunpack.c.l.b16 %v97
  %v283 = vpack.c.b16 %v204, %v203
  %v284 = vpack.c.b16 %v206, %v205
  %v285 = vpack.c.b16 %v208, %v207
  %v286 = vpack.c.b16 %v210, %v209
  %v287 = vpack.c.b16 %v212, %v211
  %v288 = vpack.c.b16 %v214, %v213
  %v289 = vpack.c.b16 %v216, %v215
  %v290 = vpack.c.b16 %v218, %v217
  %v291 = vpack.c.b16 %v220, %v219
  %v292 = vpack.c.b16 %v222, %v221
  %v293 = vpack.c.b16 %v224, %v223
  %v294 = vpack.c.b16 %v226, %v225
  %v295 = vpack.c.b16 %v228, %v227
  %v296 = vpack.c.b16 %v230, %v229
  %v297 = vpack.c.b16 %v232, %v231
  %v298 = vpack.c.b16 %v234, %v233
  %v299 = vpack.c.b16 %v236, %v235
  %v300 = vpack.c.b16 %v238, %v237
  %v301 = vpack.c.b16 %v240, %v239
  %v302 = vpack.c.b16 %v242, %v241
  %v303 = vpack.c.b16 %v244, %v243
  %v304 = vpack.c.b16 %v246, %v245
  %v305 = vpack.c.b16 %v248, %v247
  %v306 = vpack.c.b16 %v250, %v249
  %v307 = vpack.c.b16 %v252, %v251
  %v308 = vpack.c.b16 %v254, %v253
  %v309 = vpack.c.b16 %v256, %v255
  %v310 = vpack.c.b16 %v258, %v257
  %v311 = vpack.c.b16 %v260, %v259
  %v312 = vpack.c.b16 %v262, %v261
  %v313 = vpack.c.b16 %v264, %v263
  %v314 = vpack.c.b16 %v266, %v265
  %v315 = vpack.c.b16 %v268, %v267
  %v316 = vpack.c.b16 %v270, %v269
  %v317 = vpack.c.b16 %v272, %v271
  %v318 = vpack.c.b16 %v274, %v273
  %v319 = vpack.c.b16 %v276, %v275
  %v320 = vpack.c.b16 %v278, %v277
  %v321 = vpack.c.b16 %v280, %v279
  %v322 = vpack.c.b16 %v282, %v281
  %363 = vmatprep.subr.bf16.mxu0 0
  %364 = vmatpush1.bf16.msra.mxu0 %v290
  %365 = vmatprep.subr.bf16.mxu0 0
  %366 = vmatpush1.bf16.msra.mxu0 %v289
  %367 = vmatprep.subr.bf16.mxu0 0
  %368 = vmatpush1.bf16.msra.mxu0 %v288
  %369 = vmatprep.subr.bf16.mxu0 0
  %370 = vmatpush1.bf16.msra.mxu0 %v287
  %371 = vmatprep.subr.bf16.mxu0 0
  %372 = vmatpush1.bf16.msra.mxu0 %v286
  %373 = vmatprep.subr.bf16.mxu0 0
  %374 = vmatpush1.bf16.msra.mxu0 %v285
  %375 = vmatprep.subr.bf16.mxu0 0
  %376 = vmatpush1.bf16.msra.mxu0 %v284
  %377 = vmatprep.subr.bf16.mxu0 0
  %378 = vmatpush1.bf16.msra.mxu0 %v283
  %379 = vmatprep.subr.bf16.mxu0 0
  %380 = vmatpush2.bf16.msra.mxu0 %v298
  %381 = vmatprep.subr.bf16.mxu0 0
  %382 = vmatpush2.bf16.msra.mxu0 %v297
  %383 = vmatprep.subr.bf16.mxu0 0
  %384 = vmatpush2.bf16.msra.mxu0 %v296
  %385 = vmatprep.subr.bf16.mxu0 0
  %386 = vmatpush2.bf16.msra.mxu0 %v295
  %387 = vmatprep.subr.bf16.mxu0 0
  %388 = vmatpush2.bf16.msra.mxu0 %v294
  %389 = vmatprep.subr.bf16.mxu0 0
  %390 = vmatpush2.bf16.msra.mxu0 %v293
  %391 = vmatprep.subr.bf16.mxu0 0
  %392 = vmatpush2.bf16.msra.mxu0 %v292
  %393 = vmatprep.subr.bf16.mxu0 0
  %394 = vmatpush2.bf16.msra.mxu0 %v291
  %395 = vmatprep.mubr.bf16.mxu0 %v114
  %396 = vmatmul.mubr.bf16.gmra.mxu0 %v113
  %v397 = vpop.f32.mrf.mxu0
  %v398 = vadd.f32 %v103, %v397
  %v399 = vpop.f32.mrf.mxu0
  %v400 = vpop.f32.mrf.mxu0
  %v401 = vpop.f32.mrf.mxu0
  %402 = vdwg.mxu0
  %403 = vmatprep.subr.bf16.mxu0 0
  %404 = vmatpush1.bf16.msra.mxu0 %v306
  %405 = vmatprep.subr.bf16.mxu0 0
  %406 = vmatpush1.bf16.msra.mxu0 %v305
  %407 = vmatprep.subr.bf16.mxu0 0
  %408 = vmatpush1.bf16.msra.mxu0 %v304
  %409 = vmatprep.subr.bf16.mxu0 0
  %410 = vmatpush1.bf16.msra.mxu0 %v303
  %411 = vmatprep.subr.bf16.mxu0 0
  %412 = vmatpush1.bf16.msra.mxu0 %v302
  %413 = vmatprep.subr.bf16.mxu0 0
  %414 = vmatpush1.bf16.msra.mxu0 %v301
  %415 = vmatprep.subr.bf16.mxu0 0
  %416 = vmatpush1.bf16.msra.mxu0 %v300
  %417 = vmatprep.subr.bf16.mxu0 0
  %418 = vmatpush1.bf16.msra.mxu0 %v299
  %419 = vmatprep.subr.bf16.mxu0 0
  %420 = vmatpush2.bf16.msra.mxu0 %v314
  %421 = vmatprep.subr.bf16.mxu0 0
  %422 = vmatpush2.bf16.msra.mxu0 %v313
  %423 = vmatprep.subr.bf16.mxu0 0
  %424 = vmatpush2.bf16.msra.mxu0 %v312
  %425 = vmatprep.subr.bf16.mxu0 0
  %426 = vmatpush2.bf16.msra.mxu0 %v311
  %427 = vmatprep.subr.bf16.mxu0 0
  %428 = vmatpush2.bf16.msra.mxu0 %v310
  %429 = vmatprep.subr.bf16.mxu0 0
  %430 = vmatpush2.bf16.msra.mxu0 %v309
  %431 = vmatprep.subr.bf16.mxu0 0
  %432 = vmatpush2.bf16.msra.mxu0 %v308
  %433 = vmatprep.subr.bf16.mxu0 0
  %434 = vmatpush2.bf16.msra.mxu0 %v307
  %435 = vmatprep.mubr.bf16.mxu0 %v116
  %436 = vmatmul.mubr.bf16.gmra.mxu0 %v115
  %v437 = vpop.f32.mrf.mxu0
  %v438 = vadd.f32 %v398, %v437
  %v439 = vpop.f32.mrf.mxu0
  %v440 = vpop.f32.mrf.mxu0
  %v441 = vpop.f32.mrf.mxu0
  %442 = vdwg.mxu0
  %443 = vmatprep.subr.bf16.mxu0 0
  %444 = vmatpush1.bf16.msra.mxu0 %v322
  %445 = vmatprep.subr.bf16.mxu0 0
  %446 = vmatpush1.bf16.msra.mxu0 %v321
  %447 = vmatprep.subr.bf16.mxu0 0
  %448 = vmatpush1.bf16.msra.mxu0 %v320
  %449 = vmatprep.subr.bf16.mxu0 0
  %450 = vmatpush1.bf16.msra.mxu0 %v319
  %451 = vmatprep.subr.bf16.mxu0 0
  %452 = vmatpush1.bf16.msra.mxu0 %v318
  %453 = vmatprep.subr.bf16.mxu0 0
  %454 = vmatpush1.bf16.msra.mxu0 %v317
  %455 = vmatprep.subr.bf16.mxu0 0
  %456 = vmatpush1.bf16.msra.mxu0 %v316
  %457 = vmatprep.subr.bf16.mxu0 0
  %458 = vmatpush1.bf16.msra.mxu0 %v315
  %459 = vmatprep.subr.bf16.mxu0 0
  %460 = vmatpush2.bf16.msra.mxu0 0
  %461 = vmatprep.subr.bf16.mxu0 0
  %462 = vmatpush2.bf16.msra.mxu0 0
  %463 = vmatprep.subr.bf16.mxu0 0
  %464 = vmatpush2.bf16.msra.mxu0 0
  %465 = vmatprep.subr.bf16.mxu0 0
  %466 = vmatpush2.bf16.msra.mxu0 0
  %467 = vmatprep.subr.bf16.mxu0 0
  %468 = vmatpush2.bf16.msra.mxu0 0
  %469 = vmatprep.subr.bf16.mxu0 0
  %470 = vmatpush2.bf16.msra.mxu0 0
  %471 = vmatprep.subr.bf16.mxu0 0
  %472 = vmatpush2.bf16.msra.mxu0 0
  %473 = vmatprep.subr.bf16.mxu0 0
  %474 = vmatpush2.bf16.msra.mxu0 0
  %475 = vmatprep.mubr.bf16.mxu0 0
  %476 = vmatmul.mubr.bf16.gmra.mxu0 %v117
  %v477 = vpop.f32.mrf.mxu0
  %v478 = vadd.f32 %v438, %v477
  %v479 = vpop.f32.mrf.mxu0
  %v480 = vpop.f32.mrf.mxu0
  %v481 = vpop.f32.mrf.mxu0
  %482 = vdwg.mxu0
  %v483 = vmax.f32 %v478, 0.0
  %v484 = vpack.c.bf16 %v483, %v483
  %485 = vst [vmem:[%s3] sm:$0xf] %v484
  // Predicated region
  $region14: #{fcn8s_forward.8} parent=0 // pred_check
    _
  $region15: #{fcn8s_forward.8} parent=0 // pred_check_branch
    %487 = sbr.rel (0) target = $region17
  $region16: #{fcn8s_forward.8} parent=0 // pred_region
    _
  $region17: #{fcn8s_forward.8} parent=0 // pred_fallthru
    _
  // Predicated region
  $region18: #{fcn8s_forward.8} parent=0 // pred_check
    _
  $region19: #{fcn8s_forward.8} parent=0 // pred_check_branch
    %489 = sbr.rel (0) target = $region21
  $region20: #{fcn8s_forward.8} parent=0 // pred_region
    _
  $region21: #{fcn8s_forward.8} parent=0 // pred_fallthru
    _

// kernel: fcn8s_forward.9
$region0: #{fcn8s_forward.9}
  #allocation0 [shape = 'u32[]', space=smem, size = 0x4, offset = 0x4, fixed_abs, tag = 'smem constant byte address 0x4 - core index']
  #allocation1 [shape = 'u32[144,128]{1,0:T(1,128)}', space=vmem, size = 0x12000, scoped, tag = 'internal scratch']
  %s0 = inlined_call_operand.vmem [shape: bf16[32,1152], index: 0, kind: input, shape index: {}]
  %s1 = inlined_call_operand.vmem [shape: bf16[1152,128], index: 1, kind: input, shape index: {}]
  %s2 = inlined_call_operand.vmem [shape: f32[1,128], index: 2, kind: input, shape index: {}]
  %s3 = inlined_call_operand.vmem [shape: bf16[32,128], index: 3, kind: input, shape index: {}]
  %s4 = inlined_call_operand.vmem [shape: f32[1,128], index: 4, kind: input, shape index: {}]
  %s5 = inlined_call_operand.vmem [shape: f32[1,128], index: 5, kind: input, shape index: {}]
  %s6 = inlined_call_operand.vmem [shape: bf16[32,128], index: 6, kind: output, shape index: {}]
  %s7 = sld [smem:[#allocation0]]
  $region34: #{fcn8s_forward.9} parent=0
    _
  %s9 = ssub.s32 1, %s7
  %s10 = scalar_select 0, %s9, %s7
  // Predicated region
  $region2: #{fcn8s_forward.9} parent=0 // pred_check
    _
  $region3: #{fcn8s_forward.9} parent=0 // pred_check_branch
    %12 = sbr.rel (0) target = $region5
  $region4: #{fcn8s_forward.9} parent=0 // pred_region
    _
  $region5: #{fcn8s_forward.9} parent=0 // pred_fallthru
    _
  // Predicated region
  $region6: #{fcn8s_forward.9} parent=0 // pred_check
    _
  $region7: #{fcn8s_forward.9} parent=0 // pred_check_branch
    %14 = sbr.rel (0) target = $region9
  $region8: #{fcn8s_forward.9} parent=0 // pred_region
    _
  $region9: #{fcn8s_forward.9} parent=0 // pred_fallthru
    _
  // Predicated region
  $region10: #{fcn8s_forward.9} parent=0 // pred_check
    _
  $region11: #{fcn8s_forward.9} parent=0 // pred_check_branch
    %16 = sbr.rel (0) target = $region13
  $region12: #{fcn8s_forward.9} parent=0 // pred_region
    _
  $region13: #{fcn8s_forward.9} parent=0 // pred_fallthru
    _
  // Predicated region
  $region14: #{fcn8s_forward.9} parent=0 // pred_check
    _
  $region15: #{fcn8s_forward.9} parent=0 // pred_check_branch
    %18 = sbr.rel (0) target = $region17
  $region16: #{fcn8s_forward.9} parent=0 // pred_region
    _
  $region17: #{fcn8s_forward.9} parent=0 // pred_fallthru
    _
  // Predicated region
  $region18: #{fcn8s_forward.9} parent=0 // pred_check
    _
  $region19: #{fcn8s_forward.9} parent=0 // pred_check_branch
    %20 = sbr.rel (0) target = $region21
  $region20: #{fcn8s_forward.9} parent=0 // pred_region
    _
  $region21: #{fcn8s_forward.9} parent=0 // pred_fallthru
    _
  // Predicated region
  $region22: #{fcn8s_forward.9} parent=0 // pred_check
    _
  $region23: #{fcn8s_forward.9} parent=0 // pred_check_branch
    %22 = sbr.rel (0) target = $region25
  $region24: #{fcn8s_forward.9} parent=0 // pred_region
    _
  $region25: #{fcn8s_forward.9} parent=0 // pred_fallthru
    _
  %v24 = vld [vmem:[%s0] sm:$0xff]
  %v25 = vld [vmem:[%s0 + $0x8] sm:$0xff]
  %v26 = vld [vmem:[%s0 + $0x10] sm:$0xff]
  %v27 = vld [vmem:[%s0 + $0x18] sm:$0xff]
  %v28 = vld [vmem:[%s0 + $0x20] sm:$0xf]
  %v29 = vld [vmem:[%s0 + $0x24] sm:$0xff]
  %v30 = vld [vmem:[%s0 + $0x2c] sm:$0xff]
  %v31 = vld [vmem:[%s0 + $0x34] sm:$0xff]
  %v32 = vld [vmem:[%s0 + $0x3c] sm:$0xff]
  %v33 = vld [vmem:[%s0 + $0x44] sm:$0xf]
  %v34 = vld [vmem:[%s0 + $0x48] sm:$0xff]
  %v35 = vld [vmem:[%s0 + $0x50] sm:$0xff]
  %v36 = vld [vmem:[%s0 + $0x58] sm:$0xff]
  %v37 = vld [vmem:[%s0 + $0x60] sm:$0xff]
  %v38 = vld [vmem:[%s0 + $0x68] sm:$0xf]
  %v39 = vld [vmem:[%s0 + $0x6c] sm:$0xff]
  %v40 = vld [vmem:[%s0 + $0x74] sm:$0xff]
  %v41 = vld [vmem:[%s0 + $0x7c] sm:$0xff]
  %v42 = vld [vmem:[%s0 + $0x84] sm:$0xff]
  %v43 = vld [vmem:[%s0 + $0x8c] sm:$0xf]
  %v44 = vld [vmem:[%s1] sm:$0xf]
  %v45 = vld [vmem:[%s1 + $0x4] sm:$0xf]
  %v46 = vld [vmem:[%s1 + $0x8] sm:$0xf]
  %v47 = vld [vmem:[%s1 + $0xc] sm:$0xf]
  %v48 = vld [vmem:[%s1 + $0x10] sm:$0xf]
  %v49 = vld [vmem:[%s1 + $0x14] sm:$0xf]
  %v50 = vld [vmem:[%s1 + $0x18] sm:$0xf]
  %v51 = vld [vmem:[%s1 + $0x1c] sm:$0xf]
  %v52 = vld [vmem:[%s1 + $0x20] sm:$0xf]
  %v53 = vld [vmem:[%s1 + $0x24] sm:$0xf]
  %v54 = vld [vmem:[%s1 + $0x28] sm:$0xf]
  %v55 = vld [vmem:[%s1 + $0x2c] sm:$0xf]
  %v56 = vld [vmem:[%s1 + $0x30] sm:$0xf]
  %v57 = vld [vmem:[%s1 + $0x34] sm:$0xf]
  %v58 = vld [vmem:[%s1 + $0x38] sm:$0xf]
  %v59 = vld [vmem:[%s1 + $0x3c] sm:$0xf]
  %v60 = vld [vmem:[%s1 + $0x40] sm:$0xf]
  %v61 = vld [vmem:[%s1 + $0x44] sm:$0xf]
  %v62 = vld [vmem:[%s1 + $0x48] sm:$0xf]
  %v63 = vld [vmem:[%s1 + $0x4c] sm:$0xf]
  %v64 = vld [vmem:[%s1 + $0x50] sm:$0xf]
  %v65 = vld [vmem:[%s1 + $0x54] sm:$0xf]
  %v66 = vld [vmem:[%s1 + $0x58] sm:$0xf]
  %v67 = vld [vmem:[%s1 + $0x5c] sm:$0xf]
  %v68 = vld [vmem:[%s1 + $0x60] sm:$0xf]
  %v69 = vld [vmem:[%s1 + $0x64] sm:$0xf]
  %v70 = vld [vmem:[%s1 + $0x68] sm:$0xf]
  %v71 = vld [vmem:[%s1 + $0x6c] sm:$0xf]
  %v72 = vld [vmem:[%s1 + $0x70] sm:$0xf]
  %v73 = vld [vmem:[%s1 + $0x74] sm:$0xf]
  %v74 = vld [vmem:[%s1 + $0x78] sm:$0xf]
  %v75 = vld [vmem:[%s1 + $0x7c] sm:$0xf]
  %v76 = vld [vmem:[%s1 + $0x80] sm:$0xf]
  %v77 = vld [vmem:[%s1 + $0x84] sm:$0xf]
  %v78 = vld [vmem:[%s1 + $0x88] sm:$0xf]
  %v79 = vld [vmem:[%s1 + $0x8c] sm:$0xf]
  %v80 = vld [vmem:[%s1 + $0x90] sm:$0xf]
  %v81 = vld [vmem:[%s1 + $0x94] sm:$0xf]
  %v82 = vld [vmem:[%s1 + $0x98] sm:$0xf]
  %v83 = vld [vmem:[%s1 + $0x9c] sm:$0xf]
  %v84 = vld [vmem:[%s1 + $0xa0] sm:$0xf]
  %v85 = vld [vmem:[%s1 + $0xa4] sm:$0xf]
  %v86 = vld [vmem:[%s1 + $0xa8] sm:$0xf]
  %v87 = vld [vmem:[%s1 + $0xac] sm:$0xf]
  %v88 = vld [vmem:[%s1 + $0xb0] sm:$0xf]
  %v89 = vld [vmem:[%s1 + $0xb4] sm:$0xf]
  %v90 = vld [vmem:[%s1 + $0xb8] sm:$0xf]
  %v91 = vld [vmem:[%s1 + $0xbc] sm:$0xf]
  %v92 = vld [vmem:[%s1 + $0xc0] sm:$0xf]
  %v93 = vld [vmem:[%s1 + $0xc4] sm:$0xf]
  %v94 = vld [vmem:[%s1 + $0xc8] sm:$0xf]
  %v95 = vld [vmem:[%s1 + $0xcc] sm:$0xf]
  %v96 = vld [vmem:[%s1 + $0xd0] sm:$0xf]
  %v97 = vld [vmem:[%s1 + $0xd4] sm:$0xf]
  %v98 = vld [vmem:[%s1 + $0xd8] sm:$0xf]
  %v99 = vld [vmem:[%s1 + $0xdc] sm:$0xf]
  %v100 = vld [vmem:[%s1 + $0xe0] sm:$0xf]
  %v101 = vld [vmem:[%s1 + $0xe4] sm:$0xf]
  %v102 = vld [vmem:[%s1 + $0xe8] sm:$0xf]
  %v103 = vld [vmem:[%s1 + $0xec] sm:$0xf]
  %v104 = vld [vmem:[%s1 + $0xf0] sm:$0xf]
  %v105 = vld [vmem:[%s1 + $0xf4] sm:$0xf]
  %v106 = vld [vmem:[%s1 + $0xf8] sm:$0xf]
  %v107 = vld [vmem:[%s1 + $0xfc] sm:$0xf]
  %v108 = vld [vmem:[%s1 + $0x100] sm:$0xf]
  %v109 = vld [vmem:[%s1 + $0x104] sm:$0xf]
  %v110 = vld [vmem:[%s1 + $0x108] sm:$0xf]
  %v111 = vld [vmem:[%s1 + $0x10c] sm:$0xf]
  %v112 = vld [vmem:[%s1 + $0x110] sm:$0xf]
  %v113 = vld [vmem:[%s1 + $0x114] sm:$0xf]
  %v114 = vld [vmem:[%s1 + $0x118] sm:$0xf]
  %v115 = vld [vmem:[%s1 + $0x11c] sm:$0xf]
  %v116 = vld [vmem:[%s1 + $0x120] sm:$0xf]
  %v117 = vld [vmem:[%s1 + $0x124] sm:$0xf]
  %v118 = vld [vmem:[%s1 + $0x128] sm:$0xf]
  %v119 = vld [vmem:[%s1 + $0x12c] sm:$0xf]
  %v120 = vld [vmem:[%s1 + $0x130] sm:$0xf]
  %v121 = vld [vmem:[%s1 + $0x134] sm:$0xf]
  %v122 = vld [vmem:[%s1 + $0x138] sm:$0xf]
  %v123 = vld [vmem:[%s1 + $0x13c] sm:$0xf]
  %v124 = vld [vmem:[%s1 + $0x140] sm:$0xf]
  %v125 = vld [vmem:[%s1 + $0x144] sm:$0xf]
  %v126 = vld [vmem:[%s1 + $0x148] sm:$0xf]
  %v127 = vld [vmem:[%s1 + $0x14c] sm:$0xf]
  %v128 = vld [vmem:[%s1 + $0x150] sm:$0xf]
  %v129 = vld [vmem:[%s1 + $0x154] sm:$0xf]
  %v130 = vld [vmem:[%s1 + $0x158] sm:$0xf]
  %v131 = vld [vmem:[%s1 + $0x15c] sm:$0xf]
  %v132 = vld [vmem:[%s1 + $0x160] sm:$0xf]
  %v133 = vld [vmem:[%s1 + $0x164] sm:$0xf]
  %v134 = vld [vmem:[%s1 + $0x168] sm:$0xf]
  %v135 = vld [vmem:[%s1 + $0x16c] sm:$0xf]
  %v136 = vld [vmem:[%s1 + $0x170] sm:$0xf]
  %v137 = vld [vmem:[%s1 + $0x174] sm:$0xf]
  %v138 = vld [vmem:[%s1 + $0x178] sm:$0xf]
  %v139 = vld [vmem:[%s1 + $0x17c] sm:$0xf]
  %v140 = vld [vmem:[%s1 + $0x180] sm:$0xf]
  %v141 = vld [vmem:[%s1 + $0x184] sm:$0xf]
  %v142 = vld [vmem:[%s1 + $0x188] sm:$0xf]
  %v143 = vld [vmem:[%s1 + $0x18c] sm:$0xf]
  %v144 = vld [vmem:[%s1 + $0x190] sm:$0xf]
  %v145 = vld [vmem:[%s1 + $0x194] sm:$0xf]
  %v146 = vld [vmem:[%s1 + $0x198] sm:$0xf]
  %v147 = vld [vmem:[%s1 + $0x19c] sm:$0xf]
  %v148 = vld [vmem:[%s1 + $0x1a0] sm:$0xf]
  %v149 = vld [vmem:[%s1 + $0x1a4] sm:$0xf]
  %v150 = vld [vmem:[%s1 + $0x1a8] sm:$0xf]
  %v151 = vld [vmem:[%s1 + $0x1ac] sm:$0xf]
  %v152 = vld [vmem:[%s1 + $0x1b0] sm:$0xf]
  %v153 = vld [vmem:[%s1 + $0x1b4] sm:$0xf]
  %v154 = vld [vmem:[%s1 + $0x1b8] sm:$0xf]
  %v155 = vld [vmem:[%s1 + $0x1bc] sm:$0xf]
  %v156 = vld [vmem:[%s1 + $0x1c0] sm:$0xf]
  %v157 = vld [vmem:[%s1 + $0x1c4] sm:$0xf]
  %v158 = vld [vmem:[%s1 + $0x1c8] sm:$0xf]
  %v159 = vld [vmem:[%s1 + $0x1cc] sm:$0xf]
  %v160 = vld [vmem:[%s1 + $0x1d0] sm:$0xf]
  %v161 = vld [vmem:[%s1 + $0x1d4] sm:$0xf]
  %v162 = vld [vmem:[%s1 + $0x1d8] sm:$0xf]
  %v163 = vld [vmem:[%s1 + $0x1dc] sm:$0xf]
  %v164 = vld [vmem:[%s1 + $0x1e0] sm:$0xf]
  %v165 = vld [vmem:[%s1 + $0x1e4] sm:$0xf]
  %v166 = vld [vmem:[%s1 + $0x1e8] sm:$0xf]
  %v167 = vld [vmem:[%s1 + $0x1ec] sm:$0xf]
  %v168 = vld [vmem:[%s1 + $0x1f0] sm:$0xf]
  %v169 = vld [vmem:[%s1 + $0x1f4] sm:$0xf]
  %v170 = vld [vmem:[%s1 + $0x1f8] sm:$0xf]
  %v171 = vld [vmem:[%s1 + $0x1fc] sm:$0xf]
  %v172 = vld [vmem:[%s1 + $0x200] sm:$0xf]
  %v173 = vld [vmem:[%s1 + $0x204] sm:$0xf]
  %v174 = vld [vmem:[%s1 + $0x208] sm:$0xf]
  %v175 = vld [vmem:[%s1 + $0x20c] sm:$0xf]
  %v176 = vld [vmem:[%s1 + $0x210] sm:$0xf]
  %v177 = vld [vmem:[%s1 + $0x214] sm:$0xf]
  %v178 = vld [vmem:[%s1 + $0x218] sm:$0xf]
  %v179 = vld [vmem:[%s1 + $0x21c] sm:$0xf]
  %v180 = vld [vmem:[%s1 + $0x220] sm:$0xf]
  %v181 = vld [vmem:[%s1 + $0x224] sm:$0xf]
  %v182 = vld [vmem:[%s1 + $0x228] sm:$0xf]
  %v183 = vld [vmem:[%s1 + $0x22c] sm:$0xf]
  %v184 = vld [vmem:[%s1 + $0x230] sm:$0xf]
  %v185 = vld [vmem:[%s1 + $0x234] sm:$0xf]
  %v186 = vld [vmem:[%s1 + $0x238] sm:$0xf]
  %v187 = vld [vmem:[%s1 + $0x23c] sm:$0xf]
  %v188 = vld [vmem:[%s2] sm:$0x1]
  %v190 = vlaneseq
  %v191 = vshrl.u32 %v190, 7
  %v192 = vsub.s32 0, %v191
  %v193 = vrot.slane %v188, %v192
  %v215 = vunpack.c.l.b16 %v24
  %v216 = vunpack.c.h.b16 %v24
  %v217 = vunpack.c.l.b16 %v25
  %v218 = vunpack.c.h.b16 %v25
  %v219 = vunpack.c.l.b16 %v26
  %v220 = vunpack.c.h.b16 %v26
  %v221 = vunpack.c.l.b16 %v27
  %v222 = vunpack.c.h.b16 %v27
  %v223 = vunpack.c.l.b16 %v28
  %v224 = vunpack.c.l.b16 %v29
  %v225 = vunpack.c.h.b16 %v29
  %v226 = vunpack.c.l.b16 %v30
  %v227 = vunpack.c.h.b16 %v30
  %v228 = vunpack.c.l.b16 %v31
  %v229 = vunpack.c.h.b16 %v31
  %v230 = vunpack.c.l.b16 %v32
  %v231 = vunpack.c.h.b16 %v32
  %v232 = vunpack.c.l.b16 %v33
  %v233 = vunpack.c.l.b16 %v34
  %v234 = vunpack.c.h.b16 %v34
  %v235 = vunpack.c.l.b16 %v35
  %v236 = vunpack.c.h.b16 %v35
  %v237 = vunpack.c.l.b16 %v36
  %v238 = vunpack.c.h.b16 %v36
  %v239 = vunpack.c.l.b16 %v37
  %v240 = vunpack.c.h.b16 %v37
  %v241 = vunpack.c.l.b16 %v38
  %v242 = vunpack.c.l.b16 %v39
  %v243 = vunpack.c.h.b16 %v39
  %v244 = vunpack.c.l.b16 %v40
  %v245 = vunpack.c.h.b16 %v40
  %v246 = vunpack.c.l.b16 %v41
  %v247 = vunpack.c.h.b16 %v41
  %v248 = vunpack.c.l.b16 %v42
  %v249 = vunpack.c.h.b16 %v42
  %v250 = vunpack.c.l.b16 %v43
  %v251 = vpack.c.b16 %v224, %v215
  %v252 = vpack.c.b16 %v225, %v216
  %v253 = vpack.c.b16 %v226, %v217
  %v254 = vpack.c.b16 %v227, %v218
  %v255 = vpack.c.b16 %v228, %v219
  %v256 = vpack.c.b16 %v229, %v220
  %v257 = vpack.c.b16 %v230, %v221
  %v258 = vpack.c.b16 %v231, %v222
  %v259 = vpack.c.b16 %v232, %v223
  %v260 = vpack.c.b16 %v242, %v233
  %v261 = vpack.c.b16 %v243, %v234
  %v262 = vpack.c.b16 %v244, %v235
  %v263 = vpack.c.b16 %v245, %v236
  %v264 = vpack.c.b16 %v246, %v237
  %v265 = vpack.c.b16 %v247, %v238
  %v266 = vpack.c.b16 %v248, %v239
  %v267 = vpack.c.b16 %v249, %v240
  %v268 = vpack.c.b16 %v250, %v241
  %v431 = vunpack.c.l.b16 %v44
  %v432 = vunpack.c.l.b16 %v45
  %v433 = vunpack.c.l.b16 %v46
  %v434 = vunpack.c.l.b16 %v47
  %v435 = vunpack.c.l.b16 %v48
  %v436 = vunpack.c.l.b16 %v49
  %v437 = vunpack.c.l.b16 %v50
  %v438 = vunpack.c.l.b16 %v51
  %v439 = vunpack.c.l.b16 %v52
  %v440 = vunpack.c.l.b16 %v53
  %v441 = vunpack.c.l.b16 %v54
  %v442 = vunpack.c.l.b16 %v55
  %v443 = vunpack.c.l.b16 %v56
  %v444 = vunpack.c.l.b16 %v57
  %v445 = vunpack.c.l.b16 %v58
  %v446 = vunpack.c.l.b16 %v59
  %v447 = vunpack.c.l.b16 %v60
  %v448 = vunpack.c.l.b16 %v61
  %v449 = vunpack.c.l.b16 %v62
  %v450 = vunpack.c.l.b16 %v63
  %v451 = vunpack.c.l.b16 %v64
  %v452 = vunpack.c.l.b16 %v65
  %v453 = vunpack.c.l.b16 %v66
  %v454 = vunpack.c.l.b16 %v67
  %v455 = vunpack.c.l.b16 %v68
  %v456 = vunpack.c.l.b16 %v69
  %v457 = vunpack.c.l.b16 %v70
  %v458 = vunpack.c.l.b16 %v71
  %v459 = vunpack.c.l.b16 %v72
  %v460 = vunpack.c.l.b16 %v73
  %v461 = vunpack.c.l.b16 %v74
  %v462 = vunpack.c.l.b16 %v75
  %v463 = vunpack.c.l.b16 %v76
  %v464 = vunpack.c.l.b16 %v77
  %v465 = vunpack.c.l.b16 %v78
  %v466 = vunpack.c.l.b16 %v79
  %v467 = vunpack.c.l.b16 %v80
  %v468 = vunpack.c.l.b16 %v81
  %v469 = vunpack.c.l.b16 %v82
  %v470 = vunpack.c.l.b16 %v83
  %v471 = vunpack.c.l.b16 %v84
  %v472 = vunpack.c.l.b16 %v85
  %v473 = vunpack.c.l.b16 %v86
  %v474 = vunpack.c.l.b16 %v87
  %v475 = vunpack.c.l.b16 %v88
  %v476 = vunpack.c.l.b16 %v89
  %v477 = vunpack.c.l.b16 %v90
  %v478 = vunpack.c.l.b16 %v91
  %v479 = vunpack.c.l.b16 %v92
  %v480 = vunpack.c.l.b16 %v93
  %v481 = vunpack.c.l.b16 %v94
  %v482 = vunpack.c.l.b16 %v95
  %v483 = vunpack.c.l.b16 %v96
  %v484 = vunpack.c.l.b16 %v97
  %v485 = vunpack.c.l.b16 %v98
  %v486 = vunpack.c.l.b16 %v99
  %v487 = vunpack.c.l.b16 %v100
  %v488 = vunpack.c.l.b16 %v101
  %v489 = vunpack.c.l.b16 %v102
  %v490 = vunpack.c.l.b16 %v103
  %v491 = vunpack.c.l.b16 %v104
  %v492 = vunpack.c.l.b16 %v105
  %v493 = vunpack.c.l.b16 %v106
  %v494 = vunpack.c.l.b16 %v107
  %v495 = vunpack.c.l.b16 %v108
  %v496 = vunpack.c.l.b16 %v109
  %v497 = vunpack.c.l.b16 %v110
  %v498 = vunpack.c.l.b16 %v111
  %v499 = vunpack.c.l.b16 %v112
  %v500 = vunpack.c.l.b16 %v113
  %v501 = vunpack.c.l.b16 %v114
  %v502 = vunpack.c.l.b16 %v115
  %v503 = vunpack.c.l.b16 %v116
  %v504 = vunpack.c.l.b16 %v117
  %v505 = vunpack.c.l.b16 %v118
  %v506 = vunpack.c.l.b16 %v119
  %v507 = vunpack.c.l.b16 %v120
  %v508 = vunpack.c.l.b16 %v121
  %v509 = vunpack.c.l.b16 %v122
  %v510 = vunpack.c.l.b16 %v123
  %v511 = vunpack.c.l.b16 %v124
  %v512 = vunpack.c.l.b16 %v125
  %v513 = vunpack.c.l.b16 %v126
  %v514 = vunpack.c.l.b16 %v127
  %v515 = vunpack.c.l.b16 %v128
  %v516 = vunpack.c.l.b16 %v129
  %v517 = vunpack.c.l.b16 %v130
  %v518 = vunpack.c.l.b16 %v131
  %v519 = vunpack.c.l.b16 %v132
  %v520 = vunpack.c.l.b16 %v133
  %v521 = vunpack.c.l.b16 %v134
  %v522 = vunpack.c.l.b16 %v135
  %v523 = vunpack.c.l.b16 %v136
  %v524 = vunpack.c.l.b16 %v137
  %v525 = vunpack.c.l.b16 %v138
  %v526 = vunpack.c.l.b16 %v139
  %v527 = vunpack.c.l.b16 %v140
  %v528 = vunpack.c.l.b16 %v141
  %v529 = vunpack.c.l.b16 %v142
  %v530 = vunpack.c.l.b16 %v143
  %v531 = vunpack.c.l.b16 %v144
  %v532 = vunpack.c.l.b16 %v145
  %v533 = vunpack.c.l.b16 %v146
  %v534 = vunpack.c.l.b16 %v147
  %v535 = vunpack.c.l.b16 %v148
  %v536 = vunpack.c.l.b16 %v149
  %v537 = vunpack.c.l.b16 %v150
  %v538 = vunpack.c.l.b16 %v151
  %v539 = vunpack.c.l.b16 %v152
  %v540 = vunpack.c.l.b16 %v153
  %v541 = vunpack.c.l.b16 %v154
  %v542 = vunpack.c.l.b16 %v155
  %v543 = vunpack.c.l.b16 %v156
  %v544 = vunpack.c.l.b16 %v157
  %v545 = vunpack.c.l.b16 %v158
  %v546 = vunpack.c.l.b16 %v159
  %v547 = vunpack.c.l.b16 %v160
  %v548 = vunpack.c.l.b16 %v161
  %v549 = vunpack.c.l.b16 %v162
  %v550 = vunpack.c.l.b16 %v163
  %v551 = vunpack.c.l.b16 %v164
  %v552 = vunpack.c.l.b16 %v165
  %v553 = vunpack.c.l.b16 %v166
  %v554 = vunpack.c.l.b16 %v167
  %v555 = vunpack.c.l.b16 %v168
  %v556 = vunpack.c.l.b16 %v169
  %v557 = vunpack.c.l.b16 %v170
  %v558 = vunpack.c.l.b16 %v171
  %v559 = vunpack.c.l.b16 %v172
  %v560 = vunpack.c.l.b16 %v173
  %v561 = vunpack.c.l.b16 %v174
  %v562 = vunpack.c.l.b16 %v175
  %v563 = vunpack.c.l.b16 %v176
  %v564 = vunpack.c.l.b16 %v177
  %v565 = vunpack.c.l.b16 %v178
  %v566 = vunpack.c.l.b16 %v179
  %v567 = vunpack.c.l.b16 %v180
  %v568 = vunpack.c.l.b16 %v181
  %v569 = vunpack.c.l.b16 %v182
  %v570 = vunpack.c.l.b16 %v183
  %v571 = vunpack.c.l.b16 %v184
  %v572 = vunpack.c.l.b16 %v185
  %v573 = vunpack.c.l.b16 %v186
  %v574 = vunpack.c.l.b16 %v187
  %v575 = vpack.c.b16 %v432, %v431
  %v576 = vpack.c.b16 %v434, %v433
  %v577 = vpack.c.b16 %v436, %v435
  %v578 = vpack.c.b16 %v438, %v437
  %v579 = vpack.c.b16 %v440, %v439
  %v580 = vpack.c.b16 %v442, %v441
  %v581 = vpack.c.b16 %v444, %v443
  %v582 = vpack.c.b16 %v446, %v445
  %v583 = vpack.c.b16 %v448, %v447
  %v584 = vpack.c.b16 %v450, %v449
  %v585 = vpack.c.b16 %v452, %v451
  %v586 = vpack.c.b16 %v454, %v453
  %v587 = vpack.c.b16 %v456, %v455
  %v588 = vpack.c.b16 %v458, %v457
  %v589 = vpack.c.b16 %v460, %v459
  %v590 = vpack.c.b16 %v462, %v461
  %v591 = vpack.c.b16 %v464, %v463
  %v592 = vpack.c.b16 %v466, %v465
  %v593 = vpack.c.b16 %v468, %v467
  %v594 = vpack.c.b16 %v470, %v469
  %v595 = vpack.c.b16 %v472, %v471
  %v596 = vpack.c.b16 %v474, %v473
  %v597 = vpack.c.b16 %v476, %v475
  %v598 = vpack.c.b16 %v478, %v477
  %v599 = vpack.c.b16 %v480, %v479
  %v600 = vpack.c.b16 %v482, %v481
  %v601 = vpack.c.b16 %v484, %v483
  %v602 = vpack.c.b16 %v486, %v485
  %v603 = vpack.c.b16 %v488, %v487
  %v604 = vpack.c.b16 %v490, %v489
  %v605 = vpack.c.b16 %v492, %v491
  %v606 = vpack.c.b16 %v494, %v493
  %v607 = vpack.c.b16 %v496, %v495
  %v608 = vpack.c.b16 %v498, %v497
  %v609 = vpack.c.b16 %v500, %v499
  %v610 = vpack.c.b16 %v502, %v501
  %v611 = vpack.c.b16 %v504, %v503
  %v612 = vpack.c.b16 %v506, %v505
  %v613 = vpack.c.b16 %v508, %v507
  %v614 = vpack.c.b16 %v510, %v509
  %v615 = vpack.c.b16 %v512, %v511
  %v616 = vpack.c.b16 %v514, %v513
  %v617 = vpack.c.b16 %v516, %v515
  %v618 = vpack.c.b16 %v518, %v517
  %v619 = vpack.c.b16 %v520, %v519
  %v620 = vpack.c.b16 %v522, %v521
  %v621 = vpack.c.b16 %v524, %v523
  %v622 = vpack.c.b16 %v526, %v525
  %v623 = vpack.c.b16 %v528, %v527
  %v624 = vpack.c.b16 %v530, %v529
  %v625 = vpack.c.b16 %v532, %v531
  %v626 = vpack.c.b16 %v534, %v533
  %v627 = vpack.c.b16 %v536, %v535
  %v628 = vpack.c.b16 %v538, %v537
  %v629 = vpack.c.b16 %v540, %v539
  %v630 = vpack.c.b16 %v542, %v541
  %v631 = vpack.c.b16 %v544, %v543
  %v632 = vpack.c.b16 %v546, %v545
  %v633 = vpack.c.b16 %v548, %v547
  %v634 = vpack.c.b16 %v550, %v549
  %v635 = vpack.c.b16 %v552, %v551
  %v636 = vpack.c.b16 %v554, %v553
  %v637 = vpack.c.b16 %v556, %v555
  %v638 = vpack.c.b16 %v558, %v557
  %v639 = vpack.c.b16 %v560, %v559
  %v640 = vpack.c.b16 %v562, %v561
  %v641 = vpack.c.b16 %v564, %v563
  %v642 = vpack.c.b16 %v566, %v565
  %v643 = vpack.c.b16 %v568, %v567
  %v644 = vpack.c.b16 %v570, %v569
  %v645 = vpack.c.b16 %v572, %v571
  %v646 = vpack.c.b16 %v574, %v573
  %719 = vmatprep.subr.bf16.mxu0 0
  %720 = vmatpush1.bf16.msra.mxu0 %v582
  %721 = vmatprep.subr.bf16.mxu0 0
  %722 = vmatpush1.bf16.msra.mxu0 %v581
  %723 = vmatprep.subr.bf16.mxu0 0
  %724 = vmatpush1.bf16.msra.mxu0 %v580
  %725 = vmatprep.subr.bf16.mxu0 0
  %726 = vmatpush1.bf16.msra.mxu0 %v579
  %727 = vmatprep.subr.bf16.mxu0 0
  %728 = vmatpush1.bf16.msra.mxu0 %v578
  %729 = vmatprep.subr.bf16.mxu0 0
  %730 = vmatpush1.bf16.msra.mxu0 %v577
  %731 = vmatprep.subr.bf16.mxu0 0
  %732 = vmatpush1.bf16.msra.mxu0 %v576
  %733 = vmatprep.subr.bf16.mxu0 0
  %734 = vmatpush1.bf16.msra.mxu0 %v575
  %735 = vmatprep.subr.bf16.mxu0 0
  %736 = vmatpush2.bf16.msra.mxu0 %v590
  %737 = vmatprep.subr.bf16.mxu0 0
  %738 = vmatpush2.bf16.msra.mxu0 %v589
  %739 = vmatprep.subr.bf16.mxu0 0
  %740 = vmatpush2.bf16.msra.mxu0 %v588
  %741 = vmatprep.subr.bf16.mxu0 0
  %742 = vmatpush2.bf16.msra.mxu0 %v587
  %743 = vmatprep.subr.bf16.mxu0 0
  %744 = vmatpush2.bf16.msra.mxu0 %v586
  %745 = vmatprep.subr.bf16.mxu0 0
  %746 = vmatpush2.bf16.msra.mxu0 %v585
  %747 = vmatprep.subr.bf16.mxu0 0
  %748 = vmatpush2.bf16.msra.mxu0 %v584
  %749 = vmatprep.subr.bf16.mxu0 0
  %750 = vmatpush2.bf16.msra.mxu0 %v583
  %751 = vmatprep.mubr.bf16.mxu0 %v252
  %752 = vmatmul.mubr.bf16.gmra.mxu0 %v251
  %v753 = vpop.f32.mrf.mxu0
  %v754 = vadd.f32 %v193, %v753
  %v755 = vpop.f32.mrf.mxu0
  %v756 = vpop.f32.mrf.mxu0
  %v757 = vadd.f32 %v193, %v756
  %v758 = vpop.f32.mrf.mxu0
  %759 = vmatprep.mubr.bf16.mxu0 %v261
  %760 = vmatmul.mubr.bf16.gmra.mxu0 %v260
  %v761 = vpop.f32.mrf.mxu0
  %v762 = vadd.f32 %v193, %v761
  %v763 = vpop.f32.mrf.mxu0
  %v764 = vpop.f32.mrf.mxu0
  %v765 = vadd.f32 %v193, %v764
  %v766 = vpop.f32.mrf.mxu0
  %767 = vdwg.mxu0
  %768 = vmatprep.subr.bf16.mxu0 0
  %769 = vmatpush1.bf16.msra.mxu0 %v598
  %770 = vmatprep.subr.bf16.mxu0 0
  %771 = vmatpush1.bf16.msra.mxu0 %v597
  %772 = vmatprep.subr.bf16.mxu0 0
  %773 = vmatpush1.bf16.msra.mxu0 %v596
  %774 = vmatprep.subr.bf16.mxu0 0
  %775 = vmatpush1.bf16.msra.mxu0 %v595
  %776 = vmatprep.subr.bf16.mxu0 0
  %777 = vmatpush1.bf16.msra.mxu0 %v594
  %778 = vmatprep.subr.bf16.mxu0 0
  %779 = vmatpush1.bf16.msra.mxu0 %v593
  %780 = vmatprep.subr.bf16.mxu0 0
  %781 = vmatpush1.bf16.msra.mxu0 %v592
  %782 = vmatprep.subr.bf16.mxu0 0
  %783 = vmatpush1.bf16.msra.mxu0 %v591
  %784 = vmatprep.subr.bf16.mxu0 0
  %785 = vmatpush2.bf16.msra.mxu0 %v606
  %786 = vmatprep.subr.bf16.mxu0 0
  %787 = vmatpush2.bf16.msra.mxu0 %v605
  %788 = vmatprep.subr.bf16.mxu0 0
  %789 = vmatpush2.bf16.msra.mxu0 %v604
  %790 = vmatprep.subr.bf16.mxu0 0
  %791 = vmatpush2.bf16.msra.mxu0 %v603
  %792 = vmatprep.subr.bf16.mxu0 0
  %793 = vmatpush2.bf16.msra.mxu0 %v602
  %794 = vmatprep.subr.bf16.mxu0 0
  %795 = vmatpush2.bf16.msra.mxu0 %v601
  %796 = vmatprep.subr.bf16.mxu0 0
  %797 = vmatpush2.bf16.msra.mxu0 %v600
  %798 = vmatprep.subr.bf16.mxu0 0
  %799 = vmatpush2.bf16.msra.mxu0 %v599
  %800 = vmatprep.mubr.bf16.mxu0 %v254
  %801 = vmatmul.mubr.bf16.gmra.mxu0 %v253
  %v802 = vpop.f32.mrf.mxu0
  %v803 = vadd.f32 %v754, %v802
  %v804 = vpop.f32.mrf.mxu0
  %v805 = vpop.f32.mrf.mxu0
  %v806 = vadd.f32 %v757, %v805
  %v807 = vpop.f32.mrf.mxu0
  %808 = vmatprep.mubr.bf16.mxu0 %v263
  %809 = vmatmul.mubr.bf16.gmra.mxu0 %v262
  %v810 = vpop.f32.mrf.mxu0
  %v811 = vadd.f32 %v762, %v810
  %v812 = vpop.f32.mrf.mxu0
  %v813 = vpop.f32.mrf.mxu0
  %v814 = vadd.f32 %v765, %v813
  %v815 = vpop.f32.mrf.mxu0
  %816 = vdwg.mxu0
  %817 = vmatprep.subr.bf16.mxu0 0
  %818 = vmatpush1.bf16.msra.mxu0 %v614
  %819 = vmatprep.subr.bf16.mxu0 0
  %820 = vmatpush1.bf16.msra.mxu0 %v613
  %821 = vmatprep.subr.bf16.mxu0 0
  %822 = vmatpush1.bf16.msra.mxu0 %v612
  %823 = vmatprep.subr.bf16.mxu0 0
  %824 = vmatpush1.bf16.msra.mxu0 %v611
  %825 = vmatprep.subr.bf16.mxu0 0
  %826 = vmatpush1.bf16.msra.mxu0 %v610
  %827 = vmatprep.subr.bf16.mxu0 0
  %828 = vmatpush1.bf16.msra.mxu0 %v609
  %829 = vmatprep.subr.bf16.mxu0 0
  %830 = vmatpush1.bf16.msra.mxu0 %v608
  %831 = vmatprep.subr.bf16.mxu0 0
  %832 = vmatpush1.bf16.msra.mxu0 %v607
  %833 = vmatprep.subr.bf16.mxu0 0
  %834 = vmatpush2.bf16.msra.mxu0 %v622
  %835 = vmatprep.subr.bf16.mxu0 0
  %836 = vmatpush2.bf16.msra.mxu0 %v621
  %837 = vmatprep.subr.bf16.mxu0 0
  %838 = vmatpush2.bf16.msra.mxu0 %v620
  %839 = vmatprep.subr.bf16.mxu0 0
  %840 = vmatpush2.bf16.msra.mxu0 %v619
  %841 = vmatprep.subr.bf16.mxu0 0
  %842 = vmatpush2.bf16.msra.mxu0 %v618
  %843 = vmatprep.subr.bf16.mxu0 0
  %844 = vmatpush2.bf16.msra.mxu0 %v617
  %845 = vmatprep.subr.bf16.mxu0 0
  %846 = vmatpush2.bf16.msra.mxu0 %v616
  %847 = vmatprep.subr.bf16.mxu0 0
  %848 = vmatpush2.bf16.msra.mxu0 %v615
  %849 = vmatprep.mubr.bf16.mxu0 %v256
  %850 = vmatmul.mubr.bf16.gmra.mxu0 %v255
  %v851 = vpop.f32.mrf.mxu0
  %v852 = vadd.f32 %v803, %v851
  %v853 = vpop.f32.mrf.mxu0
  %v854 = vpop.f32.mrf.mxu0
  %v855 = vadd.f32 %v806, %v854
  %v856 = vpop.f32.mrf.mxu0
  %857 = vmatprep.mubr.bf16.mxu0 %v265
  %858 = vmatmul.mubr.bf16.gmra.mxu0 %v264
  %v859 = vpop.f32.mrf.mxu0
  %v860 = vadd.f32 %v811, %v859
  %v861 = vpop.f32.mrf.mxu0
  %v862 = vpop.f32.mrf.mxu0
  %v863 = vadd.f32 %v814, %v862
  %v864 = vpop.f32.mrf.mxu0
  %865 = vdwg.mxu0
  %866 = vmatprep.subr.bf16.mxu0 0
  %867 = vmatpush1.bf16.msra.mxu0 %v630
  %868 = vmatprep.subr.bf16.mxu0 0
  %869 = vmatpush1.bf16.msra.mxu0 %v629
  %870 = vmatprep.subr.bf16.mxu0 0
  %871 = vmatpush1.bf16.msra.mxu0 %v628
  %872 = vmatprep.subr.bf16.mxu0 0
  %873 = vmatpush1.bf16.msra.mxu0 %v627
  %874 = vmatprep.subr.bf16.mxu0 0
  %875 = vmatpush1.bf16.msra.mxu0 %v626
  %876 = vmatprep.subr.bf16.mxu0 0
  %877 = vmatpush1.bf16.msra.mxu0 %v625
  %878 = vmatprep.subr.bf16.mxu0 0
  %879 = vmatpush1.bf16.msra.mxu0 %v624
  %880 = vmatprep.subr.bf16.mxu0 0
  %881 = vmatpush1.bf16.msra.mxu0 %v623
  %882 = vmatprep.subr.bf16.mxu0 0
  %883 = vmatpush2.bf16.msra.mxu0 %v638
  %884 = vmatprep.subr.bf16.mxu0 0
  %885 = vmatpush2.bf16.msra.mxu0 %v637
  %886 = vmatprep.subr.bf16.mxu0 0
  %887 = vmatpush2.bf16.msra.mxu0 %v636
  %888 = vmatprep.subr.bf16.mxu0 0
  %889 = vmatpush2.bf16.msra.mxu0 %v635
  %890 = vmatprep.subr.bf16.mxu0 0
  %891 = vmatpush2.bf16.msra.mxu0 %v634
  %892 = vmatprep.subr.bf16.mxu0 0
  %893 = vmatpush2.bf16.msra.mxu0 %v633
  %894 = vmatprep.subr.bf16.mxu0 0
  %895 = vmatpush2.bf16.msra.mxu0 %v632
  %896 = vmatprep.subr.bf16.mxu0 0
  %897 = vmatpush2.bf16.msra.mxu0 %v631
  %898 = vmatprep.mubr.bf16.mxu0 %v258
  %899 = vmatmul.mubr.bf16.gmra.mxu0 %v257
  %v900 = vpop.f32.mrf.mxu0
  %v901 = vadd.f32 %v852, %v900
  %v902 = vpop.f32.mrf.mxu0
  %v903 = vpop.f32.mrf.mxu0
  %v904 = vadd.f32 %v855, %v903
  %v905 = vpop.f32.mrf.mxu0
  %906 = vmatprep.mubr.bf16.mxu0 %v267
  %907 = vmatmul.mubr.bf16.gmra.mxu0 %v266
  %v908 = vpop.f32.mrf.mxu0
  %v909 = vadd.f32 %v860, %v908
  %v910 = vpop.f32.mrf.mxu0
  %v911 = vpop.f32.mrf.mxu0
  %v912 = vadd.f32 %v863, %v911
  %v913 = vpop.f32.mrf.mxu0
  %914 = vdwg.mxu0
  %915 = vmatprep.subr.bf16.mxu0 0
  %916 = vmatpush1.bf16.msra.mxu0 %v646
  %917 = vmatprep.subr.bf16.mxu0 0
  %918 = vmatpush1.bf16.msra.mxu0 %v645
  %919 = vmatprep.subr.bf16.mxu0 0
  %920 = vmatpush1.bf16.msra.mxu0 %v644
  %921 = vmatprep.subr.bf16.mxu0 0
  %922 = vmatpush1.bf16.msra.mxu0 %v643
  %923 = vmatprep.subr.bf16.mxu0 0
  %924 = vmatpush1.bf16.msra.mxu0 %v642
  %925 = vmatprep.subr.bf16.mxu0 0
  %926 = vmatpush1.bf16.msra.mxu0 %v641
  %927 = vmatprep.subr.bf16.mxu0 0
  %928 = vmatpush1.bf16.msra.mxu0 %v640
  %929 = vmatprep.subr.bf16.mxu0 0
  %930 = vmatpush1.bf16.msra.mxu0 %v639
  %931 = vmatprep.subr.bf16.mxu0 0
  %932 = vmatpush2.bf16.msra.mxu0 0
  %933 = vmatprep.subr.bf16.mxu0 0
  %934 = vmatpush2.bf16.msra.mxu0 0
  %935 = vmatprep.subr.bf16.mxu0 0
  %936 = vmatpush2.bf16.msra.mxu0 0
  %937 = vmatprep.subr.bf16.mxu0 0
  %938 = vmatpush2.bf16.msra.mxu0 0
  %939 = vmatprep.subr.bf16.mxu0 0
  %940 = vmatpush2.bf16.msra.mxu0 0
  %941 = vmatprep.subr.bf16.mxu0 0
  %942 = vmatpush2.bf16.msra.mxu0 0
  %943 = vmatprep.subr.bf16.mxu0 0
  %944 = vmatpush2.bf16.msra.mxu0 0
  %945 = vmatprep.subr.bf16.mxu0 0
  %946 = vmatpush2.bf16.msra.mxu0 0
  %947 = vmatprep.mubr.bf16.mxu0 0
  %948 = vmatmul.mubr.bf16.gmra.mxu0 %v259
  %v949 = vpop.f32.mrf.mxu0
  %v950 = vadd.f32 %v901, %v949
  %v951 = vpop.f32.mrf.mxu0
  %v952 = vpop.f32.mrf.mxu0
  %v953 = vadd.f32 %v904, %v952
  %v954 = vpop.f32.mrf.mxu0
  %955 = vmatprep.mubr.bf16.mxu0 0
  %956 = vmatmul.mubr.bf16.gmra.mxu0 %v268
  %v957 = vpop.f32.mrf.mxu0
  %v958 = vadd.f32 %v909, %v957
  %v959 = vpop.f32.mrf.mxu0
  %v960 = vpop.f32.mrf.mxu0
  %v961 = vadd.f32 %v912, %v960
  %v962 = vpop.f32.mrf.mxu0
  %963 = vdwg.mxu0
  %v964 = vmax.f32 %v950, 0.0
  %v965 = vmax.f32 %v953, 0.0
  %v966 = vmax.f32 %v958, 0.0
  %v967 = vmax.f32 %v961, 0.0
  %v968 = vld [vmem:[%s3] sm:$0xf]
  %v969 = vld [vmem:[%s3 + $0x4] sm:$0xf]
  %v970 = vld [vmem:[%s3 + $0x8] sm:$0xf]
  %v971 = vld [vmem:[%s3 + $0xc] sm:$0xf]
  %v972 = vunpack.c.l.bf16 %v968
  %v973 = vunpack.c.l.bf16 %v969
  %v974 = vunpack.c.l.bf16 %v970
  %v975 = vunpack.c.l.bf16 %v971
  %v976 = vadd.f32 %v964, %v972
  %v977 = vadd.f32 %v965, %v973
  %v978 = vadd.f32 %v966, %v974
  %v979 = vadd.f32 %v967, %v975
  %v980 = vadd.f32 %v976, %v977
  %v981 = vadd.f32 %v980, %v978
  %v982 = vadd.f32 %v981, %v979
  %v983 = vrot.slane %v982, 4
  %v984 = vadd.f32 %v982, %v983
  %v985 = vrot.slane %v984, 2
  %v986 = vadd.f32 %v984, %v985
  %v987 = vrot.slane %v986, 1
  %v988 = vadd.f32 %v986, %v987
  %v989 = vmul.f32 %v976, %v976
  %v990 = vmul.f32 %v977, %v977
  %v991 = vmul.f32 %v978, %v978
  %v992 = vmul.f32 %v979, %v979
  %v993 = vadd.f32 %v989, %v990
  %v994 = vadd.f32 %v993, %v991
  %v995 = vadd.f32 %v994, %v992
  %v996 = vrot.slane %v995, 4
  %v997 = vadd.f32 %v995, %v996
  %v998 = vrot.slane %v997, 2
  %v999 = vadd.f32 %v997, %v998
  %v1000 = vrot.slane %v999, 1
  %v1001 = vadd.f32 %v999, %v1000
  %v1002 = vmul.f32 %v988, 0.03125
  %v1003 = vmul.f32 %v1001, 0.03125
  %v1004 = vmul.f32 %v1002, %v1002
  %v1005 = vsub.f32 %v1003, %v1004
  %v1006 = vmax.f32 %v1005, 0.0
  %v1007 = vld [vmem:[%s4] sm:$0x1]
  %v1008 = vadd.f32 %v1006, 1e-05
  %v1009 = vrsqrt.pop %v1008
  %v1010 = vmul.f32 %v1007, %v1009
  %v1011 = vld [vmem:[%s5] sm:$0x1]
  %v1012 = vmul.f32 %v1002, %v1010
  %v1013 = vsub.f32 %v1011, %v1012
  %v1015 = vlaneseq
  %v1016 = vshrl.u32 %v1015, 7
  %v1017 = vsub.s32 0, %v1016
  %v1018 = vrot.slane %v1010, %v1017
  %v1020 = vmul.f32 %v976, %v1018
  %v1021 = vmul.f32 %v977, %v1018
  %v1022 = vmul.f32 %v978, %v1018
  %v1023 = vmul.f32 %v979, %v1018
  %v1025 = vlaneseq
  %v1026 = vshrl.u32 %v1025, 7
  %v1027 = vsub.s32 0, %v1026
  %v1028 = vrot.slane %v1013, %v1027
  %v1030 = vadd.f32 %v1020, %v1028
  %v1031 = vadd.f32 %v1021, %v1028
  %v1032 = vadd.f32 %v1022, %v1028
  %v1033 = vadd.f32 %v1023, %v1028
  %v1034 = vpack.c.bf16 %v1031, %v1030
  %v1035 = vpack.c.bf16 %v1033, %v1032
  %v1038 = vunpack.c.l.b16 %v1034
  %v1039 = vunpack.c.h.b16 %v1034
  %v1040 = vunpack.c.l.b16 %v1035
  %v1041 = vunpack.c.h.b16 %v1035
  %v1042 = vpack.c.b16 %v1038, %v1038
  %v1043 = vpack.c.b16 %v1039, %v1039
  %v1044 = vpack.c.b16 %v1040, %v1040
  %v1045 = vpack.c.b16 %v1041, %v1041
  %1050 = vst [vmem:[%s6] sm:$0xf] %v1042
  %1051 = vst [vmem:[%s6 + $0x4] sm:$0xf] %v1043
  %1052 = vst [vmem:[%s6 + $0x8] sm:$0xf] %v1044
  %1053 = vst [vmem:[%s6 + $0xc] sm:$0xf] %v1045
  // Predicated region
  $region26: #{fcn8s_forward.9} parent=0 // pred_check
    _
  $region27: #{fcn8s_forward.9} parent=0 // pred_check_branch
    %1055 = sbr.rel (0) target = $region29
  $region28: #{fcn8s_forward.9} parent=0 // pred_region
    _
  $region29: #{fcn8s_forward.9} parent=0 // pred_fallthru
    _
  // Predicated region
  $region30: #{fcn8s_forward.9} parent=0 // pred_check
    _
  $region31: #{fcn8s_forward.9} parent=0 // pred_check_branch
    %1057 = sbr.rel (0) target = $region33
  $region32: #{fcn8s_forward.9} parent=0 // pred_region
    _
  $region33: #{fcn8s_forward.9} parent=0 // pred_fallthru
    _

// kernel: fcn8s_forward.10
$region0: #{fcn8s_forward.10}
  #allocation0 [shape = 'u32[]', space=smem, size = 0x4, offset = 0x4, fixed_abs, tag = 'smem constant byte address 0x4 - core index']
  #allocation1 [shape = 'u32[144,128]{1,0:T(1,128)}', space=vmem, size = 0x12000, scoped, tag = 'internal scratch']
  %s0 = inlined_call_operand.vmem [shape: bf16[128,640], index: 0, kind: input, shape index: {}]
  %s1 = inlined_call_operand.vmem [shape: bf16[640,128], index: 1, kind: input, shape index: {}]
  %s2 = inlined_call_operand.vmem [shape: f32[1,128], index: 2, kind: input, shape index: {}]
  %s3 = inlined_call_operand.vmem [shape: bf16[128,128], index: 3, kind: input, shape index: {}]
  %s4 = inlined_call_operand.vmem [shape: f32[1,128], index: 4, kind: input, shape index: {}]
  %s5 = inlined_call_operand.vmem [shape: f32[1,128], index: 5, kind: input, shape index: {}]
  %s6 = inlined_call_operand.vmem [shape: bf16[128,128], index: 6, kind: output, shape index: {}]
  %s7 = sld [smem:[#allocation0]]
  $region34: #{fcn8s_forward.10} parent=0
    _
  %s9 = ssub.s32 1, %s7
  %s10 = scalar_select 0, %s9, %s7
  // Predicated region
  $region2: #{fcn8s_forward.10} parent=0 // pred_check
    _
  $region3: #{fcn8s_forward.10} parent=0 // pred_check_branch
    %12 = sbr.rel (0) target = $region5
  $region4: #{fcn8s_forward.10} parent=0 // pred_region
    _
  $region5: #{fcn8s_forward.10} parent=0 // pred_fallthru
    _
  // Predicated region
  $region6: #{fcn8s_forward.10} parent=0 // pred_check
    _
  $region7: #{fcn8s_forward.10} parent=0 // pred_check_branch
    %14 = sbr.rel (0) target = $region9
  $region8: #{fcn8s_forward.10} parent=0 // pred_region
    _
  $region9: #{fcn8s_forward.10} parent=0 // pred_fallthru
    _
  // Predicated region
  $region10: #{fcn8s_forward.10} parent=0 // pred_check
    _
  $region11: #{fcn8s_forward.10} parent=0 // pred_check_branch
    %16 = sbr.rel (0) target = $region13
  $region12: #{fcn8s_forward.10} parent=0 // pred_region
    _
  $region13: #{fcn8s_forward.10} parent=0 // pred_fallthru
    _
  // Predicated region
  $region14: #{fcn8s_forward.10} parent=0 // pred_check
    _
  $region15: #{fcn8s_forward.10} parent=0 // pred_check_branch
    %18 = sbr.rel (0) target = $region17
  $region16: #{fcn8s_forward.10} parent=0 // pred_region
    _
  $region17: #{fcn8s_forward.10} parent=0 // pred_fallthru
    _
  // Predicated region
  $region18: #{fcn8s_forward.10} parent=0 // pred_check
    _
  $region19: #{fcn8s_forward.10} parent=0 // pred_check_branch
    %20 = sbr.rel (0) target = $region21
  $region20: #{fcn8s_forward.10} parent=0 // pred_region
    _
  $region21: #{fcn8s_forward.10} parent=0 // pred_fallthru
    _
  // Predicated region
  $region22: #{fcn8s_forward.10} parent=0 // pred_check
    _
  $region23: #{fcn8s_forward.10} parent=0 // pred_check_branch
    %22 = sbr.rel (0) target = $region25
  $region24: #{fcn8s_forward.10} parent=0 // pred_region
    _
  $region25: #{fcn8s_forward.10} parent=0 // pred_fallthru
    _
  %v24 = vld [vmem:[%s0] sm:$0xff]
  %v25 = vld [vmem:[%s0 + $0x8] sm:$0xff]
  %v26 = vld [vmem:[%s0 + $0x10] sm:$0xf]
  %v27 = vld [vmem:[%s0 + $0x14] sm:$0xff]
  %v28 = vld [vmem:[%s0 + $0x1c] sm:$0xff]
  %v29 = vld [vmem:[%s0 + $0x24] sm:$0xf]
  %v30 = vld [vmem:[%s0 + $0x28] sm:$0xff]
  %v31 = vld [vmem:[%s0 + $0x30] sm:$0xff]
  %v32 = vld [vmem:[%s0 + $0x38] sm:$0xf]
  %v33 = vld [vmem:[%s0 + $0x3c] sm:$0xff]
  %v34 = vld [vmem:[%s0 + $0x44] sm:$0xff]
  %v35 = vld [vmem:[%s0 + $0x4c] sm:$0xf]
  %v36 = vld [vmem:[%s0 + $0x50] sm:$0xff]
  %v37 = vld [vmem:[%s0 + $0x58] sm:$0xff]
  %v38 = vld [vmem:[%s0 + $0x60] sm:$0xf]
  %v39 = vld [vmem:[%s0 + $0x64] sm:$0xff]
  %v40 = vld [vmem:[%s0 + $0x6c] sm:$0xff]
  %v41 = vld [vmem:[%s0 + $0x74] sm:$0xf]
  %v42 = vld [vmem:[%s0 + $0x78] sm:$0xff]
  %v43 = vld [vmem:[%s0 + $0x80] sm:$0xff]
  %v44 = vld [vmem:[%s0 + $0x88] sm:$0xf]
  %v45 = vld [vmem:[%s0 + $0x8c] sm:$0xff]
  %v46 = vld [vmem:[%s0 + $0x94] sm:$0xff]
  %v47 = vld [vmem:[%s0 + $0x9c] sm:$0xf]
  %v48 = vld [vmem:[%s0 + $0xa0] sm:$0xff]
  %v49 = vld [vmem:[%s0 + $0xa8] sm:$0xff]
  %v50 = vld [vmem:[%s0 + $0xb0] sm:$0xf]
  %v51 = vld [vmem:[%s0 + $0xb4] sm:$0xff]
  %v52 = vld [vmem:[%s0 + $0xbc] sm:$0xff]
  %v53 = vld [vmem:[%s0 + $0xc4] sm:$0xf]
  %v54 = vld [vmem:[%s0 + $0xc8] sm:$0xff]
  %v55 = vld [vmem:[%s0 + $0xd0] sm:$0xff]
  %v56 = vld [vmem:[%s0 + $0xd8] sm:$0xf]
  %v57 = vld [vmem:[%s0 + $0xdc] sm:$0xff]
  %v58 = vld [vmem:[%s0 + $0xe4] sm:$0xff]
  %v59 = vld [vmem:[%s0 + $0xec] sm:$0xf]
  %v60 = vld [vmem:[%s0 + $0xf0] sm:$0xff]
  %v61 = vld [vmem:[%s0 + $0xf8] sm:$0xff]
  %v62 = vld [vmem:[%s0 + $0x100] sm:$0xf]
  %v63 = vld [vmem:[%s0 + $0x104] sm:$0xff]
  %v64 = vld [vmem:[%s0 + $0x10c] sm:$0xff]
  %v65 = vld [vmem:[%s0 + $0x114] sm:$0xf]
  %v66 = vld [vmem:[%s0 + $0x118] sm:$0xff]
  %v67 = vld [vmem:[%s0 + $0x120] sm:$0xff]
  %v68 = vld [vmem:[%s0 + $0x128] sm:$0xf]
  %v69 = vld [vmem:[%s0 + $0x12c] sm:$0xff]
  %v70 = vld [vmem:[%s0 + $0x134] sm:$0xff]
  %v71 = vld [vmem:[%s0 + $0x13c] sm:$0xf]
  %v72 = vld [vmem:[%s1] sm:$0xf]
  %v73 = vld [vmem:[%s1 + $0x4] sm:$0xf]
  %v74 = vld [vmem:[%s1 + $0x8] sm:$0xf]
  %v75 = vld [vmem:[%s1 + $0xc] sm:$0xf]
  %v76 = vld [vmem:[%s1 + $0x10] sm:$0xf]
  %v77 = vld [vmem:[%s1 + $0x14] sm:$0xf]
  %v78 = vld [vmem:[%s1 + $0x18] sm:$0xf]
  %v79 = vld [vmem:[%s1 + $0x1c] sm:$0xf]
  %v80 = vld [vmem:[%s1 + $0x20] sm:$0xf]
  %v81 = vld [vmem:[%s1 + $0x24] sm:$0xf]
  %v82 = vld [vmem:[%s1 + $0x28] sm:$0xf]
  %v83 = vld [vmem:[%s1 + $0x2c] sm:$0xf]
  %v84 = vld [vmem:[%s1 + $0x30] sm:$0xf]
  %v85 = vld [vmem:[%s1 + $0x34] sm:$0xf]
  %v86 = vld [vmem:[%s1 + $0x38] sm:$0xf]
  %v87 = vld [vmem:[%s1 + $0x3c] sm:$0xf]
  %v88 = vld [vmem:[%s1 + $0x40] sm:$0xf]
  %v89 = vld [vmem:[%s1 + $0x44] sm:$0xf]
  %v90 = vld [vmem:[%s1 + $0x48] sm:$0xf]
  %v91 = vld [vmem:[%s1 + $0x4c] sm:$0xf]
  %v92 = vld [vmem:[%s1 + $0x50] sm:$0xf]
  %v93 = vld [vmem:[%s1 + $0x54] sm:$0xf]
  %v94 = vld [vmem:[%s1 + $0x58] sm:$0xf]
  %v95 = vld [vmem:[%s1 + $0x5c] sm:$0xf]
  %v96 = vld [vmem:[%s1 + $0x60] sm:$0xf]
  %v97 = vld [vmem:[%s1 + $0x64] sm:$0xf]
  %v98 = vld [vmem:[%s1 + $0x68] sm:$0xf]
  %v99 = vld [vmem:[%s1 + $0x6c] sm:$0xf]
  %v100 = vld [vmem:[%s1 + $0x70] sm:$0xf]
  %v101 = vld [vmem:[%s1 + $0x74] sm:$0xf]
  %v102 = vld [vmem:[%s1 + $0x78] sm:$0xf]
  %v103 = vld [vmem:[%s1 + $0x7c] sm:$0xf]
  %v104 = vld [vmem:[%s1 + $0x80] sm:$0xf]
  %v105 = vld [vmem:[%s1 + $0x84] sm:$0xf]
  %v106 = vld [vmem:[%s1 + $0x88] sm:$0xf]
  %v107 = vld [vmem:[%s1 + $0x8c] sm:$0xf]
  %v108 = vld [vmem:[%s1 + $0x90] sm:$0xf]
  %v109 = vld [vmem:[%s1 + $0x94] sm:$0xf]
  %v110 = vld [vmem:[%s1 + $0x98] sm:$0xf]
  %v111 = vld [vmem:[%s1 + $0x9c] sm:$0xf]
  %v112 = vld [vmem:[%s1 + $0xa0] sm:$0xf]
  %v113 = vld [vmem:[%s1 + $0xa4] sm:$0xf]
  %v114 = vld [vmem:[%s1 + $0xa8] sm:$0xf]
  %v115 = vld [vmem:[%s1 + $0xac] sm:$0xf]
  %v116 = vld [vmem:[%s1 + $0xb0] sm:$0xf]
  %v117 = vld [vmem:[%s1 + $0xb4] sm:$0xf]
  %v118 = vld [vmem:[%s1 + $0xb8] sm:$0xf]
  %v119 = vld [vmem:[%s1 + $0xbc] sm:$0xf]
  %v120 = vld [vmem:[%s1 + $0xc0] sm:$0xf]
  %v121 = vld [vmem:[%s1 + $0xc4] sm:$0xf]
  %v122 = vld [vmem:[%s1 + $0xc8] sm:$0xf]
  %v123 = vld [vmem:[%s1 + $0xcc] sm:$0xf]
  %v124 = vld [vmem:[%s1 + $0xd0] sm:$0xf]
  %v125 = vld [vmem:[%s1 + $0xd4] sm:$0xf]
  %v126 = vld [vmem:[%s1 + $0xd8] sm:$0xf]
  %v127 = vld [vmem:[%s1 + $0xdc] sm:$0xf]
  %v128 = vld [vmem:[%s1 + $0xe0] sm:$0xf]
  %v129 = vld [vmem:[%s1 + $0xe4] sm:$0xf]
  %v130 = vld [vmem:[%s1 + $0xe8] sm:$0xf]
  %v131 = vld [vmem:[%s1 + $0xec] sm:$0xf]
  %v132 = vld [vmem:[%s1 + $0xf0] sm:$0xf]
  %v133 = vld [vmem:[%s1 + $0xf4] sm:$0xf]
  %v134 = vld [vmem:[%s1 + $0xf8] sm:$0xf]
  %v135 = vld [vmem:[%s1 + $0xfc] sm:$0xf]
  %v136 = vld [vmem:[%s1 + $0x100] sm:$0xf]
  %v137 = vld [vmem:[%s1 + $0x104] sm:$0xf]
  %v138 = vld [vmem:[%s1 + $0x108] sm:$0xf]
  %v139 = vld [vmem:[%s1 + $0x10c] sm:$0xf]
  %v140 = vld [vmem:[%s1 + $0x110] sm:$0xf]
  %v141 = vld [vmem:[%s1 + $0x114] sm:$0xf]
  %v142 = vld [vmem:[%s1 + $0x118] sm:$0xf]
  %v143 = vld [vmem:[%s1 + $0x11c] sm:$0xf]
  %v144 = vld [vmem:[%s1 + $0x120] sm:$0xf]
  %v145 = vld [vmem:[%s1 + $0x124] sm:$0xf]
  %v146 = vld [vmem:[%s1 + $0x128] sm:$0xf]
  %v147 = vld [vmem:[%s1 + $0x12c] sm:$0xf]
  %v148 = vld [vmem:[%s1 + $0x130] sm:$0xf]
  %v149 = vld [vmem:[%s1 + $0x134] sm:$0xf]
  %v150 = vld [vmem:[%s1 + $0x138] sm:$0xf]
  %v151 = vld [vmem:[%s1 + $0x13c] sm:$0xf]
  %v152 = vld [vmem:[%s2] sm:$0x1]
  %v154 = vlaneseq
  %v155 = vshrl.u32 %v154, 7
  %v156 = vsub.s32 0, %v155
  %v157 = vrot.slane %v152, %v156
  %v207 = vunpack.c.l.b16 %v24
  %v208 = vunpack.c.h.b16 %v24
  %v209 = vunpack.c.l.b16 %v25
  %v210 = vunpack.c.h.b16 %v25
  %v211 = vunpack.c.l.b16 %v26
  %v212 = vunpack.c.l.b16 %v27
  %v213 = vunpack.c.h.b16 %v27
  %v214 = vunpack.c.l.b16 %v28
  %v215 = vunpack.c.h.b16 %v28
  %v216 = vunpack.c.l.b16 %v29
  %v217 = vunpack.c.l.b16 %v30
  %v218 = vunpack.c.h.b16 %v30
  %v219 = vunpack.c.l.b16 %v31
  %v220 = vunpack.c.h.b16 %v31
  %v221 = vunpack.c.l.b16 %v32
  %v222 = vunpack.c.l.b16 %v33
  %v223 = vunpack.c.h.b16 %v33
  %v224 = vunpack.c.l.b16 %v34
  %v225 = vunpack.c.h.b16 %v34
  %v226 = vunpack.c.l.b16 %v35
  %v227 = vunpack.c.l.b16 %v36
  %v228 = vunpack.c.h.b16 %v36
  %v229 = vunpack.c.l.b16 %v37
  %v230 = vunpack.c.h.b16 %v37
  %v231 = vunpack.c.l.b16 %v38
  %v232 = vunpack.c.l.b16 %v39
  %v233 = vunpack.c.h.b16 %v39
  %v234 = vunpack.c.l.b16 %v40
  %v235 = vunpack.c.h.b16 %v40
  %v236 = vunpack.c.l.b16 %v41
  %v237 = vunpack.c.l.b16 %v42
  %v238 = vunpack.c.h.b16 %v42
  %v239 = vunpack.c.l.b16 %v43
  %v240 = vunpack.c.h.b16 %v43
  %v241 = vunpack.c.l.b16 %v44
  %v242 = vunpack.c.l.b16 %v45
  %v243 = vunpack.c.h.b16 %v45
  %v244 = vunpack.c.l.b16 %v46
  %v245 = vunpack.c.h.b16 %v46
  %v246 = vunpack.c.l.b16 %v47
  %v247 = vunpack.c.l.b16 %v48
  %v248 = vunpack.c.h.b16 %v48
  %v249 = vunpack.c.l.b16 %v49
  %v250 = vunpack.c.h.b16 %v49
  %v251 = vunpack.c.l.b16 %v50
  %v252 = vunpack.c.l.b16 %v51
  %v253 = vunpack.c.h.b16 %v51
  %v254 = vunpack.c.l.b16 %v52
  %v255 = vunpack.c.h.b16 %v52
  %v256 = vunpack.c.l.b16 %v53
  %v257 = vunpack.c.l.b16 %v54
  %v258 = vunpack.c.h.b16 %v54
  %v259 = vunpack.c.l.b16 %v55
  %v260 = vunpack.c.h.b16 %v55
  %v261 = vunpack.c.l.b16 %v56
  %v262 = vunpack.c.l.b16 %v57
  %v263 = vunpack.c.h.b16 %v57
  %v264 = vunpack.c.l.b16 %v58
  %v265 = vunpack.c.h.b16 %v58
  %v266 = vunpack.c.l.b16 %v59
  %v267 = vunpack.c.l.b16 %v60
  %v268 = vunpack.c.h.b16 %v60
  %v269 = vunpack.c.l.b16 %v61
  %v270 = vunpack.c.h.b16 %v61
  %v271 = vunpack.c.l.b16 %v62
  %v272 = vunpack.c.l.b16 %v63
  %v273 = vunpack.c.h.b16 %v63
  %v274 = vunpack.c.l.b16 %v64
  %v275 = vunpack.c.h.b16 %v64
  %v276 = vunpack.c.l.b16 %v65
  %v277 = vunpack.c.l.b16 %v66
  %v278 = vunpack.c.h.b16 %v66
  %v279 = vunpack.c.l.b16 %v67
  %v280 = vunpack.c.h.b16 %v67
  %v281 = vunpack.c.l.b16 %v68
  %v282 = vunpack.c.l.b16 %v69
  %v283 = vunpack.c.h.b16 %v69
  %v284 = vunpack.c.l.b16 %v70
  %v285 = vunpack.c.h.b16 %v70
  %v286 = vunpack.c.l.b16 %v71
  %v287 = vpack.c.b16 %v212, %v207
  %v288 = vpack.c.b16 %v213, %v208
  %v289 = vpack.c.b16 %v214, %v209
  %v290 = vpack.c.b16 %v215, %v210
  %v291 = vpack.c.b16 %v216, %v211
  %v292 = vpack.c.b16 %v222, %v217
  %v293 = vpack.c.b16 %v223, %v218
  %v294 = vpack.c.b16 %v224, %v219
  %v295 = vpack.c.b16 %v225, %v220
  %v296 = vpack.c.b16 %v226, %v221
  %v297 = vpack.c.b16 %v232, %v227
  %v298 = vpack.c.b16 %v233, %v228
  %v299 = vpack.c.b16 %v234, %v229
  %v300 = vpack.c.b16 %v235, %v230
  %v301 = vpack.c.b16 %v236, %v231
  %v302 = vpack.c.b16 %v242, %v237
  %v303 = vpack.c.b16 %v243, %v238
  %v304 = vpack.c.b16 %v244, %v239
  %v305 = vpack.c.b16 %v245, %v240
  %v306 = vpack.c.b16 %v246, %v241
  %v307 = vpack.c.b16 %v252, %v247
  %v308 = vpack.c.b16 %v253, %v248
  %v309 = vpack.c.b16 %v254, %v249
  %v310 = vpack.c.b16 %v255, %v250
  %v311 = vpack.c.b16 %v256, %v251
  %v312 = vpack.c.b16 %v262, %v257
  %v313 = vpack.c.b16 %v263, %v258
  %v314 = vpack.c.b16 %v264, %v259
  %v315 = vpack.c.b16 %v265, %v260
  %v316 = vpack.c.b16 %v266, %v261
  %v317 = vpack.c.b16 %v272, %v267
  %v318 = vpack.c.b16 %v273, %v268
  %v319 = vpack.c.b16 %v274, %v269
  %v320 = vpack.c.b16 %v275, %v270
  %v321 = vpack.c.b16 %v276, %v271
  %v322 = vpack.c.b16 %v282, %v277
  %v323 = vpack.c.b16 %v283, %v278
  %v324 = vpack.c.b16 %v284, %v279
  %v325 = vpack.c.b16 %v285, %v280
  %v326 = vpack.c.b16 %v286, %v281
  %v447 = vunpack.c.l.b16 %v72
  %v448 = vunpack.c.l.b16 %v73
  %v449 = vunpack.c.l.b16 %v74
  %v450 = vunpack.c.l.b16 %v75
  %v451 = vunpack.c.l.b16 %v76
  %v452 = vunpack.c.l.b16 %v77
  %v453 = vunpack.c.l.b16 %v78
  %v454 = vunpack.c.l.b16 %v79
  %v455 = vunpack.c.l.b16 %v80
  %v456 = vunpack.c.l.b16 %v81
  %v457 = vunpack.c.l.b16 %v82
  %v458 = vunpack.c.l.b16 %v83
  %v459 = vunpack.c.l.b16 %v84
  %v460 = vunpack.c.l.b16 %v85
  %v461 = vunpack.c.l.b16 %v86
  %v462 = vunpack.c.l.b16 %v87
  %v463 = vunpack.c.l.b16 %v88
  %v464 = vunpack.c.l.b16 %v89
  %v465 = vunpack.c.l.b16 %v90
  %v466 = vunpack.c.l.b16 %v91
  %v467 = vunpack.c.l.b16 %v92
  %v468 = vunpack.c.l.b16 %v93
  %v469 = vunpack.c.l.b16 %v94
  %v470 = vunpack.c.l.b16 %v95
  %v471 = vunpack.c.l.b16 %v96
  %v472 = vunpack.c.l.b16 %v97
  %v473 = vunpack.c.l.b16 %v98
  %v474 = vunpack.c.l.b16 %v99
  %v475 = vunpack.c.l.b16 %v100
  %v476 = vunpack.c.l.b16 %v101
  %v477 = vunpack.c.l.b16 %v102
  %v478 = vunpack.c.l.b16 %v103
  %v479 = vunpack.c.l.b16 %v104
  %v480 = vunpack.c.l.b16 %v105
  %v481 = vunpack.c.l.b16 %v106
  %v482 = vunpack.c.l.b16 %v107
  %v483 = vunpack.c.l.b16 %v108
  %v484 = vunpack.c.l.b16 %v109
  %v485 = vunpack.c.l.b16 %v110
  %v486 = vunpack.c.l.b16 %v111
  %v487 = vunpack.c.l.b16 %v112
  %v488 = vunpack.c.l.b16 %v113
  %v489 = vunpack.c.l.b16 %v114
  %v490 = vunpack.c.l.b16 %v115
  %v491 = vunpack.c.l.b16 %v116
  %v492 = vunpack.c.l.b16 %v117
  %v493 = vunpack.c.l.b16 %v118
  %v494 = vunpack.c.l.b16 %v119
  %v495 = vunpack.c.l.b16 %v120
  %v496 = vunpack.c.l.b16 %v121
  %v497 = vunpack.c.l.b16 %v122
  %v498 = vunpack.c.l.b16 %v123
  %v499 = vunpack.c.l.b16 %v124
  %v500 = vunpack.c.l.b16 %v125
  %v501 = vunpack.c.l.b16 %v126
  %v502 = vunpack.c.l.b16 %v127
  %v503 = vunpack.c.l.b16 %v128
  %v504 = vunpack.c.l.b16 %v129
  %v505 = vunpack.c.l.b16 %v130
  %v506 = vunpack.c.l.b16 %v131
  %v507 = vunpack.c.l.b16 %v132
  %v508 = vunpack.c.l.b16 %v133
  %v509 = vunpack.c.l.b16 %v134
  %v510 = vunpack.c.l.b16 %v135
  %v511 = vunpack.c.l.b16 %v136
  %v512 = vunpack.c.l.b16 %v137
  %v513 = vunpack.c.l.b16 %v138
  %v514 = vunpack.c.l.b16 %v139
  %v515 = vunpack.c.l.b16 %v140
  %v516 = vunpack.c.l.b16 %v141
  %v517 = vunpack.c.l.b16 %v142
  %v518 = vunpack.c.l.b16 %v143
  %v519 = vunpack.c.l.b16 %v144
  %v520 = vunpack.c.l.b16 %v145
  %v521 = vunpack.c.l.b16 %v146
  %v522 = vunpack.c.l.b16 %v147
  %v523 = vunpack.c.l.b16 %v148
  %v524 = vunpack.c.l.b16 %v149
  %v525 = vunpack.c.l.b16 %v150
  %v526 = vunpack.c.l.b16 %v151
  %v527 = vpack.c.b16 %v448, %v447
  %v528 = vpack.c.b16 %v450, %v449
  %v529 = vpack.c.b16 %v452, %v451
  %v530 = vpack.c.b16 %v454, %v453
  %v531 = vpack.c.b16 %v456, %v455
  %v532 = vpack.c.b16 %v458, %v457
  %v533 = vpack.c.b16 %v460, %v459
  %v534 = vpack.c.b16 %v462, %v461
  %v535 = vpack.c.b16 %v464, %v463
  %v536 = vpack.c.b16 %v466, %v465
  %v537 = vpack.c.b16 %v468, %v467
  %v538 = vpack.c.b16 %v470, %v469
  %v539 = vpack.c.b16 %v472, %v471
  %v540 = vpack.c.b16 %v474, %v473
  %v541 = vpack.c.b16 %v476, %v475
  %v542 = vpack.c.b16 %v478, %v477
  %v543 = vpack.c.b16 %v480, %v479
  %v544 = vpack.c.b16 %v482, %v481
  %v545 = vpack.c.b16 %v484, %v483
  %v546 = vpack.c.b16 %v486, %v485
  %v547 = vpack.c.b16 %v488, %v487
  %v548 = vpack.c.b16 %v490, %v489
  %v549 = vpack.c.b16 %v492, %v491
  %v550 = vpack.c.b16 %v494, %v493
  %v551 = vpack.c.b16 %v496, %v495
  %v552 = vpack.c.b16 %v498, %v497
  %v553 = vpack.c.b16 %v500, %v499
  %v554 = vpack.c.b16 %v502, %v501
  %v555 = vpack.c.b16 %v504, %v503
  %v556 = vpack.c.b16 %v506, %v505
  %v557 = vpack.c.b16 %v508, %v507
  %v558 = vpack.c.b16 %v510, %v509
  %v559 = vpack.c.b16 %v512, %v511
  %v560 = vpack.c.b16 %v514, %v513
  %v561 = vpack.c.b16 %v516, %v515
  %v562 = vpack.c.b16 %v518, %v517
  %v563 = vpack.c.b16 %v520, %v519
  %v564 = vpack.c.b16 %v522, %v521
  %v565 = vpack.c.b16 %v524, %v523
  %v566 = vpack.c.b16 %v526, %v525
  %607 = vmatprep.subr.bf16.mxu0 0
  %608 = vmatpush1.bf16.msra.mxu0 %v534
  %609 = vmatprep.subr.bf16.mxu0 0
  %610 = vmatpush1.bf16.msra.mxu0 %v533
  %611 = vmatprep.subr.bf16.mxu0 0
  %612 = vmatpush1.bf16.msra.mxu0 %v532
  %613 = vmatprep.subr.bf16.mxu0 0
  %614 = vmatpush1.bf16.msra.mxu0 %v531
  %615 = vmatprep.subr.bf16.mxu0 0
  %616 = vmatpush1.bf16.msra.mxu0 %v530
  %617 = vmatprep.subr.bf16.mxu0 0
  %618 = vmatpush1.bf16.msra.mxu0 %v529
  %619 = vmatprep.subr.bf16.mxu0 0
  %620 = vmatpush1.bf16.msra.mxu0 %v528
  %621 = vmatprep.subr.bf16.mxu0 0
  %622 = vmatpush1.bf16.msra.mxu0 %v527
  %623 = vmatprep.subr.bf16.mxu0 0
  %624 = vmatpush2.bf16.msra.mxu0 %v542
  %625 = vmatprep.subr.bf16.mxu0 0
  %626 = vmatpush2.bf16.msra.mxu0 %v541
  %627 = vmatprep.subr.bf16.mxu0 0
  %628 = vmatpush2.bf16.msra.mxu0 %v540
  %629 = vmatprep.subr.bf16.mxu0 0
  %630 = vmatpush2.bf16.msra.mxu0 %v539
  %631 = vmatprep.subr.bf16.mxu0 0
  %632 = vmatpush2.bf16.msra.mxu0 %v538
  %633 = vmatprep.subr.bf16.mxu0 0
  %634 = vmatpush2.bf16.msra.mxu0 %v537
  %635 = vmatprep.subr.bf16.mxu0 0
  %636 = vmatpush2.bf16.msra.mxu0 %v536
  %637 = vmatprep.subr.bf16.mxu0 0
  %638 = vmatpush2.bf16.msra.mxu0 %v535
  %639 = vmatprep.mubr.bf16.mxu0 %v288
  %640 = vmatmul.mubr.bf16.gmra.mxu0 %v287
  %v641 = vpop.f32.mrf.mxu0
  %v642 = vadd.f32 %v157, %v641
  %v643 = vpop.f32.mrf.mxu0
  %v644 = vpop.f32.mrf.mxu0
  %v645 = vadd.f32 %v157, %v644
  %v646 = vpop.f32.mrf.mxu0
  %647 = vmatprep.mubr.bf16.mxu0 %v293
  %648 = vmatmul.mubr.bf16.gmra.mxu0 %v292
  %v649 = vpop.f32.mrf.mxu0
  %v650 = vadd.f32 %v157, %v649
  %v651 = vpop.f32.mrf.mxu0
  %v652 = vpop.f32.mrf.mxu0
  %v653 = vadd.f32 %v157, %v652
  %v654 = vpop.f32.mrf.mxu0
  %655 = vmatprep.mubr.bf16.mxu0 %v298
  %656 = vmatmul.mubr.bf16.gmra.mxu0 %v297
  %v657 = vpop.f32.mrf.mxu0
  %v658 = vadd.f32 %v157, %v657
  %v659 = vpop.f32.mrf.mxu0
  %v660 = vpop.f32.mrf.mxu0
  %v661 = vadd.f32 %v157, %v660
  %v662 = vpop.f32.mrf.mxu0
  %663 = vmatprep.mubr.bf16.mxu0 %v303
  %664 = vmatmul.mubr.bf16.gmra.mxu0 %v302
  %v665 = vpop.f32.mrf.mxu0
  %v666 = vadd.f32 %v157, %v665
  %v667 = vpop.f32.mrf.mxu0
  %v668 = vpop.f32.mrf.mxu0
  %v669 = vadd.f32 %v157, %v668
  %v670 = vpop.f32.mrf.mxu0
  %671 = vmatprep.mubr.bf16.mxu0 %v308
  %672 = vmatmul.mubr.bf16.gmra.mxu0 %v307
  %v673 = vpop.f32.mrf.mxu0
  %v674 = vadd.f32 %v157, %v673
  %v675 = vpop.f32.mrf.mxu0
  %v676 = vpop.f32.mrf.mxu0
  %v677 = vadd.f32 %v157, %v676
  %v678 = vpop.f32.mrf.mxu0
  %679 = vmatprep.mubr.bf16.mxu0 %v313
  %680 = vmatmul.mubr.bf16.gmra.mxu0 %v312
  %v681 = vpop.f32.mrf.mxu0
  %v682 = vadd.f32 %v157, %v681
  %v683 = vpop.f32.mrf.mxu0
  %v684 = vpop.f32.mrf.mxu0
  %v685 = vadd.f32 %v157, %v684
  %v686 = vpop.f32.mrf.mxu0
  %687 = vmatprep.mubr.bf16.mxu0 %v318
  %688 = vmatmul.mubr.bf16.gmra.mxu0 %v317
  %v689 = vpop.f32.mrf.mxu0
  %v690 = vadd.f32 %v157, %v689
  %v691 = vpop.f32.mrf.mxu0
  %v692 = vpop.f32.mrf.mxu0
  %v693 = vadd.f32 %v157, %v692
  %v694 = vpop.f32.mrf.mxu0
  %695 = vmatprep.mubr.bf16.mxu0 %v323
  %696 = vmatmul.mubr.bf16.gmra.mxu0 %v322
  %v697 = vpop.f32.mrf.mxu0
  %v698 = vadd.f32 %v157, %v697
  %v699 = vpop.f32.mrf.mxu0
  %v700 = vpop.f32.mrf.mxu0
  %v701 = vadd.f32 %v157, %v700
  %v702 = vpop.f32.mrf.mxu0
  %703 = vdwg.mxu0
  %704 = vmatprep.subr.bf16.mxu0 0
  %705 = vmatpush1.bf16.msra.mxu0 %v550
  %706 = vmatprep.subr.bf16.mxu0 0
  %707 = vmatpush1.bf16.msra.mxu0 %v549
  %708 = vmatprep.subr.bf16.mxu0 0
  %709 = vmatpush1.bf16.msra.mxu0 %v548
  %710 = vmatprep.subr.bf16.mxu0 0
  %711 = vmatpush1.bf16.msra.mxu0 %v547
  %712 = vmatprep.subr.bf16.mxu0 0
  %713 = vmatpush1.bf16.msra.mxu0 %v546
  %714 = vmatprep.subr.bf16.mxu0 0
  %715 = vmatpush1.bf16.msra.mxu0 %v545
  %716 = vmatprep.subr.bf16.mxu0 0
  %717 = vmatpush1.bf16.msra.mxu0 %v544
  %718 = vmatprep.subr.bf16.mxu0 0
  %719 = vmatpush1.bf16.msra.mxu0 %v543
  %720 = vmatprep.subr.bf16.mxu0 0
  %721 = vmatpush2.bf16.msra.mxu0 %v558
  %722 = vmatprep.subr.bf16.mxu0 0
  %723 = vmatpush2.bf16.msra.mxu0 %v557
  %724 = vmatprep.subr.bf16.mxu0 0
  %725 = vmatpush2.bf16.msra.mxu0 %v556
  %726 = vmatprep.subr.bf16.mxu0 0
  %727 = vmatpush2.bf16.msra.mxu0 %v555
  %728 = vmatprep.subr.bf16.mxu0 0
  %729 = vmatpush2.bf16.msra.mxu0 %v554
  %730 = vmatprep.subr.bf16.mxu0 0
  %731 = vmatpush2.bf16.msra.mxu0 %v553
  %732 = vmatprep.subr.bf16.mxu0 0
  %733 = vmatpush2.bf16.msra.mxu0 %v552
  %734 = vmatprep.subr.bf16.mxu0 0
  %735 = vmatpush2.bf16.msra.mxu0 %v551
  %736 = vmatprep.mubr.bf16.mxu0 %v290
  %737 = vmatmul.mubr.bf16.gmra.mxu0 %v289
  %v738 = vpop.f32.mrf.mxu0
  %v739 = vadd.f32 %v642, %v738
  %v740 = vpop.f32.mrf.mxu0
  %v741 = vpop.f32.mrf.mxu0
  %v742 = vadd.f32 %v645, %v741
  %v743 = vpop.f32.mrf.mxu0
  %744 = vmatprep.mubr.bf16.mxu0 %v295
  %745 = vmatmul.mubr.bf16.gmra.mxu0 %v294
  %v746 = vpop.f32.mrf.mxu0
  %v747 = vadd.f32 %v650, %v746
  %v748 = vpop.f32.mrf.mxu0
  %v749 = vpop.f32.mrf.mxu0
  %v750 = vadd.f32 %v653, %v749
  %v751 = vpop.f32.mrf.mxu0
  %752 = vmatprep.mubr.bf16.mxu0 %v300
  %753 = vmatmul.mubr.bf16.gmra.mxu0 %v299
  %v754 = vpop.f32.mrf.mxu0
  %v755 = vadd.f32 %v658, %v754
  %v756 = vpop.f32.mrf.mxu0
  %v757 = vpop.f32.mrf.mxu0
  %v758 = vadd.f32 %v661, %v757
  %v759 = vpop.f32.mrf.mxu0
  %760 = vmatprep.mubr.bf16.mxu0 %v305
  %761 = vmatmul.mubr.bf16.gmra.mxu0 %v304
  %v762 = vpop.f32.mrf.mxu0
  %v763 = vadd.f32 %v666, %v762
  %v764 = vpop.f32.mrf.mxu0
  %v765 = vpop.f32.mrf.mxu0
  %v766 = vadd.f32 %v669, %v765
  %v767 = vpop.f32.mrf.mxu0
  %768 = vmatprep.mubr.bf16.mxu0 %v310
  %769 = vmatmul.mubr.bf16.gmra.mxu0 %v309
  %v770 = vpop.f32.mrf.mxu0
  %v771 = vadd.f32 %v674, %v770
  %v772 = vpop.f32.mrf.mxu0
  %v773 = vpop.f32.mrf.mxu0
  %v774 = vadd.f32 %v677, %v773
  %v775 = vpop.f32.mrf.mxu0
  %776 = vmatprep.mubr.bf16.mxu0 %v315
  %777 = vmatmul.mubr.bf16.gmra.mxu0 %v314
  %v778 = vpop.f32.mrf.mxu0
  %v779 = vadd.f32 %v682, %v778
  %v780 = vpop.f32.mrf.mxu0
  %v781 = vpop.f32.mrf.mxu0
  %v782 = vadd.f32 %v685, %v781
  %v783 = vpop.f32.mrf.mxu0
  %784 = vmatprep.mubr.bf16.mxu0 %v320
  %785 = vmatmul.mubr.bf16.gmra.mxu0 %v319
  %v786 = vpop.f32.mrf.mxu0
  %v787 = vadd.f32 %v690, %v786
  %v788 = vpop.f32.mrf.mxu0
  %v789 = vpop.f32.mrf.mxu0
  %v790 = vadd.f32 %v693, %v789
  %v791 = vpop.f32.mrf.mxu0
  %792 = vmatprep.mubr.bf16.mxu0 %v325
  %793 = vmatmul.mubr.bf16.gmra.mxu0 %v324
  %v794 = vpop.f32.mrf.mxu0
  %v795 = vadd.f32 %v698, %v794
  %v796 = vpop.f32.mrf.mxu0
  %v797 = vpop.f32.mrf.mxu0
  %v798 = vadd.f32 %v701, %v797
  %v799 = vpop.f32.mrf.mxu0
  %800 = vdwg.mxu0
  %801 = vmatprep.subr.bf16.mxu0 0
  %802 = vmatpush1.bf16.msra.mxu0 %v566
  %803 = vmatprep.subr.bf16.mxu0 0
  %804 = vmatpush1.bf16.msra.mxu0 %v565
  %805 = vmatprep.subr.bf16.mxu0 0
  %806 = vmatpush1.bf16.msra.mxu0 %v564
  %807 = vmatprep.subr.bf16.mxu0 0
  %808 = vmatpush1.bf16.msra.mxu0 %v563
  %809 = vmatprep.subr.bf16.mxu0 0
  %810 = vmatpush1.bf16.msra.mxu0 %v562
  %811 = vmatprep.subr.bf16.mxu0 0
  %812 = vmatpush1.bf16.msra.mxu0 %v561
  %813 = vmatprep.subr.bf16.mxu0 0
  %814 = vmatpush1.bf16.msra.mxu0 %v560
  %815 = vmatprep.subr.bf16.mxu0 0
  %816 = vmatpush1.bf16.msra.mxu0 %v559
  %817 = vmatprep.subr.bf16.mxu0 0
  %818 = vmatpush2.bf16.msra.mxu0 0
  %819 = vmatprep.subr.bf16.mxu0 0
  %820 = vmatpush2.bf16.msra.mxu0 0
  %821 = vmatprep.subr.bf16.mxu0 0
  %822 = vmatpush2.bf16.msra.mxu0 0
  %823 = vmatprep.subr.bf16.mxu0 0
  %824 = vmatpush2.bf16.msra.mxu0 0
  %825 = vmatprep.subr.bf16.mxu0 0
  %826 = vmatpush2.bf16.msra.mxu0 0
  %827 = vmatprep.subr.bf16.mxu0 0
  %828 = vmatpush2.bf16.msra.mxu0 0
  %829 = vmatprep.subr.bf16.mxu0 0
  %830 = vmatpush2.bf16.msra.mxu0 0
  %831 = vmatprep.subr.bf16.mxu0 0
  %832 = vmatpush2.bf16.msra.mxu0 0
  %833 = vmatprep.mubr.bf16.mxu0 0
  %834 = vmatmul.mubr.bf16.gmra.mxu0 %v291
  %v835 = vpop.f32.mrf.mxu0
  %v836 = vadd.f32 %v739, %v835
  %v837 = vpop.f32.mrf.mxu0
  %v838 = vpop.f32.mrf.mxu0
  %v839 = vadd.f32 %v742, %v838
  %v840 = vpop.f32.mrf.mxu0
  %841 = vmatprep.mubr.bf16.mxu0 0
  %842 = vmatmul.mubr.bf16.gmra.mxu0 %v296
  %v843 = vpop.f32.mrf.mxu0
  %v844 = vadd.f32 %v747, %v843
  %v845 = vpop.f32.mrf.mxu0
  %v846 = vpop.f32.mrf.mxu0
  %v847 = vadd.f32 %v750, %v846
  %v848 = vpop.f32.mrf.mxu0
  %849 = vmatprep.mubr.bf16.mxu0 0
  %850 = vmatmul.mubr.bf16.gmra.mxu0 %v301
  %v851 = vpop.f32.mrf.mxu0
  %v852 = vadd.f32 %v755, %v851
  %v853 = vpop.f32.mrf.mxu0
  %v854 = vpop.f32.mrf.mxu0
  %v855 = vadd.f32 %v758, %v854
  %v856 = vpop.f32.mrf.mxu0
  %857 = vmatprep.mubr.bf16.mxu0 0
  %858 = vmatmul.mubr.bf16.gmra.mxu0 %v306
  %v859 = vpop.f32.mrf.mxu0
  %v860 = vadd.f32 %v763, %v859
  %v861 = vpop.f32.mrf.mxu0
  %v862 = vpop.f32.mrf.mxu0
  %v863 = vadd.f32 %v766, %v862
  %v864 = vpop.f32.mrf.mxu0
  %865 = vmatprep.mubr.bf16.mxu0 0
  %866 = vmatmul.mubr.bf16.gmra.mxu0 %v311
  %v867 = vpop.f32.mrf.mxu0
  %v868 = vadd.f32 %v771, %v867
  %v869 = vpop.f32.mrf.mxu0
  %v870 = vpop.f32.mrf.mxu0
  %v871 = vadd.f32 %v774, %v870
  %v872 = vpop.f32.mrf.mxu0
  %873 = vmatprep.mubr.bf16.mxu0 0
  %874 = vmatmul.mubr.bf16.gmra.mxu0 %v316
  %v875 = vpop.f32.mrf.mxu0
  %v876 = vadd.f32 %v779, %v875
  %v877 = vpop.f32.mrf.mxu0
  %v878 = vpop.f32.mrf.mxu0
  %v879 = vadd.f32 %v782, %v878
  %v880 = vpop.f32.mrf.mxu0
  %881 = vmatprep.mubr.bf16.mxu0 0
  %882 = vmatmul.mubr.bf16.gmra.mxu0 %v321
  %v883 = vpop.f32.mrf.mxu0
  %v884 = vadd.f32 %v787, %v883
  %v885 = vpop.f32.mrf.mxu0
  %v886 = vpop.f32.mrf.mxu0
  %v887 = vadd.f32 %v790, %v886
  %v888 = vpop.f32.mrf.mxu0
  %889 = vmatprep.mubr.bf16.mxu0 0
  %890 = vmatmul.mubr.bf16.gmra.mxu0 %v326
  %v891 = vpop.f32.mrf.mxu0
  %v892 = vadd.f32 %v795, %v891
  %v893 = vpop.f32.mrf.mxu0
  %v894 = vpop.f32.mrf.mxu0
  %v895 = vadd.f32 %v798, %v894
  %v896 = vpop.f32.mrf.mxu0
  %897 = vdwg.mxu0
  %v898 = vmax.f32 %v836, 0.0
  %v899 = vmax.f32 %v839, 0.0
  %v900 = vmax.f32 %v844, 0.0
  %v901 = vmax.f32 %v847, 0.0
  %v902 = vmax.f32 %v852, 0.0
  %v903 = vmax.f32 %v855, 0.0
  %v904 = vmax.f32 %v860, 0.0
  %v905 = vmax.f32 %v863, 0.0
  %v906 = vmax.f32 %v868, 0.0
  %v907 = vmax.f32 %v871, 0.0
  %v908 = vmax.f32 %v876, 0.0
  %v909 = vmax.f32 %v879, 0.0
  %v910 = vmax.f32 %v884, 0.0
  %v911 = vmax.f32 %v887, 0.0
  %v912 = vmax.f32 %v892, 0.0
  %v913 = vmax.f32 %v895, 0.0
  %v914 = vld [vmem:[%s3] sm:$0xf]
  %v915 = vld [vmem:[%s3 + $0x4] sm:$0xf]
  %v916 = vld [vmem:[%s3 + $0x8] sm:$0xf]
  %v917 = vld [vmem:[%s3 + $0xc] sm:$0xf]
  %v918 = vld [vmem:[%s3 + $0x10] sm:$0xf]
  %v919 = vld [vmem:[%s3 + $0x14] sm:$0xf]
  %v920 = vld [vmem:[%s3 + $0x18] sm:$0xf]
  %v921 = vld [vmem:[%s3 + $0x1c] sm:$0xf]
  %v922 = vld [vmem:[%s3 + $0x20] sm:$0xf]
  %v923 = vld [vmem:[%s3 + $0x24] sm:$0xf]
  %v924 = vld [vmem:[%s3 + $0x28] sm:$0xf]
  %v925 = vld [vmem:[%s3 + $0x2c] sm:$0xf]
  %v926 = vld [vmem:[%s3 + $0x30] sm:$0xf]
  %v927 = vld [vmem:[%s3 + $0x34] sm:$0xf]
  %v928 = vld [vmem:[%s3 + $0x38] sm:$0xf]
  %v929 = vld [vmem:[%s3 + $0x3c] sm:$0xf]
  %v930 = vunpack.c.l.bf16 %v914
  %v931 = vunpack.c.l.bf16 %v915
  %v932 = vunpack.c.l.bf16 %v916
  %v933 = vunpack.c.l.bf16 %v917
  %v934 = vunpack.c.l.bf16 %v918
  %v935 = vunpack.c.l.bf16 %v919
  %v936 = vunpack.c.l.bf16 %v920
  %v937 = vunpack.c.l.bf16 %v921
  %v938 = vunpack.c.l.bf16 %v922
  %v939 = vunpack.c.l.bf16 %v923
  %v940 = vunpack.c.l.bf16 %v924
  %v941 = vunpack.c.l.bf16 %v925
  %v942 = vunpack.c.l.bf16 %v926
  %v943 = vunpack.c.l.bf16 %v927
  %v944 = vunpack.c.l.bf16 %v928
  %v945 = vunpack.c.l.bf16 %v929
  %v946 = vadd.f32 %v898, %v930
  %v947 = vadd.f32 %v899, %v931
  %v948 = vadd.f32 %v900, %v932
  %v949 = vadd.f32 %v901, %v933
  %v950 = vadd.f32 %v902, %v934
  %v951 = vadd.f32 %v903, %v935
  %v952 = vadd.f32 %v904, %v936
  %v953 = vadd.f32 %v905, %v937
  %v954 = vadd.f32 %v906, %v938
  %v955 = vadd.f32 %v907, %v939
  %v956 = vadd.f32 %v908, %v940
  %v957 = vadd.f32 %v909, %v941
  %v958 = vadd.f32 %v910, %v942
  %v959 = vadd.f32 %v911, %v943
  %v960 = vadd.f32 %v912, %v944
  %v961 = vadd.f32 %v913, %v945
  %v962 = vadd.f32 %v946, %v947
  %v963 = vadd.f32 %v962, %v948
  %v964 = vadd.f32 %v963, %v949
  %v965 = vadd.f32 %v964, %v950
  %v966 = vadd.f32 %v965, %v951
  %v967 = vadd.f32 %v966, %v952
  %v968 = vadd.f32 %v967, %v953
  %v969 = vadd.f32 %v968, %v954
  %v970 = vadd.f32 %v969, %v955
  %v971 = vadd.f32 %v970, %v956
  %v972 = vadd.f32 %v971, %v957
  %v973 = vadd.f32 %v972, %v958
  %v974 = vadd.f32 %v973, %v959
  %v975 = vadd.f32 %v974, %v960
  %v976 = vadd.f32 %v975, %v961
  %v977 = vrot.slane %v976, 4
  %v978 = vadd.f32 %v976, %v977
  %v979 = vrot.slane %v978, 2
  %v980 = vadd.f32 %v978, %v979
  %v981 = vrot.slane %v980, 1
  %v982 = vadd.f32 %v980, %v981
  %v983 = vmul.f32 %v946, %v946
  %v984 = vmul.f32 %v947, %v947
  %v985 = vmul.f32 %v948, %v948
  %v986 = vmul.f32 %v949, %v949
  %v987 = vmul.f32 %v950, %v950
  %v988 = vmul.f32 %v951, %v951
  %v989 = vmul.f32 %v952, %v952
  %v990 = vmul.f32 %v953, %v953
  %v991 = vmul.f32 %v954, %v954
  %v992 = vmul.f32 %v955, %v955
  %v993 = vmul.f32 %v956, %v956
  %v994 = vmul.f32 %v957, %v957
  %v995 = vmul.f32 %v958, %v958
  %v996 = vmul.f32 %v959, %v959
  %v997 = vmul.f32 %v960, %v960
  %v998 = vmul.f32 %v961, %v961
  %v999 = vadd.f32 %v983, %v984
  %v1000 = vadd.f32 %v999, %v985
  %v1001 = vadd.f32 %v1000, %v986
  %v1002 = vadd.f32 %v1001, %v987
  %v1003 = vadd.f32 %v1002, %v988
  %v1004 = vadd.f32 %v1003, %v989
  %v1005 = vadd.f32 %v1004, %v990
  %v1006 = vadd.f32 %v1005, %v991
  %v1007 = vadd.f32 %v1006, %v992
  %v1008 = vadd.f32 %v1007, %v993
  %v1009 = vadd.f32 %v1008, %v994
  %v1010 = vadd.f32 %v1009, %v995
  %v1011 = vadd.f32 %v1010, %v996
  %v1012 = vadd.f32 %v1011, %v997
  %v1013 = vadd.f32 %v1012, %v998
  %v1014 = vrot.slane %v1013, 4
  %v1015 = vadd.f32 %v1013, %v1014
  %v1016 = vrot.slane %v1015, 2
  %v1017 = vadd.f32 %v1015, %v1016
  %v1018 = vrot.slane %v1017, 1
  %v1019 = vadd.f32 %v1017, %v1018
  %v1020 = vmul.f32 %v982, 0.0078125
  %v1021 = vmul.f32 %v1019, 0.0078125
  %v1022 = vmul.f32 %v1020, %v1020
  %v1023 = vsub.f32 %v1021, %v1022
  %v1024 = vmax.f32 %v1023, 0.0
  %v1025 = vld [vmem:[%s4] sm:$0x1]
  %v1026 = vadd.f32 %v1024, 1e-05
  %v1027 = vrsqrt.pop %v1026
  %v1028 = vmul.f32 %v1025, %v1027
  %v1029 = vld [vmem:[%s5] sm:$0x1]
  %v1030 = vmul.f32 %v1020, %v1028
  %v1031 = vsub.f32 %v1029, %v1030
  %v1033 = vlaneseq
  %v1034 = vshrl.u32 %v1033, 7
  %v1035 = vsub.s32 0, %v1034
  %v1036 = vrot.slane %v1028, %v1035
  %v1038 = vmul.f32 %v946, %v1036
  %v1039 = vmul.f32 %v947, %v1036
  %v1040 = vmul.f32 %v948, %v1036
  %v1041 = vmul.f32 %v949, %v1036
  %v1042 = vmul.f32 %v950, %v1036
  %v1043 = vmul.f32 %v951, %v1036
  %v1044 = vmul.f32 %v952, %v1036
  %v1045 = vmul.f32 %v953, %v1036
  %v1046 = vmul.f32 %v954, %v1036
  %v1047 = vmul.f32 %v955, %v1036
  %v1048 = vmul.f32 %v956, %v1036
  %v1049 = vmul.f32 %v957, %v1036
  %v1050 = vmul.f32 %v958, %v1036
  %v1051 = vmul.f32 %v959, %v1036
  %v1052 = vmul.f32 %v960, %v1036
  %v1053 = vmul.f32 %v961, %v1036
  %v1055 = vlaneseq
  %v1056 = vshrl.u32 %v1055, 7
  %v1057 = vsub.s32 0, %v1056
  %v1058 = vrot.slane %v1031, %v1057
  %v1060 = vadd.f32 %v1038, %v1058
  %v1061 = vadd.f32 %v1039, %v1058
  %v1062 = vadd.f32 %v1040, %v1058
  %v1063 = vadd.f32 %v1041, %v1058
  %v1064 = vadd.f32 %v1042, %v1058
  %v1065 = vadd.f32 %v1043, %v1058
  %v1066 = vadd.f32 %v1044, %v1058
  %v1067 = vadd.f32 %v1045, %v1058
  %v1068 = vadd.f32 %v1046, %v1058
  %v1069 = vadd.f32 %v1047, %v1058
  %v1070 = vadd.f32 %v1048, %v1058
  %v1071 = vadd.f32 %v1049, %v1058
  %v1072 = vadd.f32 %v1050, %v1058
  %v1073 = vadd.f32 %v1051, %v1058
  %v1074 = vadd.f32 %v1052, %v1058
  %v1075 = vadd.f32 %v1053, %v1058
  %v1076 = vpack.c.bf16 %v1061, %v1060
  %v1077 = vpack.c.bf16 %v1063, %v1062
  %v1078 = vpack.c.bf16 %v1065, %v1064
  %v1079 = vpack.c.bf16 %v1067, %v1066
  %v1080 = vpack.c.bf16 %v1069, %v1068
  %v1081 = vpack.c.bf16 %v1071, %v1070
  %v1082 = vpack.c.bf16 %v1073, %v1072
  %v1083 = vpack.c.bf16 %v1075, %v1074
  %v1092 = vunpack.c.l.b16 %v1076
  %v1093 = vunpack.c.h.b16 %v1076
  %v1094 = vunpack.c.l.b16 %v1077
  %v1095 = vunpack.c.h.b16 %v1077
  %v1096 = vunpack.c.l.b16 %v1078
  %v1097 = vunpack.c.h.b16 %v1078
  %v1098 = vunpack.c.l.b16 %v1079
  %v1099 = vunpack.c.h.b16 %v1079
  %v1100 = vunpack.c.l.b16 %v1080
  %v1101 = vunpack.c.h.b16 %v1080
  %v1102 = vunpack.c.l.b16 %v1081
  %v1103 = vunpack.c.h.b16 %v1081
  %v1104 = vunpack.c.l.b16 %v1082
  %v1105 = vunpack.c.h.b16 %v1082
  %v1106 = vunpack.c.l.b16 %v1083
  %v1107 = vunpack.c.h.b16 %v1083
  %v1108 = vpack.c.b16 %v1092, %v1092
  %v1109 = vpack.c.b16 %v1093, %v1093
  %v1110 = vpack.c.b16 %v1094, %v1094
  %v1111 = vpack.c.b16 %v1095, %v1095
  %v1112 = vpack.c.b16 %v1096, %v1096
  %v1113 = vpack.c.b16 %v1097, %v1097
  %v1114 = vpack.c.b16 %v1098, %v1098
  %v1115 = vpack.c.b16 %v1099, %v1099
  %v1116 = vpack.c.b16 %v1100, %v1100
  %v1117 = vpack.c.b16 %v1101, %v1101
  %v1118 = vpack.c.b16 %v1102, %v1102
  %v1119 = vpack.c.b16 %v1103, %v1103
  %v1120 = vpack.c.b16 %v1104, %v1104
  %v1121 = vpack.c.b16 %v1105, %v1105
  %v1122 = vpack.c.b16 %v1106, %v1106
  %v1123 = vpack.c.b16 %v1107, %v1107
  %1140 = vst [vmem:[%s6] sm:$0xf] %v1108
  %1141 = vst [vmem:[%s6 + $0x4] sm:$0xf] %v1109
  %1142 = vst [vmem:[%s6 + $0x8] sm:$0xf] %v1110
  %1143 = vst [vmem:[%s6 + $0xc] sm:$0xf] %v1111
  %1144 = vst [vmem:[%s6 + $0x10] sm:$0xf] %v1112
  %1145 = vst [vmem:[%s6 + $0x14] sm:$0xf] %v1113
  %1146 = vst [vmem:[%s6 + $0x18] sm:$0xf] %v1114
  %1147 = vst [vmem:[%s6 + $0x1c] sm:$0xf] %v1115
  %1148 = vst [vmem:[%s6 + $0x20] sm:$0xf] %v1116
  %1149 = vst [vmem:[%s6 + $0x24] sm:$0xf] %v1117
  %1150 = vst [vmem:[%s6 + $0x28] sm:$0xf] %v1118
  %1151 = vst [vmem:[%s6 + $0x2c] sm:$0xf] %v1119
  %1152 = vst [vmem:[%s6 + $0x30] sm:$0xf] %v1120
  %1153 = vst [vmem:[%s6 + $0x34] sm:$0xf] %v1121
  %1154 = vst [vmem:[%s6 + $0x38] sm:$0xf] %v1122
  %1155 = vst [vmem:[%s6 + $0x3c] sm:$0xf] %v1123
  // Predicated region
  $region26: #{fcn8s_forward.10} parent=0 // pred_check
    _
  $region27: #{fcn8s_forward.10} parent=0 // pred_check_branch
    %1157 = sbr.rel (0) target = $region29
  $region28: #{fcn8s_forward.10} parent=0 // pred_region
    _
  $region29: #{fcn8s_forward.10} parent=0 // pred_fallthru
    _
  // Predicated region
  $region30: #{fcn8s_forward.10} parent=0 // pred_check
    _
  $region31: #{fcn8s_forward.10} parent=0 // pred_check_branch
    %1159 = sbr.rel (0) target = $region33
  $region32: #{fcn8s_forward.10} parent=0 // pred_region
    _
  $region33: #{fcn8s_forward.10} parent=0 // pred_fallthru
    _

// kernel: fcn8s_forward.11
$region0: #{fcn8s_forward.11}
  #allocation0 [shape = 'u32[]', space=smem, size = 0x4, offset = 0x4, fixed_abs, tag = 'smem constant byte address 0x4 - core index']
  #allocation1 [shape = 'u32[144,128]{1,0:T(1,128)}', space=vmem, size = 0x12000, scoped, tag = 'internal scratch']
  %s0 = inlined_call_operand.vmem [shape: bf16[578,512], index: 0, kind: input, shape index: {}]
  %s1 = inlined_call_operand.vmem [shape: bf16[512,128], index: 1, kind: input, shape index: {}]
  %s2 = inlined_call_operand.vmem [shape: f32[1,128], index: 2, kind: input, shape index: {}]
  %s3 = inlined_call_operand.vmem [shape: f32[1,128], index: 3, kind: input, shape index: {}]
  %s4 = inlined_call_operand.vmem [shape: f32[1,128], index: 4, kind: input, shape index: {}]
  %s5 = inlined_call_operand.vmem [shape: bf16[128,128], index: 5, kind: input, shape index: {}]
  %s6 = inlined_call_operand.vmem [shape: f32[1,128], index: 6, kind: input, shape index: {}]
  %s7 = inlined_call_operand.vmem [shape: f32[578,128], index: 7, kind: output, shape index: {}]
  %s8 = sld [smem:[#allocation0]]
  $region38: #{fcn8s_forward.11} parent=0
    _
  %s10 = ssub.s32 1, %s8
  %s11 = scalar_select 0, %s10, %s8
  // Predicated region
  $region2: #{fcn8s_forward.11} parent=0 // pred_check
    _
  $region3: #{fcn8s_forward.11} parent=0 // pred_check_branch
    %13 = sbr.rel (0) target = $region5
  $region4: #{fcn8s_forward.11} parent=0 // pred_region
    _
  $region5: #{fcn8s_forward.11} parent=0 // pred_fallthru
    _
  // Predicated region
  $region6: #{fcn8s_forward.11} parent=0 // pred_check
    _
  $region7: #{fcn8s_forward.11} parent=0 // pred_check_branch
    %15 = sbr.rel (0) target = $region9
  $region8: #{fcn8s_forward.11} parent=0 // pred_region
    _
  $region9: #{fcn8s_forward.11} parent=0 // pred_fallthru
    _
  // Predicated region
  $region10: #{fcn8s_forward.11} parent=0 // pred_check
    _
  $region11: #{fcn8s_forward.11} parent=0 // pred_check_branch
    %17 = sbr.rel (0) target = $region13
  $region12: #{fcn8s_forward.11} parent=0 // pred_region
    _
  $region13: #{fcn8s_forward.11} parent=0 // pred_fallthru
    _
  // Predicated region
  $region14: #{fcn8s_forward.11} parent=0 // pred_check
    _
  $region15: #{fcn8s_forward.11} parent=0 // pred_check_branch
    %19 = sbr.rel (0) target = $region17
  $region16: #{fcn8s_forward.11} parent=0 // pred_region
    _
  $region17: #{fcn8s_forward.11} parent=0 // pred_fallthru
    _
  // Predicated region
  $region18: #{fcn8s_forward.11} parent=0 // pred_check
    _
  $region19: #{fcn8s_forward.11} parent=0 // pred_check_branch
    %21 = sbr.rel (0) target = $region21
  $region20: #{fcn8s_forward.11} parent=0 // pred_region
    _
  $region21: #{fcn8s_forward.11} parent=0 // pred_fallthru
    _
  // Predicated region
  $region22: #{fcn8s_forward.11} parent=0 // pred_check
    _
  $region23: #{fcn8s_forward.11} parent=0 // pred_check_branch
    %23 = sbr.rel (0) target = $region25
  $region24: #{fcn8s_forward.11} parent=0 // pred_region
    _
  $region25: #{fcn8s_forward.11} parent=0 // pred_fallthru
    _
  // Predicated region
  $region26: #{fcn8s_forward.11} parent=0 // pred_check
    _
  $region27: #{fcn8s_forward.11} parent=0 // pred_check_branch
    %25 = sbr.rel (0) target = $region29
  $region28: #{fcn8s_forward.11} parent=0 // pred_region
    _
  $region29: #{fcn8s_forward.11} parent=0 // pred_fallthru
    _
  %v27 = vld [vmem:[%s0] sm:$0xff]
  %v28 = vld [vmem:[%s0 + $0x8] sm:$0xff]
  %v29 = vld [vmem:[%s0 + $0x10] sm:$0xff]
  %v30 = vld [vmem:[%s0 + $0x18] sm:$0xff]
  %v31 = vld [vmem:[%s0 + $0x20] sm:$0xff]
  %v32 = vld [vmem:[%s0 + $0x28] sm:$0xff]
  %v33 = vld [vmem:[%s0 + $0x30] sm:$0xff]
  %v34 = vld [vmem:[%s0 + $0x38] sm:$0xff]
  %v35 = vld [vmem:[%s0 + $0x40] sm:$0xff]
  %v36 = vld [vmem:[%s0 + $0x48] sm:$0xff]
  %v37 = vld [vmem:[%s0 + $0x50] sm:$0xff]
  %v38 = vld [vmem:[%s0 + $0x58] sm:$0xff]
  %v39 = vld [vmem:[%s0 + $0x60] sm:$0xff]
  %v40 = vld [vmem:[%s0 + $0x68] sm:$0xff]
  %v41 = vld [vmem:[%s0 + $0x70] sm:$0xff]
  %v42 = vld [vmem:[%s0 + $0x78] sm:$0xff]
  %v43 = vld [vmem:[%s0 + $0x80] sm:$0xff]
  %v44 = vld [vmem:[%s0 + $0x88] sm:$0xff]
  %v45 = vld [vmem:[%s0 + $0x90] sm:$0xff]
  %v46 = vld [vmem:[%s0 + $0x98] sm:$0xff]
  %v47 = vld [vmem:[%s0 + $0xa0] sm:$0xff]
  %v48 = vld [vmem:[%s0 + $0xa8] sm:$0xff]
  %v49 = vld [vmem:[%s0 + $0xb0] sm:$0xff]
  %v50 = vld [vmem:[%s0 + $0xb8] sm:$0xff]
  %v51 = vld [vmem:[%s0 + $0xc0] sm:$0xff]
  %v52 = vld [vmem:[%s0 + $0xc8] sm:$0xff]
  %v53 = vld [vmem:[%s0 + $0xd0] sm:$0xff]
  %v54 = vld [vmem:[%s0 + $0xd8] sm:$0xff]
  %v55 = vld [vmem:[%s0 + $0xe0] sm:$0xff]
  %v56 = vld [vmem:[%s0 + $0xe8] sm:$0xff]
  %v57 = vld [vmem:[%s0 + $0xf0] sm:$0xff]
  %v58 = vld [vmem:[%s0 + $0xf8] sm:$0xff]
  %v59 = vld [vmem:[%s0 + $0x100] sm:$0xff]
  %v60 = vld [vmem:[%s0 + $0x108] sm:$0xff]
  %v61 = vld [vmem:[%s0 + $0x110] sm:$0xff]
  %v62 = vld [vmem:[%s0 + $0x118] sm:$0xff]
  %v63 = vld [vmem:[%s0 + $0x120] sm:$0xff]
  %v64 = vld [vmem:[%s0 + $0x128] sm:$0xff]
  %v65 = vld [vmem:[%s0 + $0x130] sm:$0xff]
  %v66 = vld [vmem:[%s0 + $0x138] sm:$0xff]
  %v67 = vld [vmem:[%s0 + $0x140] sm:$0xff]
  %v68 = vld [vmem:[%s0 + $0x148] sm:$0xff]
  %v69 = vld [vmem:[%s0 + $0x150] sm:$0xff]
  %v70 = vld [vmem:[%s0 + $0x158] sm:$0xff]
  %v71 = vld [vmem:[%s0 + $0x160] sm:$0xff]
  %v72 = vld [vmem:[%s0 + $0x168] sm:$0xff]
  %v73 = vld [vmem:[%s0 + $0x170] sm:$0xff]
  %v74 = vld [vmem:[%s0 + $0x178] sm:$0xff]
  %v75 = vld [vmem:[%s0 + $0x180] sm:$0xff]
  %v76 = vld [vmem:[%s0 + $0x188] sm:$0xff]
  %v77 = vld [vmem:[%s0 + $0x190] sm:$0xff]
  %v78 = vld [vmem:[%s0 + $0x198] sm:$0xff]
  %v79 = vld [vmem:[%s0 + $0x1a0] sm:$0xff]
  %v80 = vld [vmem:[%s0 + $0x1a8] sm:$0xff]
  %v81 = vld [vmem:[%s0 + $0x1b0] sm:$0xff]
  %v82 = vld [vmem:[%s0 + $0x1b8] sm:$0xff]
  %v83 = vld [vmem:[%s0 + $0x1c0] sm:$0xff]
  %v84 = vld [vmem:[%s0 + $0x1c8] sm:$0xff]
  %v85 = vld [vmem:[%s0 + $0x1d0] sm:$0xff]
  %v86 = vld [vmem:[%s0 + $0x1d8] sm:$0xff]
  %v87 = vld [vmem:[%s0 + $0x1e0] sm:$0xff]
  %v88 = vld [vmem:[%s0 + $0x1e8] sm:$0xff]
  %v89 = vld [vmem:[%s0 + $0x1f0] sm:$0xff]
  %v90 = vld [vmem:[%s0 + $0x1f8] sm:$0xff]
  %v91 = vld [vmem:[%s0 + $0x200] sm:$0xff]
  %v92 = vld [vmem:[%s0 + $0x208] sm:$0xff]
  %v93 = vld [vmem:[%s0 + $0x210] sm:$0xff]
  %v94 = vld [vmem:[%s0 + $0x218] sm:$0xff]
  %v95 = vld [vmem:[%s0 + $0x220] sm:$0xff]
  %v96 = vld [vmem:[%s0 + $0x228] sm:$0xff]
  %v97 = vld [vmem:[%s0 + $0x230] sm:$0xff]
  %v98 = vld [vmem:[%s0 + $0x238] sm:$0xff]
  %v99 = vld [vmem:[%s0 + $0x240] sm:$0xff]
  %v100 = vld [vmem:[%s0 + $0x248] sm:$0xff]
  %v101 = vld [vmem:[%s0 + $0x250] sm:$0xff]
  %v102 = vld [vmem:[%s0 + $0x258] sm:$0xff]
  %v103 = vld [vmem:[%s0 + $0x260] sm:$0xff]
  %v104 = vld [vmem:[%s0 + $0x268] sm:$0xff]
  %v105 = vld [vmem:[%s0 + $0x270] sm:$0xff]
  %v106 = vld [vmem:[%s0 + $0x278] sm:$0xff]
  %v107 = vld [vmem:[%s0 + $0x280] sm:$0xff]
  %v108 = vld [vmem:[%s0 + $0x288] sm:$0xff]
  %v109 = vld [vmem:[%s0 + $0x290] sm:$0xff]
  %v110 = vld [vmem:[%s0 + $0x298] sm:$0xff]
  %v111 = vld [vmem:[%s0 + $0x2a0] sm:$0xff]
  %v112 = vld [vmem:[%s0 + $0x2a8] sm:$0xff]
  %v113 = vld [vmem:[%s0 + $0x2b0] sm:$0xff]
  %v114 = vld [vmem:[%s0 + $0x2b8] sm:$0xff]
  %v115 = vld [vmem:[%s0 + $0x2c0] sm:$0xff]
  %v116 = vld [vmem:[%s0 + $0x2c8] sm:$0xff]
  %v117 = vld [vmem:[%s0 + $0x2d0] sm:$0xff]
  %v118 = vld [vmem:[%s0 + $0x2d8] sm:$0xff]
  %v119 = vld [vmem:[%s0 + $0x2e0] sm:$0xff]
  %v120 = vld [vmem:[%s0 + $0x2e8] sm:$0xff]
  %v121 = vld [vmem:[%s0 + $0x2f0] sm:$0xff]
  %v122 = vld [vmem:[%s0 + $0x2f8] sm:$0xff]
  %v123 = vld [vmem:[%s0 + $0x300] sm:$0xff]
  %v124 = vld [vmem:[%s0 + $0x308] sm:$0xff]
  %v125 = vld [vmem:[%s0 + $0x310] sm:$0xff]
  %v126 = vld [vmem:[%s0 + $0x318] sm:$0xff]
  %v127 = vld [vmem:[%s0 + $0x320] sm:$0xff]
  %v128 = vld [vmem:[%s0 + $0x328] sm:$0xff]
  %v129 = vld [vmem:[%s0 + $0x330] sm:$0xff]
  %v130 = vld [vmem:[%s0 + $0x338] sm:$0xff]
  %v131 = vld [vmem:[%s0 + $0x340] sm:$0xff]
  %v132 = vld [vmem:[%s0 + $0x348] sm:$0xff]
  %v133 = vld [vmem:[%s0 + $0x350] sm:$0xff]
  %v134 = vld [vmem:[%s0 + $0x358] sm:$0xff]
  %v135 = vld [vmem:[%s0 + $0x360] sm:$0xff]
  %v136 = vld [vmem:[%s0 + $0x368] sm:$0xff]
  %v137 = vld [vmem:[%s0 + $0x370] sm:$0xff]
  %v138 = vld [vmem:[%s0 + $0x378] sm:$0xff]
  %v139 = vld [vmem:[%s0 + $0x380] sm:$0xff]
  %v140 = vld [vmem:[%s0 + $0x388] sm:$0xff]
  %v141 = vld [vmem:[%s0 + $0x390] sm:$0xff]
  %v142 = vld [vmem:[%s0 + $0x398] sm:$0xff]
  %v143 = vld [vmem:[%s0 + $0x3a0] sm:$0xff]
  %v144 = vld [vmem:[%s0 + $0x3a8] sm:$0xff]
  %v145 = vld [vmem:[%s0 + $0x3b0] sm:$0xff]
  %v146 = vld [vmem:[%s0 + $0x3b8] sm:$0xff]
  %v147 = vld [vmem:[%s0 + $0x3c0] sm:$0xff]
  %v148 = vld [vmem:[%s0 + $0x3c8] sm:$0xff]
  %v149 = vld [vmem:[%s0 + $0x3d0] sm:$0xff]
  %v150 = vld [vmem:[%s0 + $0x3d8] sm:$0xff]
  %v151 = vld [vmem:[%s0 + $0x3e0] sm:$0xff]
  %v152 = vld [vmem:[%s0 + $0x3e8] sm:$0xff]
  %v153 = vld [vmem:[%s0 + $0x3f0] sm:$0xff]
  %v154 = vld [vmem:[%s0 + $0x3f8] sm:$0xff]
  %v155 = vld [vmem:[%s0 + $0x400] sm:$0xff]
  %v156 = vld [vmem:[%s0 + $0x408] sm:$0xff]
  %v157 = vld [vmem:[%s0 + $0x410] sm:$0xff]
  %v158 = vld [vmem:[%s0 + $0x418] sm:$0xff]
  %v159 = vld [vmem:[%s0 + $0x420] sm:$0xff]
  %v160 = vld [vmem:[%s0 + $0x428] sm:$0xff]
  %v161 = vld [vmem:[%s0 + $0x430] sm:$0xff]
  %v162 = vld [vmem:[%s0 + $0x438] sm:$0xff]
  %v163 = vld [vmem:[%s0 + $0x440] sm:$0xff]
  %v164 = vld [vmem:[%s0 + $0x448] sm:$0xff]
  %v165 = vld [vmem:[%s0 + $0x450] sm:$0xff]
  %v166 = vld [vmem:[%s0 + $0x458] sm:$0xff]
  %v167 = vld [vmem:[%s0 + $0x460] sm:$0xff]
  %v168 = vld [vmem:[%s0 + $0x468] sm:$0xff]
  %v169 = vld [vmem:[%s0 + $0x470] sm:$0xff]
  %v170 = vld [vmem:[%s0 + $0x478] sm:$0xff]
  %v171 = vld [vmem:[%s0 + $0x480] sm:$0x11]
  %v172 = vld [vmem:[%s0 + $0x488] sm:$0x11]
  %v173 = vld [vmem:[%s1] sm:$0xf]
  %v174 = vld [vmem:[%s1 + $0x4] sm:$0xf]
  %v175 = vld [vmem:[%s1 + $0x8] sm:$0xf]
  %v176 = vld [vmem:[%s1 + $0xc] sm:$0xf]
  %v177 = vld [vmem:[%s1 + $0x10] sm:$0xf]
  %v178 = vld [vmem:[%s1 + $0x14] sm:$0xf]
  %v179 = vld [vmem:[%s1 + $0x18] sm:$0xf]
  %v180 = vld [vmem:[%s1 + $0x1c] sm:$0xf]
  %v181 = vld [vmem:[%s1 + $0x20] sm:$0xf]
  %v182 = vld [vmem:[%s1 + $0x24] sm:$0xf]
  %v183 = vld [vmem:[%s1 + $0x28] sm:$0xf]
  %v184 = vld [vmem:[%s1 + $0x2c] sm:$0xf]
  %v185 = vld [vmem:[%s1 + $0x30] sm:$0xf]
  %v186 = vld [vmem:[%s1 + $0x34] sm:$0xf]
  %v187 = vld [vmem:[%s1 + $0x38] sm:$0xf]
  %v188 = vld [vmem:[%s1 + $0x3c] sm:$0xf]
  %v189 = vld [vmem:[%s1 + $0x40] sm:$0xf]
  %v190 = vld [vmem:[%s1 + $0x44] sm:$0xf]
  %v191 = vld [vmem:[%s1 + $0x48] sm:$0xf]
  %v192 = vld [vmem:[%s1 + $0x4c] sm:$0xf]
  %v193 = vld [vmem:[%s1 + $0x50] sm:$0xf]
  %v194 = vld [vmem:[%s1 + $0x54] sm:$0xf]
  %v195 = vld [vmem:[%s1 + $0x58] sm:$0xf]
  %v196 = vld [vmem:[%s1 + $0x5c] sm:$0xf]
  %v197 = vld [vmem:[%s1 + $0x60] sm:$0xf]
  %v198 = vld [vmem:[%s1 + $0x64] sm:$0xf]
  %v199 = vld [vmem:[%s1 + $0x68] sm:$0xf]
  %v200 = vld [vmem:[%s1 + $0x6c] sm:$0xf]
  %v201 = vld [vmem:[%s1 + $0x70] sm:$0xf]
  %v202 = vld [vmem:[%s1 + $0x74] sm:$0xf]
  %v203 = vld [vmem:[%s1 + $0x78] sm:$0xf]
  %v204 = vld [vmem:[%s1 + $0x7c] sm:$0xf]
  %v205 = vld [vmem:[%s1 + $0x80] sm:$0xf]
  %v206 = vld [vmem:[%s1 + $0x84] sm:$0xf]
  %v207 = vld [vmem:[%s1 + $0x88] sm:$0xf]
  %v208 = vld [vmem:[%s1 + $0x8c] sm:$0xf]
  %v209 = vld [vmem:[%s1 + $0x90] sm:$0xf]
  %v210 = vld [vmem:[%s1 + $0x94] sm:$0xf]
  %v211 = vld [vmem:[%s1 + $0x98] sm:$0xf]
  %v212 = vld [vmem:[%s1 + $0x9c] sm:$0xf]
  %v213 = vld [vmem:[%s1 + $0xa0] sm:$0xf]
  %v214 = vld [vmem:[%s1 + $0xa4] sm:$0xf]
  %v215 = vld [vmem:[%s1 + $0xa8] sm:$0xf]
  %v216 = vld [vmem:[%s1 + $0xac] sm:$0xf]
  %v217 = vld [vmem:[%s1 + $0xb0] sm:$0xf]
  %v218 = vld [vmem:[%s1 + $0xb4] sm:$0xf]
  %v219 = vld [vmem:[%s1 + $0xb8] sm:$0xf]
  %v220 = vld [vmem:[%s1 + $0xbc] sm:$0xf]
  %v221 = vld [vmem:[%s1 + $0xc0] sm:$0xf]
  %v222 = vld [vmem:[%s1 + $0xc4] sm:$0xf]
  %v223 = vld [vmem:[%s1 + $0xc8] sm:$0xf]
  %v224 = vld [vmem:[%s1 + $0xcc] sm:$0xf]
  %v225 = vld [vmem:[%s1 + $0xd0] sm:$0xf]
  %v226 = vld [vmem:[%s1 + $0xd4] sm:$0xf]
  %v227 = vld [vmem:[%s1 + $0xd8] sm:$0xf]
  %v228 = vld [vmem:[%s1 + $0xdc] sm:$0xf]
  %v229 = vld [vmem:[%s1 + $0xe0] sm:$0xf]
  %v230 = vld [vmem:[%s1 + $0xe4] sm:$0xf]
  %v231 = vld [vmem:[%s1 + $0xe8] sm:$0xf]
  %v232 = vld [vmem:[%s1 + $0xec] sm:$0xf]
  %v233 = vld [vmem:[%s1 + $0xf0] sm:$0xf]
  %v234 = vld [vmem:[%s1 + $0xf4] sm:$0xf]
  %v235 = vld [vmem:[%s1 + $0xf8] sm:$0xf]
  %v236 = vld [vmem:[%s1 + $0xfc] sm:$0xf]
  %v237 = vld [vmem:[%s2] sm:$0x1]
  %v239 = vlaneseq
  %v240 = vshrl.u32 %v239, 7
  %v241 = vsub.s32 0, %v240
  %v242 = vrot.slane %v237, %v241
  %v390 = vunpack.c.l.b16 %v27
  %v391 = vunpack.c.h.b16 %v27
  %v392 = vunpack.c.l.b16 %v28
  %v393 = vunpack.c.h.b16 %v28
  %v394 = vunpack.c.l.b16 %v29
  %v395 = vunpack.c.h.b16 %v29
  %v396 = vunpack.c.l.b16 %v30
  %v397 = vunpack.c.h.b16 %v30
  %v398 = vunpack.c.l.b16 %v31
  %v399 = vunpack.c.h.b16 %v31
  %v400 = vunpack.c.l.b16 %v32
  %v401 = vunpack.c.h.b16 %v32
  %v402 = vunpack.c.l.b16 %v33
  %v403 = vunpack.c.h.b16 %v33
  %v404 = vunpack.c.l.b16 %v34
  %v405 = vunpack.c.h.b16 %v34
  %v406 = vunpack.c.l.b16 %v35
  %v407 = vunpack.c.h.b16 %v35
  %v408 = vunpack.c.l.b16 %v36
  %v409 = vunpack.c.h.b16 %v36
  %v410 = vunpack.c.l.b16 %v37
  %v411 = vunpack.c.h.b16 %v37
  %v412 = vunpack.c.l.b16 %v38
  %v413 = vunpack.c.h.b16 %v38
  %v414 = vunpack.c.l.b16 %v39
  %v415 = vunpack.c.h.b16 %v39
  %v416 = vunpack.c.l.b16 %v40
  %v417 = vunpack.c.h.b16 %v40
  %v418 = vunpack.c.l.b16 %v41
  %v419 = vunpack.c.h.b16 %v41
  %v420 = vunpack.c.l.b16 %v42
  %v421 = vunpack.c.h.b16 %v42
  %v422 = vunpack.c.l.b16 %v43
  %v423 = vunpack.c.h.b16 %v43
  %v424 = vunpack.c.l.b16 %v44
  %v425 = vunpack.c.h.b16 %v44
  %v426 = vunpack.c.l.b16 %v45
  %v427 = vunpack.c.h.b16 %v45
  %v428 = vunpack.c.l.b16 %v46
  %v429 = vunpack.c.h.b16 %v46
  %v430 = vunpack.c.l.b16 %v47
  %v431 = vunpack.c.h.b16 %v47
  %v432 = vunpack.c.l.b16 %v48
  %v433 = vunpack.c.h.b16 %v48
  %v434 = vunpack.c.l.b16 %v49
  %v435 = vunpack.c.h.b16 %v49
  %v436 = vunpack.c.l.b16 %v50
  %v437 = vunpack.c.h.b16 %v50
  %v438 = vunpack.c.l.b16 %v51
  %v439 = vunpack.c.h.b16 %v51
  %v440 = vunpack.c.l.b16 %v52
  %v441 = vunpack.c.h.b16 %v52
  %v442 = vunpack.c.l.b16 %v53
  %v443 = vunpack.c.h.b16 %v53
  %v444 = vunpack.c.l.b16 %v54
  %v445 = vunpack.c.h.b16 %v54
  %v446 = vunpack.c.l.b16 %v55
  %v447 = vunpack.c.h.b16 %v55
  %v448 = vunpack.c.l.b16 %v56
  %v449 = vunpack.c.h.b16 %v56
  %v450 = vunpack.c.l.b16 %v57
  %v451 = vunpack.c.h.b16 %v57
  %v452 = vunpack.c.l.b16 %v58
  %v453 = vunpack.c.h.b16 %v58
  %v454 = vunpack.c.l.b16 %v59
  %v455 = vunpack.c.h.b16 %v59
  %v456 = vunpack.c.l.b16 %v60
  %v457 = vunpack.c.h.b16 %v60
  %v458 = vunpack.c.l.b16 %v61
  %v459 = vunpack.c.h.b16 %v61
  %v460 = vunpack.c.l.b16 %v62
  %v461 = vunpack.c.h.b16 %v62
  %v462 = vunpack.c.l.b16 %v63
  %v463 = vunpack.c.h.b16 %v63
  %v464 = vunpack.c.l.b16 %v64
  %v465 = vunpack.c.h.b16 %v64
  %v466 = vunpack.c.l.b16 %v65
  %v467 = vunpack.c.h.b16 %v65
  %v468 = vunpack.c.l.b16 %v66
  %v469 = vunpack.c.h.b16 %v66
  %v470 = vunpack.c.l.b16 %v67
  %v471 = vunpack.c.h.b16 %v67
  %v472 = vunpack.c.l.b16 %v68
  %v473 = vunpack.c.h.b16 %v68
  %v474 = vunpack.c.l.b16 %v69
  %v475 = vunpack.c.h.b16 %v69
  %v476 = vunpack.c.l.b16 %v70
  %v477 = vunpack.c.h.b16 %v70
  %v478 = vunpack.c.l.b16 %v71
  %v479 = vunpack.c.h.b16 %v71
  %v480 = vunpack.c.l.b16 %v72
  %v481 = vunpack.c.h.b16 %v72
  %v482 = vunpack.c.l.b16 %v73
  %v483 = vunpack.c.h.b16 %v73
  %v484 = vunpack.c.l.b16 %v74
  %v485 = vunpack.c.h.b16 %v74
  %v486 = vunpack.c.l.b16 %v75
  %v487 = vunpack.c.h.b16 %v75
  %v488 = vunpack.c.l.b16 %v76
  %v489 = vunpack.c.h.b16 %v76
  %v490 = vunpack.c.l.b16 %v77
  %v491 = vunpack.c.h.b16 %v77
  %v492 = vunpack.c.l.b16 %v78
  %v493 = vunpack.c.h.b16 %v78
  %v494 = vunpack.c.l.b16 %v79
  %v495 = vunpack.c.h.b16 %v79
  %v496 = vunpack.c.l.b16 %v80
  %v497 = vunpack.c.h.b16 %v80
  %v498 = vunpack.c.l.b16 %v81
  %v499 = vunpack.c.h.b16 %v81
  %v500 = vunpack.c.l.b16 %v82
  %v501 = vunpack.c.h.b16 %v82
  %v502 = vunpack.c.l.b16 %v83
  %v503 = vunpack.c.h.b16 %v83
  %v504 = vunpack.c.l.b16 %v84
  %v505 = vunpack.c.h.b16 %v84
  %v506 = vunpack.c.l.b16 %v85
  %v507 = vunpack.c.h.b16 %v85
  %v508 = vunpack.c.l.b16 %v86
  %v509 = vunpack.c.h.b16 %v86
  %v510 = vunpack.c.l.b16 %v87
  %v511 = vunpack.c.h.b16 %v87
  %v512 = vunpack.c.l.b16 %v88
  %v513 = vunpack.c.h.b16 %v88
  %v514 = vunpack.c.l.b16 %v89
  %v515 = vunpack.c.h.b16 %v89
  %v516 = vunpack.c.l.b16 %v90
  %v517 = vunpack.c.h.b16 %v90
  %v518 = vunpack.c.l.b16 %v91
  %v519 = vunpack.c.h.b16 %v91
  %v520 = vunpack.c.l.b16 %v92
  %v521 = vunpack.c.h.b16 %v92
  %v522 = vunpack.c.l.b16 %v93
  %v523 = vunpack.c.h.b16 %v93
  %v524 = vunpack.c.l.b16 %v94
  %v525 = vunpack.c.h.b16 %v94
  %v526 = vunpack.c.l.b16 %v95
  %v527 = vunpack.c.h.b16 %v95
  %v528 = vunpack.c.l.b16 %v96
  %v529 = vunpack.c.h.b16 %v96
  %v530 = vunpack.c.l.b16 %v97
  %v531 = vunpack.c.h.b16 %v97
  %v532 = vunpack.c.l.b16 %v98
  %v533 = vunpack.c.h.b16 %v98
  %v534 = vunpack.c.l.b16 %v99
  %v535 = vunpack.c.h.b16 %v99
  %v536 = vunpack.c.l.b16 %v100
  %v537 = vunpack.c.h.b16 %v100
  %v538 = vunpack.c.l.b16 %v101
  %v539 = vunpack.c.h.b16 %v101
  %v540 = vunpack.c.l.b16 %v102
  %v541 = vunpack.c.h.b16 %v102
  %v542 = vunpack.c.l.b16 %v103
  %v543 = vunpack.c.h.b16 %v103
  %v544 = vunpack.c.l.b16 %v104
  %v545 = vunpack.c.h.b16 %v104
  %v546 = vunpack.c.l.b16 %v105
  %v547 = vunpack.c.h.b16 %v105
  %v548 = vunpack.c.l.b16 %v106
  %v549 = vunpack.c.h.b16 %v106
  %v550 = vunpack.c.l.b16 %v107
  %v551 = vunpack.c.h.b16 %v107
  %v552 = vunpack.c.l.b16 %v108
  %v553 = vunpack.c.h.b16 %v108
  %v554 = vunpack.c.l.b16 %v109
  %v555 = vunpack.c.h.b16 %v109
  %v556 = vunpack.c.l.b16 %v110
  %v557 = vunpack.c.h.b16 %v110
  %v558 = vunpack.c.l.b16 %v111
  %v559 = vunpack.c.h.b16 %v111
  %v560 = vunpack.c.l.b16 %v112
  %v561 = vunpack.c.h.b16 %v112
  %v562 = vunpack.c.l.b16 %v113
  %v563 = vunpack.c.h.b16 %v113
  %v564 = vunpack.c.l.b16 %v114
  %v565 = vunpack.c.h.b16 %v114
  %v566 = vunpack.c.l.b16 %v115
  %v567 = vunpack.c.h.b16 %v115
  %v568 = vunpack.c.l.b16 %v116
  %v569 = vunpack.c.h.b16 %v116
  %v570 = vunpack.c.l.b16 %v117
  %v571 = vunpack.c.h.b16 %v117
  %v572 = vunpack.c.l.b16 %v118
  %v573 = vunpack.c.h.b16 %v118
  %v574 = vunpack.c.l.b16 %v119
  %v575 = vunpack.c.h.b16 %v119
  %v576 = vunpack.c.l.b16 %v120
  %v577 = vunpack.c.h.b16 %v120
  %v578 = vunpack.c.l.b16 %v121
  %v579 = vunpack.c.h.b16 %v121
  %v580 = vunpack.c.l.b16 %v122
  %v581 = vunpack.c.h.b16 %v122
  %v582 = vunpack.c.l.b16 %v123
  %v583 = vunpack.c.h.b16 %v123
  %v584 = vunpack.c.l.b16 %v124
  %v585 = vunpack.c.h.b16 %v124
  %v586 = vunpack.c.l.b16 %v125
  %v587 = vunpack.c.h.b16 %v125
  %v588 = vunpack.c.l.b16 %v126
  %v589 = vunpack.c.h.b16 %v126
  %v590 = vunpack.c.l.b16 %v127
  %v591 = vunpack.c.h.b16 %v127
  %v592 = vunpack.c.l.b16 %v128
  %v593 = vunpack.c.h.b16 %v128
  %v594 = vunpack.c.l.b16 %v129
  %v595 = vunpack.c.h.b16 %v129
  %v596 = vunpack.c.l.b16 %v130
  %v597 = vunpack.c.h.b16 %v130
  %v598 = vunpack.c.l.b16 %v131
  %v599 = vunpack.c.h.b16 %v131
  %v600 = vunpack.c.l.b16 %v132
  %v601 = vunpack.c.h.b16 %v132
  %v602 = vunpack.c.l.b16 %v133
  %v603 = vunpack.c.h.b16 %v133
  %v604 = vunpack.c.l.b16 %v134
  %v605 = vunpack.c.h.b16 %v134
  %v606 = vunpack.c.l.b16 %v135
  %v607 = vunpack.c.h.b16 %v135
  %v608 = vunpack.c.l.b16 %v136
  %v609 = vunpack.c.h.b16 %v136
  %v610 = vunpack.c.l.b16 %v137
  %v611 = vunpack.c.h.b16 %v137
  %v612 = vunpack.c.l.b16 %v138
  %v613 = vunpack.c.h.b16 %v138
  %v614 = vunpack.c.l.b16 %v139
  %v615 = vunpack.c.h.b16 %v139
  %v616 = vunpack.c.l.b16 %v140
  %v617 = vunpack.c.h.b16 %v140
  %v618 = vunpack.c.l.b16 %v141
  %v619 = vunpack.c.h.b16 %v141
  %v620 = vunpack.c.l.b16 %v142
  %v621 = vunpack.c.h.b16 %v142
  %v622 = vunpack.c.l.b16 %v143
  %v623 = vunpack.c.h.b16 %v143
  %v624 = vunpack.c.l.b16 %v144
  %v625 = vunpack.c.h.b16 %v144
  %v626 = vunpack.c.l.b16 %v145
  %v627 = vunpack.c.h.b16 %v145
  %v628 = vunpack.c.l.b16 %v146
  %v629 = vunpack.c.h.b16 %v146
  %v630 = vunpack.c.l.b16 %v147
  %v631 = vunpack.c.h.b16 %v147
  %v632 = vunpack.c.l.b16 %v148
  %v633 = vunpack.c.h.b16 %v148
  %v634 = vunpack.c.l.b16 %v149
  %v635 = vunpack.c.h.b16 %v149
  %v636 = vunpack.c.l.b16 %v150
  %v637 = vunpack.c.h.b16 %v150
  %v638 = vunpack.c.l.b16 %v151
  %v639 = vunpack.c.h.b16 %v151
  %v640 = vunpack.c.l.b16 %v152
  %v641 = vunpack.c.h.b16 %v152
  %v642 = vunpack.c.l.b16 %v153
  %v643 = vunpack.c.h.b16 %v153
  %v644 = vunpack.c.l.b16 %v154
  %v645 = vunpack.c.h.b16 %v154
  %v646 = vunpack.c.l.b16 %v155
  %v647 = vunpack.c.h.b16 %v155
  %v648 = vunpack.c.l.b16 %v156
  %v649 = vunpack.c.h.b16 %v156
  %v650 = vunpack.c.l.b16 %v157
  %v651 = vunpack.c.h.b16 %v157
  %v652 = vunpack.c.l.b16 %v158
  %v653 = vunpack.c.h.b16 %v158
  %v654 = vunpack.c.l.b16 %v159
  %v655 = vunpack.c.h.b16 %v159
  %v656 = vunpack.c.l.b16 %v160
  %v657 = vunpack.c.h.b16 %v160
  %v658 = vunpack.c.l.b16 %v161
  %v659 = vunpack.c.h.b16 %v161
  %v660 = vunpack.c.l.b16 %v162
  %v661 = vunpack.c.h.b16 %v162
  %v662 = vunpack.c.l.b16 %v163
  %v663 = vunpack.c.h.b16 %v163
  %v664 = vunpack.c.l.b16 %v164
  %v665 = vunpack.c.h.b16 %v164
  %v666 = vunpack.c.l.b16 %v165
  %v667 = vunpack.c.h.b16 %v165
  %v668 = vunpack.c.l.b16 %v166
  %v669 = vunpack.c.h.b16 %v166
  %v670 = vunpack.c.l.b16 %v167
  %v671 = vunpack.c.h.b16 %v167
  %v672 = vunpack.c.l.b16 %v168
  %v673 = vunpack.c.h.b16 %v168
  %v674 = vunpack.c.l.b16 %v169
  %v675 = vunpack.c.h.b16 %v169
  %v676 = vunpack.c.l.b16 %v170
  %v677 = vunpack.c.h.b16 %v170
  %v678 = vunpack.c.l.b16 %v171
  %v679 = vunpack.c.h.b16 %v171
  %v680 = vunpack.c.l.b16 %v172
  %v681 = vunpack.c.h.b16 %v172
  %v682 = vpack.c.b16 %v394, %v390
  %v683 = vpack.c.b16 %v395, %v391
  %v684 = vpack.c.b16 %v396, %v392
  %v685 = vpack.c.b16 %v397, %v393
  %v686 = vpack.c.b16 %v402, %v398
  %v687 = vpack.c.b16 %v403, %v399
  %v688 = vpack.c.b16 %v404, %v400
  %v689 = vpack.c.b16 %v405, %v401
  %v690 = vpack.c.b16 %v410, %v406
  %v691 = vpack.c.b16 %v411, %v407
  %v692 = vpack.c.b16 %v412, %v408
  %v693 = vpack.c.b16 %v413, %v409
  %v694 = vpack.c.b16 %v418, %v414
  %v695 = vpack.c.b16 %v419, %v415
  %v696 = vpack.c.b16 %v420, %v416
  %v697 = vpack.c.b16 %v421, %v417
  %v698 = vpack.c.b16 %v426, %v422
  %v699 = vpack.c.b16 %v427, %v423
  %v700 = vpack.c.b16 %v428, %v424
  %v701 = vpack.c.b16 %v429, %v425
  %v702 = vpack.c.b16 %v434, %v430
  %v703 = vpack.c.b16 %v435, %v431
  %v704 = vpack.c.b16 %v436, %v432
  %v705 = vpack.c.b16 %v437, %v433
  %v706 = vpack.c.b16 %v442, %v438
  %v707 = vpack.c.b16 %v443, %v439
  %v708 = vpack.c.b16 %v444, %v440
  %v709 = vpack.c.b16 %v445, %v441
  %v710 = vpack.c.b16 %v450, %v446
  %v711 = vpack.c.b16 %v451, %v447
  %v712 = vpack.c.b16 %v452, %v448
  %v713 = vpack.c.b16 %v453, %v449
  %v714 = vpack.c.b16 %v458, %v454
  %v715 = vpack.c.b16 %v459, %v455
  %v716 = vpack.c.b16 %v460, %v456
  %v717 = vpack.c.b16 %v461, %v457
  %v718 = vpack.c.b16 %v466, %v462
  %v719 = vpack.c.b16 %v467, %v463
  %v720 = vpack.c.b16 %v468, %v464
  %v721 = vpack.c.b16 %v469, %v465
  %v722 = vpack.c.b16 %v474, %v470
  %v723 = vpack.c.b16 %v475, %v471
  %v724 = vpack.c.b16 %v476, %v472
  %v725 = vpack.c.b16 %v477, %v473
  %v726 = vpack.c.b16 %v482, %v478
  %v727 = vpack.c.b16 %v483, %v479
  %v728 = vpack.c.b16 %v484, %v480
  %v729 = vpack.c.b16 %v485, %v481
  %v730 = vpack.c.b16 %v490, %v486
  %v731 = vpack.c.b16 %v491, %v487
  %v732 = vpack.c.b16 %v492, %v488
  %v733 = vpack.c.b16 %v493, %v489
  %v734 = vpack.c.b16 %v498, %v494
  %v735 = vpack.c.b16 %v499, %v495
  %v736 = vpack.c.b16 %v500, %v496
  %v737 = vpack.c.b16 %v501, %v497
  %v738 = vpack.c.b16 %v506, %v502
  %v739 = vpack.c.b16 %v507, %v503
  %v740 = vpack.c.b16 %v508, %v504
  %v741 = vpack.c.b16 %v509, %v505
  %v742 = vpack.c.b16 %v514, %v510
  %v743 = vpack.c.b16 %v515, %v511
  %v744 = vpack.c.b16 %v516, %v512
  %v745 = vpack.c.b16 %v517, %v513
  %v746 = vpack.c.b16 %v522, %v518
  %v747 = vpack.c.b16 %v523, %v519
  %v748 = vpack.c.b16 %v524, %v520
  %v749 = vpack.c.b16 %v525, %v521
  %v750 = vpack.c.b16 %v530, %v526
  %v751 = vpack.c.b16 %v531, %v527
  %v752 = vpack.c.b16 %v532, %v528
  %v753 = vpack.c.b16 %v533, %v529
  %v754 = vpack.c.b16 %v538, %v534
  %v755 = vpack.c.b16 %v539, %v535
  %v756 = vpack.c.b16 %v540, %v536
  %v757 = vpack.c.b16 %v541, %v537
  %v758 = vpack.c.b16 %v546, %v542
  %v759 = vpack.c.b16 %v547, %v543
  %v760 = vpack.c.b16 %v548, %v544
  %v761 = vpack.c.b16 %v549, %v545
  %v762 = vpack.c.b16 %v554, %v550
  %v763 = vpack.c.b16 %v555, %v551
  %v764 = vpack.c.b16 %v556, %v552
  %v765 = vpack.c.b16 %v557, %v553
  %v766 = vpack.c.b16 %v562, %v558
  %v767 = vpack.c.b16 %v563, %v559
  %v768 = vpack.c.b16 %v564, %v560
  %v769 = vpack.c.b16 %v565, %v561
  %v770 = vpack.c.b16 %v570, %v566
  %v771 = vpack.c.b16 %v571, %v567
  %v772 = vpack.c.b16 %v572, %v568
  %v773 = vpack.c.b16 %v573, %v569
  %v774 = vpack.c.b16 %v578, %v574
  %v775 = vpack.c.b16 %v579, %v575
  %v776 = vpack.c.b16 %v580, %v576
  %v777 = vpack.c.b16 %v581, %v577
  %v778 = vpack.c.b16 %v586, %v582
  %v779 = vpack.c.b16 %v587, %v583
  %v780 = vpack.c.b16 %v588, %v584
  %v781 = vpack.c.b16 %v589, %v585
  %v782 = vpack.c.b16 %v594, %v590
  %v783 = vpack.c.b16 %v595, %v591
  %v784 = vpack.c.b16 %v596, %v592
  %v785 = vpack.c.b16 %v597, %v593
  %v786 = vpack.c.b16 %v602, %v598
  %v787 = vpack.c.b16 %v603, %v599
  %v788 = vpack.c.b16 %v604, %v600
  %v789 = vpack.c.b16 %v605, %v601
  %v790 = vpack.c.b16 %v610, %v606
  %v791 = vpack.c.b16 %v611, %v607
  %v792 = vpack.c.b16 %v612, %v608
  %v793 = vpack.c.b16 %v613, %v609
  %v794 = vpack.c.b16 %v618, %v614
  %v795 = vpack.c.b16 %v619, %v615
  %v796 = vpack.c.b16 %v620, %v616
  %v797 = vpack.c.b16 %v621, %v617
  %v798 = vpack.c.b16 %v626, %v622
  %v799 = vpack.c.b16 %v627, %v623
  %v800 = vpack.c.b16 %v628, %v624
  %v801 = vpack.c.b16 %v629, %v625
  %v802 = vpack.c.b16 %v634, %v630
  %v803 = vpack.c.b16 %v635, %v631
  %v804 = vpack.c.b16 %v636, %v632
  %v805 = vpack.c.b16 %v637, %v633
  %v806 = vpack.c.b16 %v642, %v638
  %v807 = vpack.c.b16 %v643, %v639
  %v808 = vpack.c.b16 %v644, %v640
  %v809 = vpack.c.b16 %v645, %v641
  %v810 = vpack.c.b16 %v650, %v646
  %v811 = vpack.c.b16 %v651, %v647
  %v812 = vpack.c.b16 %v652, %v648
  %v813 = vpack.c.b16 %v653, %v649
  %v814 = vpack.c.b16 %v658, %v654
  %v815 = vpack.c.b16 %v659, %v655
  %v816 = vpack.c.b16 %v660, %v656
  %v817 = vpack.c.b16 %v661, %v657
  %v818 = vpack.c.b16 %v666, %v662
  %v819 = vpack.c.b16 %v667, %v663
  %v820 = vpack.c.b16 %v668, %v664
  %v821 = vpack.c.b16 %v669, %v665
  %v822 = vpack.c.b16 %v674, %v670
  %v823 = vpack.c.b16 %v675, %v671
  %v824 = vpack.c.b16 %v676, %v672
  %v825 = vpack.c.b16 %v677, %v673
  %v826 = vpack.c.b16 %v678, %v678
  %v827 = vpack.c.b16 %v679, %v679
  %v828 = vpack.c.b16 %v680, %v680
  %v829 = vpack.c.b16 %v681, %v681
  %v1042 = vunpack.c.l.b16 %v173
  %v1043 = vunpack.c.l.b16 %v174
  %v1044 = vunpack.c.l.b16 %v175
  %v1045 = vunpack.c.l.b16 %v176
  %v1046 = vunpack.c.l.b16 %v177
  %v1047 = vunpack.c.l.b16 %v178
  %v1048 = vunpack.c.l.b16 %v179
  %v1049 = vunpack.c.l.b16 %v180
  %v1050 = vunpack.c.l.b16 %v181
  %v1051 = vunpack.c.l.b16 %v182
  %v1052 = vunpack.c.l.b16 %v183
  %v1053 = vunpack.c.l.b16 %v184
  %v1054 = vunpack.c.l.b16 %v185
  %v1055 = vunpack.c.l.b16 %v186
  %v1056 = vunpack.c.l.b16 %v187
  %v1057 = vunpack.c.l.b16 %v188
  %v1058 = vunpack.c.l.b16 %v189
  %v1059 = vunpack.c.l.b16 %v190
  %v1060 = vunpack.c.l.b16 %v191
  %v1061 = vunpack.c.l.b16 %v192
  %v1062 = vunpack.c.l.b16 %v193
  %v1063 = vunpack.c.l.b16 %v194
  %v1064 = vunpack.c.l.b16 %v195
  %v1065 = vunpack.c.l.b16 %v196
  %v1066 = vunpack.c.l.b16 %v197
  %v1067 = vunpack.c.l.b16 %v198
  %v1068 = vunpack.c.l.b16 %v199
  %v1069 = vunpack.c.l.b16 %v200
  %v1070 = vunpack.c.l.b16 %v201
  %v1071 = vunpack.c.l.b16 %v202
  %v1072 = vunpack.c.l.b16 %v203
  %v1073 = vunpack.c.l.b16 %v204
  %v1074 = vunpack.c.l.b16 %v205
  %v1075 = vunpack.c.l.b16 %v206
  %v1076 = vunpack.c.l.b16 %v207
  %v1077 = vunpack.c.l.b16 %v208
  %v1078 = vunpack.c.l.b16 %v209
  %v1079 = vunpack.c.l.b16 %v210
  %v1080 = vunpack.c.l.b16 %v211
  %v1081 = vunpack.c.l.b16 %v212
  %v1082 = vunpack.c.l.b16 %v213
  %v1083 = vunpack.c.l.b16 %v214
  %v1084 = vunpack.c.l.b16 %v215
  %v1085 = vunpack.c.l.b16 %v216
  %v1086 = vunpack.c.l.b16 %v217
  %v1087 = vunpack.c.l.b16 %v218
  %v1088 = vunpack.c.l.b16 %v219
  %v1089 = vunpack.c.l.b16 %v220
  %v1090 = vunpack.c.l.b16 %v221
  %v1091 = vunpack.c.l.b16 %v222
  %v1092 = vunpack.c.l.b16 %v223
  %v1093 = vunpack.c.l.b16 %v224
  %v1094 = vunpack.c.l.b16 %v225
  %v1095 = vunpack.c.l.b16 %v226
  %v1096 = vunpack.c.l.b16 %v227
  %v1097 = vunpack.c.l.b16 %v228
  %v1098 = vunpack.c.l.b16 %v229
  %v1099 = vunpack.c.l.b16 %v230
  %v1100 = vunpack.c.l.b16 %v231
  %v1101 = vunpack.c.l.b16 %v232
  %v1102 = vunpack.c.l.b16 %v233
  %v1103 = vunpack.c.l.b16 %v234
  %v1104 = vunpack.c.l.b16 %v235
  %v1105 = vunpack.c.l.b16 %v236
  %v1106 = vpack.c.b16 %v1043, %v1042
  %v1107 = vpack.c.b16 %v1045, %v1044
  %v1108 = vpack.c.b16 %v1047, %v1046
  %v1109 = vpack.c.b16 %v1049, %v1048
  %v1110 = vpack.c.b16 %v1051, %v1050
  %v1111 = vpack.c.b16 %v1053, %v1052
  %v1112 = vpack.c.b16 %v1055, %v1054
  %v1113 = vpack.c.b16 %v1057, %v1056
  %v1114 = vpack.c.b16 %v1059, %v1058
  %v1115 = vpack.c.b16 %v1061, %v1060
  %v1116 = vpack.c.b16 %v1063, %v1062
  %v1117 = vpack.c.b16 %v1065, %v1064
  %v1118 = vpack.c.b16 %v1067, %v1066
  %v1119 = vpack.c.b16 %v1069, %v1068
  %v1120 = vpack.c.b16 %v1071, %v1070
  %v1121 = vpack.c.b16 %v1073, %v1072
  %v1122 = vpack.c.b16 %v1075, %v1074
  %v1123 = vpack.c.b16 %v1077, %v1076
  %v1124 = vpack.c.b16 %v1079, %v1078
  %v1125 = vpack.c.b16 %v1081, %v1080
  %v1126 = vpack.c.b16 %v1083, %v1082
  %v1127 = vpack.c.b16 %v1085, %v1084
  %v1128 = vpack.c.b16 %v1087, %v1086
  %v1129 = vpack.c.b16 %v1089, %v1088
  %v1130 = vpack.c.b16 %v1091, %v1090
  %v1131 = vpack.c.b16 %v1093, %v1092
  %v1132 = vpack.c.b16 %v1095, %v1094
  %v1133 = vpack.c.b16 %v1097, %v1096
  %v1134 = vpack.c.b16 %v1099, %v1098
  %v1135 = vpack.c.b16 %v1101, %v1100
  %v1136 = vpack.c.b16 %v1103, %v1102
  %v1137 = vpack.c.b16 %v1105, %v1104
  %1170 = vmatprep.subr.bf16.mxu0 0
  %1171 = vmatpush1.bf16.msra.mxu0 %v1113
  %1172 = vmatprep.subr.bf16.mxu0 0
  %1173 = vmatpush1.bf16.msra.mxu0 %v1112
  %1174 = vmatprep.subr.bf16.mxu0 0
  %1175 = vmatpush1.bf16.msra.mxu0 %v1111
  %1176 = vmatprep.subr.bf16.mxu0 0
  %1177 = vmatpush1.bf16.msra.mxu0 %v1110
  %1178 = vmatprep.subr.bf16.mxu0 0
  %1179 = vmatpush1.bf16.msra.mxu0 %v1109
  %1180 = vmatprep.subr.bf16.mxu0 0
  %1181 = vmatpush1.bf16.msra.mxu0 %v1108
  %1182 = vmatprep.subr.bf16.mxu0 0
  %1183 = vmatpush1.bf16.msra.mxu0 %v1107
  %1184 = vmatprep.subr.bf16.mxu0 0
  %1185 = vmatpush1.bf16.msra.mxu0 %v1106
  %1186 = vmatprep.subr.bf16.mxu0 0
  %1187 = vmatpush2.bf16.msra.mxu0 %v1121
  %1188 = vmatprep.subr.bf16.mxu0 0
  %1189 = vmatpush2.bf16.msra.mxu0 %v1120
  %1190 = vmatprep.subr.bf16.mxu0 0
  %1191 = vmatpush2.bf16.msra.mxu0 %v1119
  %1192 = vmatprep.subr.bf16.mxu0 0
  %1193 = vmatpush2.bf16.msra.mxu0 %v1118
  %1194 = vmatprep.subr.bf16.mxu0 0
  %1195 = vmatpush2.bf16.msra.mxu0 %v1117
  %1196 = vmatprep.subr.bf16.mxu0 0
  %1197 = vmatpush2.bf16.msra.mxu0 %v1116
  %1198 = vmatprep.subr.bf16.mxu0 0
  %1199 = vmatpush2.bf16.msra.mxu0 %v1115
  %1200 = vmatprep.subr.bf16.mxu0 0
  %1201 = vmatpush2.bf16.msra.mxu0 %v1114
  %1202 = vmatprep.mubr.bf16.mxu0 %v683
  %1203 = vmatmul.mubr.bf16.gmra.mxu0 %v682
  %v1204 = vpop.f32.mrf.mxu0
  %v1205 = vadd.f32 %v242, %v1204
  %v1206 = vpop.f32.mrf.mxu0
  %v1207 = vpop.f32.mrf.mxu0
  %v1208 = vadd.f32 %v242, %v1207
  %v1209 = vpop.f32.mrf.mxu0
  %1210 = vmatprep.mubr.bf16.mxu0 %v687
  %1211 = vmatmul.mubr.bf16.gmra.mxu0 %v686
  %v1212 = vpop.f32.mrf.mxu0
  %v1213 = vadd.f32 %v242, %v1212
  %v1214 = vpop.f32.mrf.mxu0
  %v1215 = vpop.f32.mrf.mxu0
  %v1216 = vadd.f32 %v242, %v1215
  %v1217 = vpop.f32.mrf.mxu0
  %1218 = vmatprep.mubr.bf16.mxu0 %v691
  %1219 = vmatmul.mubr.bf16.gmra.mxu0 %v690
  %v1220 = vpop.f32.mrf.mxu0
  %v1221 = vadd.f32 %v242, %v1220
  %v1222 = vpop.f32.mrf.mxu0
  %v1223 = vpop.f32.mrf.mxu0
  %v1224 = vadd.f32 %v242, %v1223
  %v1225 = vpop.f32.mrf.mxu0
  %1226 = vmatprep.mubr.bf16.mxu0 %v695
  %1227 = vmatmul.mubr.bf16.gmra.mxu0 %v694
  %v1228 = vpop.f32.mrf.mxu0
  %v1229 = vadd.f32 %v242, %v1228
  %v1230 = vpop.f32.mrf.mxu0
  %v1231 = vpop.f32.mrf.mxu0
  %v1232 = vadd.f32 %v242, %v1231
  %v1233 = vpop.f32.mrf.mxu0
  %1234 = vmatprep.mubr.bf16.mxu0 %v699
  %1235 = vmatmul.mubr.bf16.gmra.mxu0 %v698
  %v1236 = vpop.f32.mrf.mxu0
  %v1237 = vadd.f32 %v242, %v1236
  %v1238 = vpop.f32.mrf.mxu0
  %v1239 = vpop.f32.mrf.mxu0
  %v1240 = vadd.f32 %v242, %v1239
  %v1241 = vpop.f32.mrf.mxu0
  %1242 = vmatprep.mubr.bf16.mxu0 %v703
  %1243 = vmatmul.mubr.bf16.gmra.mxu0 %v702
  %v1244 = vpop.f32.mrf.mxu0
  %v1245 = vadd.f32 %v242, %v1244
  %v1246 = vpop.f32.mrf.mxu0
  %v1247 = vpop.f32.mrf.mxu0
  %v1248 = vadd.f32 %v242, %v1247
  %v1249 = vpop.f32.mrf.mxu0
  %1250 = vmatprep.mubr.bf16.mxu0 %v707
  %1251 = vmatmul.mubr.bf16.gmra.mxu0 %v706
  %v1252 = vpop.f32.mrf.mxu0
  %v1253 = vadd.f32 %v242, %v1252
  %v1254 = vpop.f32.mrf.mxu0
  %v1255 = vpop.f32.mrf.mxu0
  %v1256 = vadd.f32 %v242, %v1255
  %v1257 = vpop.f32.mrf.mxu0
  %1258 = vmatprep.mubr.bf16.mxu0 %v711
  %1259 = vmatmul.mubr.bf16.gmra.mxu0 %v710
  %v1260 = vpop.f32.mrf.mxu0
  %v1261 = vadd.f32 %v242, %v1260
  %v1262 = vpop.f32.mrf.mxu0
  %v1263 = vpop.f32.mrf.mxu0
  %v1264 = vadd.f32 %v242, %v1263
  %v1265 = vpop.f32.mrf.mxu0
  %1266 = vmatprep.mubr.bf16.mxu0 %v715
  %1267 = vmatmul.mubr.bf16.gmra.mxu0 %v714
  %v1268 = vpop.f32.mrf.mxu0
  %v1269 = vadd.f32 %v242, %v1268
  %v1270 = vpop.f32.mrf.mxu0
  %v1271 = vpop.f32.mrf.mxu0
  %v1272 = vadd.f32 %v242, %v1271
  %v1273 = vpop.f32.mrf.mxu0
  %1274 = vmatprep.mubr.bf16.mxu0 %v719
  %1275 = vmatmul.mubr.bf16.gmra.mxu0 %v718
  %v1276 = vpop.f32.mrf.mxu0
  %v1277 = vadd.f32 %v242, %v1276
  %v1278 = vpop.f32.mrf.mxu0
  %v1279 = vpop.f32.mrf.mxu0
  %v1280 = vadd.f32 %v242, %v1279
  %v1281 = vpop.f32.mrf.mxu0
  %1282 = vmatprep.mubr.bf16.mxu0 %v723
  %1283 = vmatmul.mubr.bf16.gmra.mxu0 %v722
  %v1284 = vpop.f32.mrf.mxu0
  %v1285 = vadd.f32 %v242, %v1284
  %v1286 = vpop.f32.mrf.mxu0
  %v1287 = vpop.f32.mrf.mxu0
  %v1288 = vadd.f32 %v242, %v1287
  %v1289 = vpop.f32.mrf.mxu0
  %1290 = vmatprep.mubr.bf16.mxu0 %v727
  %1291 = vmatmul.mubr.bf16.gmra.mxu0 %v726
  %v1292 = vpop.f32.mrf.mxu0
  %v1293 = vadd.f32 %v242, %v1292
  %v1294 = vpop.f32.mrf.mxu0
  %v1295 = vpop.f32.mrf.mxu0
  %v1296 = vadd.f32 %v242, %v1295
  %v1297 = vpop.f32.mrf.mxu0
  %1298 = vmatprep.mubr.bf16.mxu0 %v731
  %1299 = vmatmul.mubr.bf16.gmra.mxu0 %v730
  %v1300 = vpop.f32.mrf.mxu0
  %v1301 = vadd.f32 %v242, %v1300
  %v1302 = vpop.f32.mrf.mxu0
  %v1303 = vpop.f32.mrf.mxu0
  %v1304 = vadd.f32 %v242, %v1303
  %v1305 = vpop.f32.mrf.mxu0
  %1306 = vmatprep.mubr.bf16.mxu0 %v735
  %1307 = vmatmul.mubr.bf16.gmra.mxu0 %v734
  %v1308 = vpop.f32.mrf.mxu0
  %v1309 = vadd.f32 %v242, %v1308
  %v1310 = vpop.f32.mrf.mxu0
  %v1311 = vpop.f32.mrf.mxu0
  %v1312 = vadd.f32 %v242, %v1311
  %v1313 = vpop.f32.mrf.mxu0
  %1314 = vmatprep.mubr.bf16.mxu0 %v739
  %1315 = vmatmul.mubr.bf16.gmra.mxu0 %v738
  %v1316 = vpop.f32.mrf.mxu0
  %v1317 = vadd.f32 %v242, %v1316
  %v1318 = vpop.f32.mrf.mxu0
  %v1319 = vpop.f32.mrf.mxu0
  %v1320 = vadd.f32 %v242, %v1319
  %v1321 = vpop.f32.mrf.mxu0
  %1322 = vmatprep.mubr.bf16.mxu0 %v743
  %1323 = vmatmul.mubr.bf16.gmra.mxu0 %v742
  %v1324 = vpop.f32.mrf.mxu0
  %v1325 = vadd.f32 %v242, %v1324
  %v1326 = vpop.f32.mrf.mxu0
  %v1327 = vpop.f32.mrf.mxu0
  %v1328 = vadd.f32 %v242, %v1327
  %v1329 = vpop.f32.mrf.mxu0
  %1330 = vmatprep.mubr.bf16.mxu0 %v747
  %1331 = vmatmul.mubr.bf16.gmra.mxu0 %v746
  %v1332 = vpop.f32.mrf.mxu0
  %v1333 = vadd.f32 %v242, %v1332
  %v1334 = vpop.f32.mrf.mxu0
  %v1335 = vpop.f32.mrf.mxu0
  %v1336 = vadd.f32 %v242, %v1335
  %v1337 = vpop.f32.mrf.mxu0
  %1338 = vmatprep.mubr.bf16.mxu0 %v751
  %1339 = vmatmul.mubr.bf16.gmra.mxu0 %v750
  %v1340 = vpop.f32.mrf.mxu0
  %v1341 = vadd.f32 %v242, %v1340
  %v1342 = vpop.f32.mrf.mxu0
  %v1343 = vpop.f32.mrf.mxu0
  %v1344 = vadd.f32 %v242, %v1343
  %v1345 = vpop.f32.mrf.mxu0
  %1346 = vmatprep.mubr.bf16.mxu0 %v755
  %1347 = vmatmul.mubr.bf16.gmra.mxu0 %v754
  %v1348 = vpop.f32.mrf.mxu0
  %v1349 = vadd.f32 %v242, %v1348
  %v1350 = vpop.f32.mrf.mxu0
  %v1351 = vpop.f32.mrf.mxu0
  %v1352 = vadd.f32 %v242, %v1351
  %v1353 = vpop.f32.mrf.mxu0
  %1354 = vmatprep.mubr.bf16.mxu0 %v759
  %1355 = vmatmul.mubr.bf16.gmra.mxu0 %v758
  %v1356 = vpop.f32.mrf.mxu0
  %v1357 = vadd.f32 %v242, %v1356
  %v1358 = vpop.f32.mrf.mxu0
  %v1359 = vpop.f32.mrf.mxu0
  %v1360 = vadd.f32 %v242, %v1359
  %v1361 = vpop.f32.mrf.mxu0
  %1362 = vmatprep.mubr.bf16.mxu0 %v763
  %1363 = vmatmul.mubr.bf16.gmra.mxu0 %v762
  %v1364 = vpop.f32.mrf.mxu0
  %v1365 = vadd.f32 %v242, %v1364
  %v1366 = vpop.f32.mrf.mxu0
  %v1367 = vpop.f32.mrf.mxu0
  %v1368 = vadd.f32 %v242, %v1367
  %v1369 = vpop.f32.mrf.mxu0
  %1370 = vmatprep.mubr.bf16.mxu0 %v767
  %1371 = vmatmul.mubr.bf16.gmra.mxu0 %v766
  %v1372 = vpop.f32.mrf.mxu0
  %v1373 = vadd.f32 %v242, %v1372
  %v1374 = vpop.f32.mrf.mxu0
  %v1375 = vpop.f32.mrf.mxu0
  %v1376 = vadd.f32 %v242, %v1375
  %v1377 = vpop.f32.mrf.mxu0
  %1378 = vmatprep.mubr.bf16.mxu0 %v771
  %1379 = vmatmul.mubr.bf16.gmra.mxu0 %v770
  %v1380 = vpop.f32.mrf.mxu0
  %v1381 = vadd.f32 %v242, %v1380
  %v1382 = vpop.f32.mrf.mxu0
  %v1383 = vpop.f32.mrf.mxu0
  %v1384 = vadd.f32 %v242, %v1383
  %v1385 = vpop.f32.mrf.mxu0
  %1386 = vmatprep.mubr.bf16.mxu0 %v775
  %1387 = vmatmul.mubr.bf16.gmra.mxu0 %v774
  %v1388 = vpop.f32.mrf.mxu0
  %v1389 = vadd.f32 %v242, %v1388
  %v1390 = vpop.f32.mrf.mxu0
  %v1391 = vpop.f32.mrf.mxu0
  %v1392 = vadd.f32 %v242, %v1391
  %v1393 = vpop.f32.mrf.mxu0
  %1394 = vmatprep.mubr.bf16.mxu0 %v779
  %1395 = vmatmul.mubr.bf16.gmra.mxu0 %v778
  %v1396 = vpop.f32.mrf.mxu0
  %v1397 = vadd.f32 %v242, %v1396
  %v1398 = vpop.f32.mrf.mxu0
  %v1399 = vpop.f32.mrf.mxu0
  %v1400 = vadd.f32 %v242, %v1399
  %v1401 = vpop.f32.mrf.mxu0
  %1402 = vmatprep.mubr.bf16.mxu0 %v783
  %1403 = vmatmul.mubr.bf16.gmra.mxu0 %v782
  %v1404 = vpop.f32.mrf.mxu0
  %v1405 = vadd.f32 %v242, %v1404
  %v1406 = vpop.f32.mrf.mxu0
  %v1407 = vpop.f32.mrf.mxu0
  %v1408 = vadd.f32 %v242, %v1407
  %v1409 = vpop.f32.mrf.mxu0
  %1410 = vmatprep.mubr.bf16.mxu0 %v787
  %1411 = vmatmul.mubr.bf16.gmra.mxu0 %v786
  %v1412 = vpop.f32.mrf.mxu0
  %v1413 = vadd.f32 %v242, %v1412
  %v1414 = vpop.f32.mrf.mxu0
  %v1415 = vpop.f32.mrf.mxu0
  %v1416 = vadd.f32 %v242, %v1415
  %v1417 = vpop.f32.mrf.mxu0
  %1418 = vmatprep.mubr.bf16.mxu0 %v791
  %1419 = vmatmul.mubr.bf16.gmra.mxu0 %v790
  %v1420 = vpop.f32.mrf.mxu0
  %v1421 = vadd.f32 %v242, %v1420
  %v1422 = vpop.f32.mrf.mxu0
  %v1423 = vpop.f32.mrf.mxu0
  %v1424 = vadd.f32 %v242, %v1423
  %v1425 = vpop.f32.mrf.mxu0
  %1426 = vmatprep.mubr.bf16.mxu0 %v795
  %1427 = vmatmul.mubr.bf16.gmra.mxu0 %v794
  %v1428 = vpop.f32.mrf.mxu0
  %v1429 = vadd.f32 %v242, %v1428
  %v1430 = vpop.f32.mrf.mxu0
  %v1431 = vpop.f32.mrf.mxu0
  %v1432 = vadd.f32 %v242, %v1431
  %v1433 = vpop.f32.mrf.mxu0
  %1434 = vmatprep.mubr.bf16.mxu0 %v799
  %1435 = vmatmul.mubr.bf16.gmra.mxu0 %v798
  %v1436 = vpop.f32.mrf.mxu0
  %v1437 = vadd.f32 %v242, %v1436
  %v1438 = vpop.f32.mrf.mxu0
  %v1439 = vpop.f32.mrf.mxu0
  %v1440 = vadd.f32 %v242, %v1439
  %v1441 = vpop.f32.mrf.mxu0
  %1442 = vmatprep.mubr.bf16.mxu0 %v803
  %1443 = vmatmul.mubr.bf16.gmra.mxu0 %v802
  %v1444 = vpop.f32.mrf.mxu0
  %v1445 = vadd.f32 %v242, %v1444
  %v1446 = vpop.f32.mrf.mxu0
  %v1447 = vpop.f32.mrf.mxu0
  %v1448 = vadd.f32 %v242, %v1447
  %v1449 = vpop.f32.mrf.mxu0
  %1450 = vmatprep.mubr.bf16.mxu0 %v807
  %1451 = vmatmul.mubr.bf16.gmra.mxu0 %v806
  %v1452 = vpop.f32.mrf.mxu0
  %v1453 = vadd.f32 %v242, %v1452
  %v1454 = vpop.f32.mrf.mxu0
  %v1455 = vpop.f32.mrf.mxu0
  %v1456 = vadd.f32 %v242, %v1455
  %v1457 = vpop.f32.mrf.mxu0
  %1458 = vmatprep.mubr.bf16.mxu0 %v811
  %1459 = vmatmul.mubr.bf16.gmra.mxu0 %v810
  %v1460 = vpop.f32.mrf.mxu0
  %v1461 = vadd.f32 %v242, %v1460
  %v1462 = vpop.f32.mrf.mxu0
  %v1463 = vpop.f32.mrf.mxu0
  %v1464 = vadd.f32 %v242, %v1463
  %v1465 = vpop.f32.mrf.mxu0
  %1466 = vmatprep.mubr.bf16.mxu0 %v815
  %1467 = vmatmul.mubr.bf16.gmra.mxu0 %v814
  %v1468 = vpop.f32.mrf.mxu0
  %v1469 = vadd.f32 %v242, %v1468
  %v1470 = vpop.f32.mrf.mxu0
  %v1471 = vpop.f32.mrf.mxu0
  %v1472 = vadd.f32 %v242, %v1471
  %v1473 = vpop.f32.mrf.mxu0
  %1474 = vmatprep.mubr.bf16.mxu0 %v819
  %1475 = vmatmul.mubr.bf16.gmra.mxu0 %v818
  %v1476 = vpop.f32.mrf.mxu0
  %v1477 = vadd.f32 %v242, %v1476
  %v1478 = vpop.f32.mrf.mxu0
  %v1479 = vpop.f32.mrf.mxu0
  %v1480 = vadd.f32 %v242, %v1479
  %v1481 = vpop.f32.mrf.mxu0
  %1482 = vmatprep.mubr.bf16.mxu0 %v823
  %1483 = vmatmul.mubr.bf16.gmra.mxu0 %v822
  %v1484 = vpop.f32.mrf.mxu0
  %v1485 = vadd.f32 %v242, %v1484
  %v1486 = vpop.f32.mrf.mxu0
  %v1487 = vpop.f32.mrf.mxu0
  %v1488 = vadd.f32 %v242, %v1487
  %v1489 = vpop.f32.mrf.mxu0
  %1490 = vmatprep.mubr.bf16.mxu0 %v827
  %1491 = vmatmul.mubr.bf16.gmra.mxu0 %v826
  %v1492 = vpop.f32.mrf.mxu0
  %v1493 = vadd.f32 %v242, %v1492
  %v1494 = vpop.f32.mrf.mxu0
  %v1495 = vpop.f32.mrf.mxu0
  %v1496 = vpop.f32.mrf.mxu0
  %1497 = vdwg.mxu0
  %1498 = vmatprep.subr.bf16.mxu0 0
  %1499 = vmatpush1.bf16.msra.mxu0 %v1129
  %1500 = vmatprep.subr.bf16.mxu0 0
  %1501 = vmatpush1.bf16.msra.mxu0 %v1128
  %1502 = vmatprep.subr.bf16.mxu0 0
  %1503 = vmatpush1.bf16.msra.mxu0 %v1127
  %1504 = vmatprep.subr.bf16.mxu0 0
  %1505 = vmatpush1.bf16.msra.mxu0 %v1126
  %1506 = vmatprep.subr.bf16.mxu0 0
  %1507 = vmatpush1.bf16.msra.mxu0 %v1125
  %1508 = vmatprep.subr.bf16.mxu0 0
  %1509 = vmatpush1.bf16.msra.mxu0 %v1124
  %1510 = vmatprep.subr.bf16.mxu0 0
  %1511 = vmatpush1.bf16.msra.mxu0 %v1123
  %1512 = vmatprep.subr.bf16.mxu0 0
  %1513 = vmatpush1.bf16.msra.mxu0 %v1122
  %1514 = vmatprep.subr.bf16.mxu0 0
  %1515 = vmatpush2.bf16.msra.mxu0 %v1137
  %1516 = vmatprep.subr.bf16.mxu0 0
  %1517 = vmatpush2.bf16.msra.mxu0 %v1136
  %1518 = vmatprep.subr.bf16.mxu0 0
  %1519 = vmatpush2.bf16.msra.mxu0 %v1135
  %1520 = vmatprep.subr.bf16.mxu0 0
  %1521 = vmatpush2.bf16.msra.mxu0 %v1134
  %1522 = vmatprep.subr.bf16.mxu0 0
  %1523 = vmatpush2.bf16.msra.mxu0 %v1133
  %1524 = vmatprep.subr.bf16.mxu0 0
  %1525 = vmatpush2.bf16.msra.mxu0 %v1132
  %1526 = vmatprep.subr.bf16.mxu0 0
  %1527 = vmatpush2.bf16.msra.mxu0 %v1131
  %1528 = vmatprep.subr.bf16.mxu0 0
  %1529 = vmatpush2.bf16.msra.mxu0 %v1130
  %1530 = vmatprep.mubr.bf16.mxu0 %v685
  %1531 = vmatmul.mubr.bf16.gmra.mxu0 %v684
  %v1532 = vpop.f32.mrf.mxu0
  %v1533 = vadd.f32 %v1205, %v1532
  %v1534 = vpop.f32.mrf.mxu0
  %v1535 = vpop.f32.mrf.mxu0
  %v1536 = vadd.f32 %v1208, %v1535
  %v1537 = vpop.f32.mrf.mxu0
  %1538 = vmatprep.mubr.bf16.mxu0 %v689
  %1539 = vmatmul.mubr.bf16.gmra.mxu0 %v688
  %v1540 = vpop.f32.mrf.mxu0
  %v1541 = vadd.f32 %v1213, %v1540
  %v1542 = vpop.f32.mrf.mxu0
  %v1543 = vpop.f32.mrf.mxu0
  %v1544 = vadd.f32 %v1216, %v1543
  %v1545 = vpop.f32.mrf.mxu0
  %1546 = vmatprep.mubr.bf16.mxu0 %v693
  %1547 = vmatmul.mubr.bf16.gmra.mxu0 %v692
  %v1548 = vpop.f32.mrf.mxu0
  %v1549 = vadd.f32 %v1221, %v1548
  %v1550 = vpop.f32.mrf.mxu0
  %v1551 = vpop.f32.mrf.mxu0
  %v1552 = vadd.f32 %v1224, %v1551
  %v1553 = vpop.f32.mrf.mxu0
  %1554 = vmatprep.mubr.bf16.mxu0 %v697
  %1555 = vmatmul.mubr.bf16.gmra.mxu0 %v696
  %v1556 = vpop.f32.mrf.mxu0
  %v1557 = vadd.f32 %v1229, %v1556
  %v1558 = vpop.f32.mrf.mxu0
  %v1559 = vpop.f32.mrf.mxu0
  %v1560 = vadd.f32 %v1232, %v1559
  %v1561 = vpop.f32.mrf.mxu0
  %1562 = vmatprep.mubr.bf16.mxu0 %v701
  %1563 = vmatmul.mubr.bf16.gmra.mxu0 %v700
  %v1564 = vpop.f32.mrf.mxu0
  %v1565 = vadd.f32 %v1237, %v1564
  %v1566 = vpop.f32.mrf.mxu0
  %v1567 = vpop.f32.mrf.mxu0
  %v1568 = vadd.f32 %v1240, %v1567
  %v1569 = vpop.f32.mrf.mxu0
  %1570 = vmatprep.mubr.bf16.mxu0 %v705
  %1571 = vmatmul.mubr.bf16.gmra.mxu0 %v704
  %v1572 = vpop.f32.mrf.mxu0
  %v1573 = vadd.f32 %v1245, %v1572
  %v1574 = vpop.f32.mrf.mxu0
  %v1575 = vpop.f32.mrf.mxu0
  %v1576 = vadd.f32 %v1248, %v1575
  %v1577 = vpop.f32.mrf.mxu0
  %1578 = vmatprep.mubr.bf16.mxu0 %v709
  %1579 = vmatmul.mubr.bf16.gmra.mxu0 %v708
  %v1580 = vpop.f32.mrf.mxu0
  %v1581 = vadd.f32 %v1253, %v1580
  %v1582 = vpop.f32.mrf.mxu0
  %v1583 = vpop.f32.mrf.mxu0
  %v1584 = vadd.f32 %v1256, %v1583
  %v1585 = vpop.f32.mrf.mxu0
  %1586 = vmatprep.mubr.bf16.mxu0 %v713
  %1587 = vmatmul.mubr.bf16.gmra.mxu0 %v712
  %v1588 = vpop.f32.mrf.mxu0
  %v1589 = vadd.f32 %v1261, %v1588
  %v1590 = vpop.f32.mrf.mxu0
  %v1591 = vpop.f32.mrf.mxu0
  %v1592 = vadd.f32 %v1264, %v1591
  %v1593 = vpop.f32.mrf.mxu0
  %1594 = vmatprep.mubr.bf16.mxu0 %v717
  %1595 = vmatmul.mubr.bf16.gmra.mxu0 %v716
  %v1596 = vpop.f32.mrf.mxu0
  %v1597 = vadd.f32 %v1269, %v1596
  %v1598 = vpop.f32.mrf.mxu0
  %v1599 = vpop.f32.mrf.mxu0
  %v1600 = vadd.f32 %v1272, %v1599
  %v1601 = vpop.f32.mrf.mxu0
  %1602 = vmatprep.mubr.bf16.mxu0 %v721
  %1603 = vmatmul.mubr.bf16.gmra.mxu0 %v720
  %v1604 = vpop.f32.mrf.mxu0
  %v1605 = vadd.f32 %v1277, %v1604
  %v1606 = vpop.f32.mrf.mxu0
  %v1607 = vpop.f32.mrf.mxu0
  %v1608 = vadd.f32 %v1280, %v1607
  %v1609 = vpop.f32.mrf.mxu0
  %1610 = vmatprep.mubr.bf16.mxu0 %v725
  %1611 = vmatmul.mubr.bf16.gmra.mxu0 %v724
  %v1612 = vpop.f32.mrf.mxu0
  %v1613 = vadd.f32 %v1285, %v1612
  %v1614 = vpop.f32.mrf.mxu0
  %v1615 = vpop.f32.mrf.mxu0
  %v1616 = vadd.f32 %v1288, %v1615
  %v1617 = vpop.f32.mrf.mxu0
  %1618 = vmatprep.mubr.bf16.mxu0 %v729
  %1619 = vmatmul.mubr.bf16.gmra.mxu0 %v728
  %v1620 = vpop.f32.mrf.mxu0
  %v1621 = vadd.f32 %v1293, %v1620
  %v1622 = vpop.f32.mrf.mxu0
  %v1623 = vpop.f32.mrf.mxu0
  %v1624 = vadd.f32 %v1296, %v1623
  %v1625 = vpop.f32.mrf.mxu0
  %1626 = vmatprep.mubr.bf16.mxu0 %v733
  %1627 = vmatmul.mubr.bf16.gmra.mxu0 %v732
  %v1628 = vpop.f32.mrf.mxu0
  %v1629 = vadd.f32 %v1301, %v1628
  %v1630 = vpop.f32.mrf.mxu0
  %v1631 = vpop.f32.mrf.mxu0
  %v1632 = vadd.f32 %v1304, %v1631
  %v1633 = vpop.f32.mrf.mxu0
  %1634 = vmatprep.mubr.bf16.mxu0 %v737
  %1635 = vmatmul.mubr.bf16.gmra.mxu0 %v736
  %v1636 = vpop.f32.mrf.mxu0
  %v1637 = vadd.f32 %v1309, %v1636
  %v1638 = vpop.f32.mrf.mxu0
  %v1639 = vpop.f32.mrf.mxu0
  %v1640 = vadd.f32 %v1312, %v1639
  %v1641 = vpop.f32.mrf.mxu0
  %1642 = vmatprep.mubr.bf16.mxu0 %v741
  %1643 = vmatmul.mubr.bf16.gmra.mxu0 %v740
  %v1644 = vpop.f32.mrf.mxu0
  %v1645 = vadd.f32 %v1317, %v1644
  %v1646 = vpop.f32.mrf.mxu0
  %v1647 = vpop.f32.mrf.mxu0
  %v1648 = vadd.f32 %v1320, %v1647
  %v1649 = vpop.f32.mrf.mxu0
  %1650 = vmatprep.mubr.bf16.mxu0 %v745
  %1651 = vmatmul.mubr.bf16.gmra.mxu0 %v744
  %v1652 = vpop.f32.mrf.mxu0
  %v1653 = vadd.f32 %v1325, %v1652
  %v1654 = vpop.f32.mrf.mxu0
  %v1655 = vpop.f32.mrf.mxu0
  %v1656 = vadd.f32 %v1328, %v1655
  %v1657 = vpop.f32.mrf.mxu0
  %1658 = vmatprep.mubr.bf16.mxu0 %v749
  %1659 = vmatmul.mubr.bf16.gmra.mxu0 %v748
  %v1660 = vpop.f32.mrf.mxu0
  %v1661 = vadd.f32 %v1333, %v1660
  %v1662 = vpop.f32.mrf.mxu0
  %v1663 = vpop.f32.mrf.mxu0
  %v1664 = vadd.f32 %v1336, %v1663
  %v1665 = vpop.f32.mrf.mxu0
  %1666 = vmatprep.mubr.bf16.mxu0 %v753
  %1667 = vmatmul.mubr.bf16.gmra.mxu0 %v752
  %v1668 = vpop.f32.mrf.mxu0
  %v1669 = vadd.f32 %v1341, %v1668
  %v1670 = vpop.f32.mrf.mxu0
  %v1671 = vpop.f32.mrf.mxu0
  %v1672 = vadd.f32 %v1344, %v1671
  %v1673 = vpop.f32.mrf.mxu0
  %1674 = vmatprep.mubr.bf16.mxu0 %v757
  %1675 = vmatmul.mubr.bf16.gmra.mxu0 %v756
  %v1676 = vpop.f32.mrf.mxu0
  %v1677 = vadd.f32 %v1349, %v1676
  %v1678 = vpop.f32.mrf.mxu0
  %v1679 = vpop.f32.mrf.mxu0
  %v1680 = vadd.f32 %v1352, %v1679
  %v1681 = vpop.f32.mrf.mxu0
  %1682 = vmatprep.mubr.bf16.mxu0 %v761
  %1683 = vmatmul.mubr.bf16.gmra.mxu0 %v760
  %v1684 = vpop.f32.mrf.mxu0
  %v1685 = vadd.f32 %v1357, %v1684
  %v1686 = vpop.f32.mrf.mxu0
  %v1687 = vpop.f32.mrf.mxu0
  %v1688 = vadd.f32 %v1360, %v1687
  %v1689 = vpop.f32.mrf.mxu0
  %1690 = vmatprep.mubr.bf16.mxu0 %v765
  %1691 = vmatmul.mubr.bf16.gmra.mxu0 %v764
  %v1692 = vpop.f32.mrf.mxu0
  %v1693 = vadd.f32 %v1365, %v1692
  %v1694 = vpop.f32.mrf.mxu0
  %v1695 = vpop.f32.mrf.mxu0
  %v1696 = vadd.f32 %v1368, %v1695
  %v1697 = vpop.f32.mrf.mxu0
  %1698 = vmatprep.mubr.bf16.mxu0 %v769
  %1699 = vmatmul.mubr.bf16.gmra.mxu0 %v768
  %v1700 = vpop.f32.mrf.mxu0
  %v1701 = vadd.f32 %v1373, %v1700
  %v1702 = vpop.f32.mrf.mxu0
  %v1703 = vpop.f32.mrf.mxu0
  %v1704 = vadd.f32 %v1376, %v1703
  %v1705 = vpop.f32.mrf.mxu0
  %1706 = vmatprep.mubr.bf16.mxu0 %v773
  %1707 = vmatmul.mubr.bf16.gmra.mxu0 %v772
  %v1708 = vpop.f32.mrf.mxu0
  %v1709 = vadd.f32 %v1381, %v1708
  %v1710 = vpop.f32.mrf.mxu0
  %v1711 = vpop.f32.mrf.mxu0
  %v1712 = vadd.f32 %v1384, %v1711
  %v1713 = vpop.f32.mrf.mxu0
  %1714 = vmatprep.mubr.bf16.mxu0 %v777
  %1715 = vmatmul.mubr.bf16.gmra.mxu0 %v776
  %v1716 = vpop.f32.mrf.mxu0
  %v1717 = vadd.f32 %v1389, %v1716
  %v1718 = vpop.f32.mrf.mxu0
  %v1719 = vpop.f32.mrf.mxu0
  %v1720 = vadd.f32 %v1392, %v1719
  %v1721 = vpop.f32.mrf.mxu0
  %1722 = vmatprep.mubr.bf16.mxu0 %v781
  %1723 = vmatmul.mubr.bf16.gmra.mxu0 %v780
  %v1724 = vpop.f32.mrf.mxu0
  %v1725 = vadd.f32 %v1397, %v1724
  %v1726 = vpop.f32.mrf.mxu0
  %v1727 = vpop.f32.mrf.mxu0
  %v1728 = vadd.f32 %v1400, %v1727
  %v1729 = vpop.f32.mrf.mxu0
  %1730 = vmatprep.mubr.bf16.mxu0 %v785
  %1731 = vmatmul.mubr.bf16.gmra.mxu0 %v784
  %v1732 = vpop.f32.mrf.mxu0
  %v1733 = vadd.f32 %v1405, %v1732
  %v1734 = vpop.f32.mrf.mxu0
  %v1735 = vpop.f32.mrf.mxu0
  %v1736 = vadd.f32 %v1408, %v1735
  %v1737 = vpop.f32.mrf.mxu0
  %1738 = vmatprep.mubr.bf16.mxu0 %v789
  %1739 = vmatmul.mubr.bf16.gmra.mxu0 %v788
  %v1740 = vpop.f32.mrf.mxu0
  %v1741 = vadd.f32 %v1413, %v1740
  %v1742 = vpop.f32.mrf.mxu0
  %v1743 = vpop.f32.mrf.mxu0
  %v1744 = vadd.f32 %v1416, %v1743
  %v1745 = vpop.f32.mrf.mxu0
  %1746 = vmatprep.mubr.bf16.mxu0 %v793
  %1747 = vmatmul.mubr.bf16.gmra.mxu0 %v792
  %v1748 = vpop.f32.mrf.mxu0
  %v1749 = vadd.f32 %v1421, %v1748
  %v1750 = vpop.f32.mrf.mxu0
  %v1751 = vpop.f32.mrf.mxu0
  %v1752 = vadd.f32 %v1424, %v1751
  %v1753 = vpop.f32.mrf.mxu0
  %1754 = vmatprep.mubr.bf16.mxu0 %v797
  %1755 = vmatmul.mubr.bf16.gmra.mxu0 %v796
  %v1756 = vpop.f32.mrf.mxu0
  %v1757 = vadd.f32 %v1429, %v1756
  %v1758 = vpop.f32.mrf.mxu0
  %v1759 = vpop.f32.mrf.mxu0
  %v1760 = vadd.f32 %v1432, %v1759
  %v1761 = vpop.f32.mrf.mxu0
  %1762 = vmatprep.mubr.bf16.mxu0 %v801
  %1763 = vmatmul.mubr.bf16.gmra.mxu0 %v800
  %v1764 = vpop.f32.mrf.mxu0
  %v1765 = vadd.f32 %v1437, %v1764
  %v1766 = vpop.f32.mrf.mxu0
  %v1767 = vpop.f32.mrf.mxu0
  %v1768 = vadd.f32 %v1440, %v1767
  %v1769 = vpop.f32.mrf.mxu0
  %1770 = vmatprep.mubr.bf16.mxu0 %v805
  %1771 = vmatmul.mubr.bf16.gmra.mxu0 %v804
  %v1772 = vpop.f32.mrf.mxu0
  %v1773 = vadd.f32 %v1445, %v1772
  %v1774 = vpop.f32.mrf.mxu0
  %v1775 = vpop.f32.mrf.mxu0
  %v1776 = vadd.f32 %v1448, %v1775
  %v1777 = vpop.f32.mrf.mxu0
  %1778 = vmatprep.mubr.bf16.mxu0 %v809
  %1779 = vmatmul.mubr.bf16.gmra.mxu0 %v808
  %v1780 = vpop.f32.mrf.mxu0
  %v1781 = vadd.f32 %v1453, %v1780
  %v1782 = vpop.f32.mrf.mxu0
  %v1783 = vpop.f32.mrf.mxu0
  %v1784 = vadd.f32 %v1456, %v1783
  %v1785 = vpop.f32.mrf.mxu0
  %1786 = vmatprep.mubr.bf16.mxu0 %v813
  %1787 = vmatmul.mubr.bf16.gmra.mxu0 %v812
  %v1788 = vpop.f32.mrf.mxu0
  %v1789 = vadd.f32 %v1461, %v1788
  %v1790 = vpop.f32.mrf.mxu0
  %v1791 = vpop.f32.mrf.mxu0
  %v1792 = vadd.f32 %v1464, %v1791
  %v1793 = vpop.f32.mrf.mxu0
  %1794 = vmatprep.mubr.bf16.mxu0 %v817
  %1795 = vmatmul.mubr.bf16.gmra.mxu0 %v816
  %v1796 = vpop.f32.mrf.mxu0
  %v1797 = vadd.f32 %v1469, %v1796
  %v1798 = vpop.f32.mrf.mxu0
  %v1799 = vpop.f32.mrf.mxu0
  %v1800 = vadd.f32 %v1472, %v1799
  %v1801 = vpop.f32.mrf.mxu0
  %1802 = vmatprep.mubr.bf16.mxu0 %v821
  %1803 = vmatmul.mubr.bf16.gmra.mxu0 %v820
  %v1804 = vpop.f32.mrf.mxu0
  %v1805 = vadd.f32 %v1477, %v1804
  %v1806 = vpop.f32.mrf.mxu0
  %v1807 = vpop.f32.mrf.mxu0
  %v1808 = vadd.f32 %v1480, %v1807
  %v1809 = vpop.f32.mrf.mxu0
  %1810 = vmatprep.mubr.bf16.mxu0 %v825
  %1811 = vmatmul.mubr.bf16.gmra.mxu0 %v824
  %v1812 = vpop.f32.mrf.mxu0
  %v1813 = vadd.f32 %v1485, %v1812
  %v1814 = vpop.f32.mrf.mxu0
  %v1815 = vpop.f32.mrf.mxu0
  %v1816 = vadd.f32 %v1488, %v1815
  %v1817 = vpop.f32.mrf.mxu0
  %1818 = vmatprep.mubr.bf16.mxu0 %v829
  %1819 = vmatmul.mubr.bf16.gmra.mxu0 %v828
  %v1820 = vpop.f32.mrf.mxu0
  %v1821 = vadd.f32 %v1493, %v1820
  %v1822 = vpop.f32.mrf.mxu0
  %v1823 = vpop.f32.mrf.mxu0
  %v1824 = vpop.f32.mrf.mxu0
  %1825 = vdwg.mxu0
  %v1826 = vmax.f32 %v1533, 0.0
  %v1827 = vmax.f32 %v1536, 0.0
  %v1828 = vmax.f32 %v1541, 0.0
  %v1829 = vmax.f32 %v1544, 0.0
  %v1830 = vmax.f32 %v1549, 0.0
  %v1831 = vmax.f32 %v1552, 0.0
  %v1832 = vmax.f32 %v1557, 0.0
  %v1833 = vmax.f32 %v1560, 0.0
  %v1834 = vmax.f32 %v1565, 0.0
  %v1835 = vmax.f32 %v1568, 0.0
  %v1836 = vmax.f32 %v1573, 0.0
  %v1837 = vmax.f32 %v1576, 0.0
  %v1838 = vmax.f32 %v1581, 0.0
  %v1839 = vmax.f32 %v1584, 0.0
  %v1840 = vmax.f32 %v1589, 0.0
  %v1841 = vmax.f32 %v1592, 0.0
  %v1842 = vmax.f32 %v1597, 0.0
  %v1843 = vmax.f32 %v1600, 0.0
  %v1844 = vmax.f32 %v1605, 0.0
  %v1845 = vmax.f32 %v1608, 0.0
  %v1846 = vmax.f32 %v1613, 0.0
  %v1847 = vmax.f32 %v1616, 0.0
  %v1848 = vmax.f32 %v1621, 0.0
  %v1849 = vmax.f32 %v1624, 0.0
  %v1850 = vmax.f32 %v1629, 0.0
  %v1851 = vmax.f32 %v1632, 0.0
  %v1852 = vmax.f32 %v1637, 0.0
  %v1853 = vmax.f32 %v1640, 0.0
  %v1854 = vmax.f32 %v1645, 0.0
  %v1855 = vmax.f32 %v1648, 0.0
  %v1856 = vmax.f32 %v1653, 0.0
  %v1857 = vmax.f32 %v1656, 0.0
  %v1858 = vmax.f32 %v1661, 0.0
  %v1859 = vmax.f32 %v1664, 0.0
  %v1860 = vmax.f32 %v1669, 0.0
  %v1861 = vmax.f32 %v1672, 0.0
  %v1862 = vmax.f32 %v1677, 0.0
  %v1863 = vmax.f32 %v1680, 0.0
  %v1864 = vmax.f32 %v1685, 0.0
  %v1865 = vmax.f32 %v1688, 0.0
  %v1866 = vmax.f32 %v1693, 0.0
  %v1867 = vmax.f32 %v1696, 0.0
  %v1868 = vmax.f32 %v1701, 0.0
  %v1869 = vmax.f32 %v1704, 0.0
  %v1870 = vmax.f32 %v1709, 0.0
  %v1871 = vmax.f32 %v1712, 0.0
  %v1872 = vmax.f32 %v1717, 0.0
  %v1873 = vmax.f32 %v1720, 0.0
  %v1874 = vmax.f32 %v1725, 0.0
  %v1875 = vmax.f32 %v1728, 0.0
  %v1876 = vmax.f32 %v1733, 0.0
  %v1877 = vmax.f32 %v1736, 0.0
  %v1878 = vmax.f32 %v1741, 0.0
  %v1879 = vmax.f32 %v1744, 0.0
  %v1880 = vmax.f32 %v1749, 0.0
  %v1881 = vmax.f32 %v1752, 0.0
  %v1882 = vmax.f32 %v1757, 0.0
  %v1883 = vmax.f32 %v1760, 0.0
  %v1884 = vmax.f32 %v1765, 0.0
  %v1885 = vmax.f32 %v1768, 0.0
  %v1886 = vmax.f32 %v1773, 0.0
  %v1887 = vmax.f32 %v1776, 0.0
  %v1888 = vmax.f32 %v1781, 0.0
  %v1889 = vmax.f32 %v1784, 0.0
  %v1890 = vmax.f32 %v1789, 0.0
  %v1891 = vmax.f32 %v1792, 0.0
  %v1892 = vmax.f32 %v1797, 0.0
  %v1893 = vmax.f32 %v1800, 0.0
  %v1894 = vmax.f32 %v1805, 0.0
  %v1895 = vmax.f32 %v1808, 0.0
  %v1896 = vmax.f32 %v1813, 0.0
  %v1897 = vmax.f32 %v1816, 0.0
  %v1898 = vmax.f32 %v1821, 0.0
  %v1899 = vadd.f32 %v1826, %v1827
  %v1900 = vadd.f32 %v1899, %v1828
  %v1901 = vadd.f32 %v1900, %v1829
  %v1902 = vadd.f32 %v1901, %v1830
  %v1903 = vadd.f32 %v1902, %v1831
  %v1904 = vadd.f32 %v1903, %v1832
  %v1905 = vadd.f32 %v1904, %v1833
  %v1906 = vadd.f32 %v1905, %v1834
  %v1907 = vadd.f32 %v1906, %v1835
  %v1908 = vadd.f32 %v1907, %v1836
  %v1909 = vadd.f32 %v1908, %v1837
  %v1910 = vadd.f32 %v1909, %v1838
  %v1911 = vadd.f32 %v1910, %v1839
  %v1912 = vadd.f32 %v1911, %v1840
  %v1913 = vadd.f32 %v1912, %v1841
  %v1914 = vadd.f32 %v1913, %v1842
  %v1915 = vadd.f32 %v1914, %v1843
  %v1916 = vadd.f32 %v1915, %v1844
  %v1917 = vadd.f32 %v1916, %v1845
  %v1918 = vadd.f32 %v1917, %v1846
  %v1919 = vadd.f32 %v1918, %v1847
  %v1920 = vadd.f32 %v1919, %v1848
  %v1921 = vadd.f32 %v1920, %v1849
  %v1922 = vadd.f32 %v1921, %v1850
  %v1923 = vadd.f32 %v1922, %v1851
  %v1924 = vadd.f32 %v1923, %v1852
  %v1925 = vadd.f32 %v1924, %v1853
  %v1926 = vadd.f32 %v1925, %v1854
  %v1927 = vadd.f32 %v1926, %v1855
  %v1928 = vadd.f32 %v1927, %v1856
  %v1929 = vadd.f32 %v1928, %v1857
  %v1930 = vadd.f32 %v1929, %v1858
  %v1931 = vadd.f32 %v1930, %v1859
  %v1932 = vadd.f32 %v1931, %v1860
  %v1933 = vadd.f32 %v1932, %v1861
  %v1934 = vadd.f32 %v1933, %v1862
  %v1935 = vadd.f32 %v1934, %v1863
  %v1936 = vadd.f32 %v1935, %v1864
  %v1937 = vadd.f32 %v1936, %v1865
  %v1938 = vadd.f32 %v1937, %v1866
  %v1939 = vadd.f32 %v1938, %v1867
  %v1940 = vadd.f32 %v1939, %v1868
  %v1941 = vadd.f32 %v1940, %v1869
  %v1942 = vadd.f32 %v1941, %v1870
  %v1943 = vadd.f32 %v1942, %v1871
  %v1944 = vadd.f32 %v1943, %v1872
  %v1945 = vadd.f32 %v1944, %v1873
  %v1946 = vadd.f32 %v1945, %v1874
  %v1947 = vadd.f32 %v1946, %v1875
  %v1948 = vadd.f32 %v1947, %v1876
  %v1949 = vadd.f32 %v1948, %v1877
  %v1950 = vadd.f32 %v1949, %v1878
  %v1951 = vadd.f32 %v1950, %v1879
  %v1952 = vadd.f32 %v1951, %v1880
  %v1953 = vadd.f32 %v1952, %v1881
  %v1954 = vadd.f32 %v1953, %v1882
  %v1955 = vadd.f32 %v1954, %v1883
  %v1956 = vadd.f32 %v1955, %v1884
  %v1957 = vadd.f32 %v1956, %v1885
  %v1958 = vadd.f32 %v1957, %v1886
  %v1959 = vadd.f32 %v1958, %v1887
  %v1960 = vadd.f32 %v1959, %v1888
  %v1961 = vadd.f32 %v1960, %v1889
  %v1962 = vadd.f32 %v1961, %v1890
  %v1963 = vadd.f32 %v1962, %v1891
  %v1964 = vadd.f32 %v1963, %v1892
  %v1965 = vadd.f32 %v1964, %v1893
  %v1966 = vadd.f32 %v1965, %v1894
  %v1967 = vadd.f32 %v1966, %v1895
  %v1968 = vadd.f32 %v1967, %v1896
  %v1969 = vadd.f32 %v1968, %v1897
  %vm1970 = vcmask 1041408
  %v1971 = vsel %vm1970, %v1898, 0.0
  %v1972 = vadd.f32 %v1969, %v1971
  %v1973 = vrot.slane %v1972, 4
  %v1974 = vadd.f32 %v1972, %v1973
  %v1975 = vrot.slane %v1974, 2
  %v1976 = vadd.f32 %v1974, %v1975
  %v1977 = vrot.slane %v1976, 1
  %v1978 = vadd.f32 %v1976, %v1977
  %v1979 = vmul.f32 %v1826, %v1826
  %v1980 = vmul.f32 %v1827, %v1827
  %v1981 = vmul.f32 %v1828, %v1828
  %v1982 = vmul.f32 %v1829, %v1829
  %v1983 = vmul.f32 %v1830, %v1830
  %v1984 = vmul.f32 %v1831, %v1831
  %v1985 = vmul.f32 %v1832, %v1832
  %v1986 = vmul.f32 %v1833, %v1833
  %v1987 = vmul.f32 %v1834, %v1834
  %v1988 = vmul.f32 %v1835, %v1835
  %v1989 = vmul.f32 %v1836, %v1836
  %v1990 = vmul.f32 %v1837, %v1837
  %v1991 = vmul.f32 %v1838, %v1838
  %v1992 = vmul.f32 %v1839, %v1839
  %v1993 = vmul.f32 %v1840, %v1840
  %v1994 = vmul.f32 %v1841, %v1841
  %v1995 = vmul.f32 %v1842, %v1842
  %v1996 = vmul.f32 %v1843, %v1843
  %v1997 = vmul.f32 %v1844, %v1844
  %v1998 = vmul.f32 %v1845, %v1845
  %v1999 = vmul.f32 %v1846, %v1846
  %v2000 = vmul.f32 %v1847, %v1847
  %v2001 = vmul.f32 %v1848, %v1848
  %v2002 = vmul.f32 %v1849, %v1849
  %v2003 = vmul.f32 %v1850, %v1850
  %v2004 = vmul.f32 %v1851, %v1851
  %v2005 = vmul.f32 %v1852, %v1852
  %v2006 = vmul.f32 %v1853, %v1853
  %v2007 = vmul.f32 %v1854, %v1854
  %v2008 = vmul.f32 %v1855, %v1855
  %v2009 = vmul.f32 %v1856, %v1856
  %v2010 = vmul.f32 %v1857, %v1857
  %v2011 = vmul.f32 %v1858, %v1858
  %v2012 = vmul.f32 %v1859, %v1859
  %v2013 = vmul.f32 %v1860, %v1860
  %v2014 = vmul.f32 %v1861, %v1861
  %v2015 = vmul.f32 %v1862, %v1862
  %v2016 = vmul.f32 %v1863, %v1863
  %v2017 = vmul.f32 %v1864, %v1864
  %v2018 = vmul.f32 %v1865, %v1865
  %v2019 = vmul.f32 %v1866, %v1866
  %v2020 = vmul.f32 %v1867, %v1867
  %v2021 = vmul.f32 %v1868, %v1868
  %v2022 = vmul.f32 %v1869, %v1869
  %v2023 = vmul.f32 %v1870, %v1870
  %v2024 = vmul.f32 %v1871, %v1871
  %v2025 = vmul.f32 %v1872, %v1872
  %v2026 = vmul.f32 %v1873, %v1873
  %v2027 = vmul.f32 %v1874, %v1874
  %v2028 = vmul.f32 %v1875, %v1875
  %v2029 = vmul.f32 %v1876, %v1876
  %v2030 = vmul.f32 %v1877, %v1877
  %v2031 = vmul.f32 %v1878, %v1878
  %v2032 = vmul.f32 %v1879, %v1879
  %v2033 = vmul.f32 %v1880, %v1880
  %v2034 = vmul.f32 %v1881, %v1881
  %v2035 = vmul.f32 %v1882, %v1882
  %v2036 = vmul.f32 %v1883, %v1883
  %v2037 = vmul.f32 %v1884, %v1884
  %v2038 = vmul.f32 %v1885, %v1885
  %v2039 = vmul.f32 %v1886, %v1886
  %v2040 = vmul.f32 %v1887, %v1887
  %v2041 = vmul.f32 %v1888, %v1888
  %v2042 = vmul.f32 %v1889, %v1889
  %v2043 = vmul.f32 %v1890, %v1890
  %v2044 = vmul.f32 %v1891, %v1891
  %v2045 = vmul.f32 %v1892, %v1892
  %v2046 = vmul.f32 %v1893, %v1893
  %v2047 = vmul.f32 %v1894, %v1894
  %v2048 = vmul.f32 %v1895, %v1895
  %v2049 = vmul.f32 %v1896, %v1896
  %v2050 = vmul.f32 %v1897, %v1897
  %v2051 = vmul.f32 %v1898, %v1898
  %v2052 = vadd.f32 %v1979, %v1980
  %v2053 = vadd.f32 %v2052, %v1981
  %v2054 = vadd.f32 %v2053, %v1982
  %v2055 = vadd.f32 %v2054, %v1983
  %v2056 = vadd.f32 %v2055, %v1984
  %v2057 = vadd.f32 %v2056, %v1985
  %v2058 = vadd.f32 %v2057, %v1986
  %v2059 = vadd.f32 %v2058, %v1987
  %v2060 = vadd.f32 %v2059, %v1988
  %v2061 = vadd.f32 %v2060, %v1989
  %v2062 = vadd.f32 %v2061, %v1990
  %v2063 = vadd.f32 %v2062, %v1991
  %v2064 = vadd.f32 %v2063, %v1992
  %v2065 = vadd.f32 %v2064, %v1993
  %v2066 = vadd.f32 %v2065, %v1994
  %v2067 = vadd.f32 %v2066, %v1995
  %v2068 = vadd.f32 %v2067, %v1996
  %v2069 = vadd.f32 %v2068, %v1997
  %v2070 = vadd.f32 %v2069, %v1998
  %v2071 = vadd.f32 %v2070, %v1999
  %v2072 = vadd.f32 %v2071, %v2000
  %v2073 = vadd.f32 %v2072, %v2001
  %v2074 = vadd.f32 %v2073, %v2002
  %v2075 = vadd.f32 %v2074, %v2003
  %v2076 = vadd.f32 %v2075, %v2004
  %v2077 = vadd.f32 %v2076, %v2005
  %v2078 = vadd.f32 %v2077, %v2006
  %v2079 = vadd.f32 %v2078, %v2007
  %v2080 = vadd.f32 %v2079, %v2008
  %v2081 = vadd.f32 %v2080, %v2009
  %v2082 = vadd.f32 %v2081, %v2010
  %v2083 = vadd.f32 %v2082, %v2011
  %v2084 = vadd.f32 %v2083, %v2012
  %v2085 = vadd.f32 %v2084, %v2013
  %v2086 = vadd.f32 %v2085, %v2014
  %v2087 = vadd.f32 %v2086, %v2015
  %v2088 = vadd.f32 %v2087, %v2016
  %v2089 = vadd.f32 %v2088, %v2017
  %v2090 = vadd.f32 %v2089, %v2018
  %v2091 = vadd.f32 %v2090, %v2019
  %v2092 = vadd.f32 %v2091, %v2020
  %v2093 = vadd.f32 %v2092, %v2021
  %v2094 = vadd.f32 %v2093, %v2022
  %v2095 = vadd.f32 %v2094, %v2023
  %v2096 = vadd.f32 %v2095, %v2024
  %v2097 = vadd.f32 %v2096, %v2025
  %v2098 = vadd.f32 %v2097, %v2026
  %v2099 = vadd.f32 %v2098, %v2027
  %v2100 = vadd.f32 %v2099, %v2028
  %v2101 = vadd.f32 %v2100, %v2029
  %v2102 = vadd.f32 %v2101, %v2030
  %v2103 = vadd.f32 %v2102, %v2031
  %v2104 = vadd.f32 %v2103, %v2032
  %v2105 = vadd.f32 %v2104, %v2033
  %v2106 = vadd.f32 %v2105, %v2034
  %v2107 = vadd.f32 %v2106, %v2035
  %v2108 = vadd.f32 %v2107, %v2036
  %v2109 = vadd.f32 %v2108, %v2037
  %v2110 = vadd.f32 %v2109, %v2038
  %v2111 = vadd.f32 %v2110, %v2039
  %v2112 = vadd.f32 %v2111, %v2040
  %v2113 = vadd.f32 %v2112, %v2041
  %v2114 = vadd.f32 %v2113, %v2042
  %v2115 = vadd.f32 %v2114, %v2043
  %v2116 = vadd.f32 %v2115, %v2044
  %v2117 = vadd.f32 %v2116, %v2045
  %v2118 = vadd.f32 %v2117, %v2046
  %v2119 = vadd.f32 %v2118, %v2047
  %v2120 = vadd.f32 %v2119, %v2048
  %v2121 = vadd.f32 %v2120, %v2049
  %v2122 = vadd.f32 %v2121, %v2050
  %v2123 = vsel %vm1970, %v2051, 0.0
  %v2124 = vadd.f32 %v2122, %v2123
  %v2125 = vrot.slane %v2124, 4
  %v2126 = vadd.f32 %v2124, %v2125
  %v2127 = vrot.slane %v2126, 2
  %v2128 = vadd.f32 %v2126, %v2127
  %v2129 = vrot.slane %v2128, 1
  %v2130 = vadd.f32 %v2128, %v2129
  %v2131 = vmul.f32 %v1978, 0.0017301039
  %v2132 = vmul.f32 %v2130, 0.0017301039
  %v2133 = vmul.f32 %v2131, %v2131
  %v2134 = vsub.f32 %v2132, %v2133
  %v2135 = vmax.f32 %v2134, 0.0
  %v2136 = vld [vmem:[%s3] sm:$0x1]
  %v2137 = vadd.f32 %v2135, 1e-05
  %v2138 = vrsqrt.pop %v2137
  %v2139 = vmul.f32 %v2136, %v2138
  %v2140 = vld [vmem:[%s4] sm:$0x1]
  %v2141 = vmul.f32 %v2131, %v2139
  %v2142 = vsub.f32 %v2140, %v2141
  %v2144 = vlaneseq
  %v2145 = vshrl.u32 %v2144, 7
  %v2146 = vsub.s32 0, %v2145
  %v2147 = vrot.slane %v2139, %v2146
  %v2149 = vmul.f32 %v1826, %v2147
  %v2150 = vmul.f32 %v1827, %v2147
  %v2151 = vmul.f32 %v1828, %v2147
  %v2152 = vmul.f32 %v1829, %v2147
  %v2153 = vmul.f32 %v1830, %v2147
  %v2154 = vmul.f32 %v1831, %v2147
  %v2155 = vmul.f32 %v1832, %v2147
  %v2156 = vmul.f32 %v1833, %v2147
  %v2157 = vmul.f32 %v1834, %v2147
  %v2158 = vmul.f32 %v1835, %v2147
  %v2159 = vmul.f32 %v1836, %v2147
  %v2160 = vmul.f32 %v1837, %v2147
  %v2161 = vmul.f32 %v1838, %v2147
  %v2162 = vmul.f32 %v1839, %v2147
  %v2163 = vmul.f32 %v1840, %v2147
  %v2164 = vmul.f32 %v1841, %v2147
  %v2165 = vmul.f32 %v1842, %v2147
  %v2166 = vmul.f32 %v1843, %v2147
  %v2167 = vmul.f32 %v1844, %v2147
  %v2168 = vmul.f32 %v1845, %v2147
  %v2169 = vmul.f32 %v1846, %v2147
  %v2170 = vmul.f32 %v1847, %v2147
  %v2171 = vmul.f32 %v1848, %v2147
  %v2172 = vmul.f32 %v1849, %v2147
  %v2173 = vmul.f32 %v1850, %v2147
  %v2174 = vmul.f32 %v1851, %v2147
  %v2175 = vmul.f32 %v1852, %v2147
  %v2176 = vmul.f32 %v1853, %v2147
  %v2177 = vmul.f32 %v1854, %v2147
  %v2178 = vmul.f32 %v1855, %v2147
  %v2179 = vmul.f32 %v1856, %v2147
  %v2180 = vmul.f32 %v1857, %v2147
  %v2181 = vmul.f32 %v1858, %v2147
  %v2182 = vmul.f32 %v1859, %v2147
  %v2183 = vmul.f32 %v1860, %v2147
  %v2184 = vmul.f32 %v1861, %v2147
  %v2185 = vmul.f32 %v1862, %v2147
  %v2186 = vmul.f32 %v1863, %v2147
  %v2187 = vmul.f32 %v1864, %v2147
  %v2188 = vmul.f32 %v1865, %v2147
  %v2189 = vmul.f32 %v1866, %v2147
  %v2190 = vmul.f32 %v1867, %v2147
  %v2191 = vmul.f32 %v1868, %v2147
  %v2192 = vmul.f32 %v1869, %v2147
  %v2193 = vmul.f32 %v1870, %v2147
  %v2194 = vmul.f32 %v1871, %v2147
  %v2195 = vmul.f32 %v1872, %v2147
  %v2196 = vmul.f32 %v1873, %v2147
  %v2197 = vmul.f32 %v1874, %v2147
  %v2198 = vmul.f32 %v1875, %v2147
  %v2199 = vmul.f32 %v1876, %v2147
  %v2200 = vmul.f32 %v1877, %v2147
  %v2201 = vmul.f32 %v1878, %v2147
  %v2202 = vmul.f32 %v1879, %v2147
  %v2203 = vmul.f32 %v1880, %v2147
  %v2204 = vmul.f32 %v1881, %v2147
  %v2205 = vmul.f32 %v1882, %v2147
  %v2206 = vmul.f32 %v1883, %v2147
  %v2207 = vmul.f32 %v1884, %v2147
  %v2208 = vmul.f32 %v1885, %v2147
  %v2209 = vmul.f32 %v1886, %v2147
  %v2210 = vmul.f32 %v1887, %v2147
  %v2211 = vmul.f32 %v1888, %v2147
  %v2212 = vmul.f32 %v1889, %v2147
  %v2213 = vmul.f32 %v1890, %v2147
  %v2214 = vmul.f32 %v1891, %v2147
  %v2215 = vmul.f32 %v1892, %v2147
  %v2216 = vmul.f32 %v1893, %v2147
  %v2217 = vmul.f32 %v1894, %v2147
  %v2218 = vmul.f32 %v1895, %v2147
  %v2219 = vmul.f32 %v1896, %v2147
  %v2220 = vmul.f32 %v1897, %v2147
  %v2221 = vmul.f32 %v1898, %v2147
  %v2223 = vlaneseq
  %v2224 = vshrl.u32 %v2223, 7
  %v2225 = vsub.s32 0, %v2224
  %v2226 = vrot.slane %v2142, %v2225
  %v2228 = vadd.f32 %v2149, %v2226
  %v2229 = vadd.f32 %v2150, %v2226
  %v2230 = vadd.f32 %v2151, %v2226
  %v2231 = vadd.f32 %v2152, %v2226
  %v2232 = vadd.f32 %v2153, %v2226
  %v2233 = vadd.f32 %v2154, %v2226
  %v2234 = vadd.f32 %v2155, %v2226
  %v2235 = vadd.f32 %v2156, %v2226
  %v2236 = vadd.f32 %v2157, %v2226
  %v2237 = vadd.f32 %v2158, %v2226
  %v2238 = vadd.f32 %v2159, %v2226
  %v2239 = vadd.f32 %v2160, %v2226
  %v2240 = vadd.f32 %v2161, %v2226
  %v2241 = vadd.f32 %v2162, %v2226
  %v2242 = vadd.f32 %v2163, %v2226
  %v2243 = vadd.f32 %v2164, %v2226
  %v2244 = vadd.f32 %v2165, %v2226
  %v2245 = vadd.f32 %v2166, %v2226
  %v2246 = vadd.f32 %v2167, %v2226
  %v2247 = vadd.f32 %v2168, %v2226
  %v2248 = vadd.f32 %v2169, %v2226
  %v2249 = vadd.f32 %v2170, %v2226
  %v2250 = vadd.f32 %v2171, %v2226
  %v2251 = vadd.f32 %v2172, %v2226
  %v2252 = vadd.f32 %v2173, %v2226
  %v2253 = vadd.f32 %v2174, %v2226
  %v2254 = vadd.f32 %v2175, %v2226
  %v2255 = vadd.f32 %v2176, %v2226
  %v2256 = vadd.f32 %v2177, %v2226
  %v2257 = vadd.f32 %v2178, %v2226
  %v2258 = vadd.f32 %v2179, %v2226
  %v2259 = vadd.f32 %v2180, %v2226
  %v2260 = vadd.f32 %v2181, %v2226
  %v2261 = vadd.f32 %v2182, %v2226
  %v2262 = vadd.f32 %v2183, %v2226
  %v2263 = vadd.f32 %v2184, %v2226
  %v2264 = vadd.f32 %v2185, %v2226
  %v2265 = vadd.f32 %v2186, %v2226
  %v2266 = vadd.f32 %v2187, %v2226
  %v2267 = vadd.f32 %v2188, %v2226
  %v2268 = vadd.f32 %v2189, %v2226
  %v2269 = vadd.f32 %v2190, %v2226
  %v2270 = vadd.f32 %v2191, %v2226
  %v2271 = vadd.f32 %v2192, %v2226
  %v2272 = vadd.f32 %v2193, %v2226
  %v2273 = vadd.f32 %v2194, %v2226
  %v2274 = vadd.f32 %v2195, %v2226
  %v2275 = vadd.f32 %v2196, %v2226
  %v2276 = vadd.f32 %v2197, %v2226
  %v2277 = vadd.f32 %v2198, %v2226
  %v2278 = vadd.f32 %v2199, %v2226
  %v2279 = vadd.f32 %v2200, %v2226
  %v2280 = vadd.f32 %v2201, %v2226
  %v2281 = vadd.f32 %v2202, %v2226
  %v2282 = vadd.f32 %v2203, %v2226
  %v2283 = vadd.f32 %v2204, %v2226
  %v2284 = vadd.f32 %v2205, %v2226
  %v2285 = vadd.f32 %v2206, %v2226
  %v2286 = vadd.f32 %v2207, %v2226
  %v2287 = vadd.f32 %v2208, %v2226
  %v2288 = vadd.f32 %v2209, %v2226
  %v2289 = vadd.f32 %v2210, %v2226
  %v2290 = vadd.f32 %v2211, %v2226
  %v2291 = vadd.f32 %v2212, %v2226
  %v2292 = vadd.f32 %v2213, %v2226
  %v2293 = vadd.f32 %v2214, %v2226
  %v2294 = vadd.f32 %v2215, %v2226
  %v2295 = vadd.f32 %v2216, %v2226
  %v2296 = vadd.f32 %v2217, %v2226
  %v2297 = vadd.f32 %v2218, %v2226
  %v2298 = vadd.f32 %v2219, %v2226
  %v2299 = vadd.f32 %v2220, %v2226
  %v2300 = vadd.f32 %v2221, %v2226
  %v2301 = vpack.c.bf16 %v2229, %v2228
  %v2302 = vpack.c.bf16 %v2231, %v2230
  %v2303 = vpack.c.bf16 %v2233, %v2232
  %v2304 = vpack.c.bf16 %v2235, %v2234
  %v2305 = vpack.c.bf16 %v2237, %v2236
  %v2306 = vpack.c.bf16 %v2239, %v2238
  %v2307 = vpack.c.bf16 %v2241, %v2240
  %v2308 = vpack.c.bf16 %v2243, %v2242
  %v2309 = vpack.c.bf16 %v2245, %v2244
  %v2310 = vpack.c.bf16 %v2247, %v2246
  %v2311 = vpack.c.bf16 %v2249, %v2248
  %v2312 = vpack.c.bf16 %v2251, %v2250
  %v2313 = vpack.c.bf16 %v2253, %v2252
  %v2314 = vpack.c.bf16 %v2255, %v2254
  %v2315 = vpack.c.bf16 %v2257, %v2256
  %v2316 = vpack.c.bf16 %v2259, %v2258
  %v2317 = vpack.c.bf16 %v2261, %v2260
  %v2318 = vpack.c.bf16 %v2263, %v2262
  %v2319 = vpack.c.bf16 %v2265, %v2264
  %v2320 = vpack.c.bf16 %v2267, %v2266
  %v2321 = vpack.c.bf16 %v2269, %v2268
  %v2322 = vpack.c.bf16 %v2271, %v2270
  %v2323 = vpack.c.bf16 %v2273, %v2272
  %v2324 = vpack.c.bf16 %v2275, %v2274
  %v2325 = vpack.c.bf16 %v2277, %v2276
  %v2326 = vpack.c.bf16 %v2279, %v2278
  %v2327 = vpack.c.bf16 %v2281, %v2280
  %v2328 = vpack.c.bf16 %v2283, %v2282
  %v2329 = vpack.c.bf16 %v2285, %v2284
  %v2330 = vpack.c.bf16 %v2287, %v2286
  %v2331 = vpack.c.bf16 %v2289, %v2288
  %v2332 = vpack.c.bf16 %v2291, %v2290
  %v2333 = vpack.c.bf16 %v2293, %v2292
  %v2334 = vpack.c.bf16 %v2295, %v2294
  %v2335 = vpack.c.bf16 %v2297, %v2296
  %v2336 = vpack.c.bf16 %v2299, %v2298
  %v2337 = vpack.c.bf16 %v2300, %v2300
  %v2338 = vld [vmem:[%s5] sm:$0xf]
  %v2339 = vld [vmem:[%s5 + $0x4] sm:$0xf]
  %v2340 = vld [vmem:[%s5 + $0x8] sm:$0xf]
  %v2341 = vld [vmem:[%s5 + $0xc] sm:$0xf]
  %v2342 = vld [vmem:[%s5 + $0x10] sm:$0xf]
  %v2343 = vld [vmem:[%s5 + $0x14] sm:$0xf]
  %v2344 = vld [vmem:[%s5 + $0x18] sm:$0xf]
  %v2345 = vld [vmem:[%s5 + $0x1c] sm:$0xf]
  %v2346 = vld [vmem:[%s5 + $0x20] sm:$0xf]
  %v2347 = vld [vmem:[%s5 + $0x24] sm:$0xf]
  %v2348 = vld [vmem:[%s5 + $0x28] sm:$0xf]
  %v2349 = vld [vmem:[%s5 + $0x2c] sm:$0xf]
  %v2350 = vld [vmem:[%s5 + $0x30] sm:$0xf]
  %v2351 = vld [vmem:[%s5 + $0x34] sm:$0xf]
  %v2352 = vld [vmem:[%s5 + $0x38] sm:$0xf]
  %v2353 = vld [vmem:[%s5 + $0x3c] sm:$0xf]
  %v2354 = vld [vmem:[%s6] sm:$0x1]
  %v2356 = vlaneseq
  %v2357 = vshrl.u32 %v2356, 7
  %v2358 = vsub.s32 0, %v2357
  %v2359 = vrot.slane %v2354, %v2358
  %v2377 = vunpack.c.l.b16 %v2338
  %v2378 = vunpack.c.l.b16 %v2339
  %v2379 = vunpack.c.l.b16 %v2340
  %v2380 = vunpack.c.l.b16 %v2341
  %v2381 = vunpack.c.l.b16 %v2342
  %v2382 = vunpack.c.l.b16 %v2343
  %v2383 = vunpack.c.l.b16 %v2344
  %v2384 = vunpack.c.l.b16 %v2345
  %v2385 = vunpack.c.l.b16 %v2346
  %v2386 = vunpack.c.l.b16 %v2347
  %v2387 = vunpack.c.l.b16 %v2348
  %v2388 = vunpack.c.l.b16 %v2349
  %v2389 = vunpack.c.l.b16 %v2350
  %v2390 = vunpack.c.l.b16 %v2351
  %v2391 = vunpack.c.l.b16 %v2352
  %v2392 = vunpack.c.l.b16 %v2353
  %v2393 = vpack.c.b16 %v2378, %v2377
  %v2394 = vpack.c.b16 %v2380, %v2379
  %v2395 = vpack.c.b16 %v2382, %v2381
  %v2396 = vpack.c.b16 %v2384, %v2383
  %v2397 = vpack.c.b16 %v2386, %v2385
  %v2398 = vpack.c.b16 %v2388, %v2387
  %v2399 = vpack.c.b16 %v2390, %v2389
  %v2400 = vpack.c.b16 %v2392, %v2391
  %2409 = vmatprep.subr.bf16.mxu0 0
  %2410 = vmatpush1.bf16.msra.mxu0 %v2400
  %2411 = vmatprep.subr.bf16.mxu0 0
  %2412 = vmatpush1.bf16.msra.mxu0 %v2399
  %2413 = vmatprep.subr.bf16.mxu0 0
  %2414 = vmatpush1.bf16.msra.mxu0 %v2398
  %2415 = vmatprep.subr.bf16.mxu0 0
  %2416 = vmatpush1.bf16.msra.mxu0 %v2397
  %2417 = vmatprep.subr.bf16.mxu0 0
  %2418 = vmatpush1.bf16.msra.mxu0 %v2396
  %2419 = vmatprep.subr.bf16.mxu0 0
  %2420 = vmatpush1.bf16.msra.mxu0 %v2395
  %2421 = vmatprep.subr.bf16.mxu0 0
  %2422 = vmatpush1.bf16.msra.mxu0 %v2394
  %2423 = vmatprep.subr.bf16.mxu0 0
  %2424 = vmatpush1.bf16.msra.mxu0 %v2393
  %2425 = vmatprep.subr.bf16.mxu0 0
  %2426 = vmatpush2.bf16.msra.mxu0 0
  %2427 = vmatprep.subr.bf16.mxu0 0
  %2428 = vmatpush2.bf16.msra.mxu0 0
  %2429 = vmatprep.subr.bf16.mxu0 0
  %2430 = vmatpush2.bf16.msra.mxu0 0
  %2431 = vmatprep.subr.bf16.mxu0 0
  %2432 = vmatpush2.bf16.msra.mxu0 0
  %2433 = vmatprep.subr.bf16.mxu0 0
  %2434 = vmatpush2.bf16.msra.mxu0 0
  %2435 = vmatprep.subr.bf16.mxu0 0
  %2436 = vmatpush2.bf16.msra.mxu0 0
  %2437 = vmatprep.subr.bf16.mxu0 0
  %2438 = vmatpush2.bf16.msra.mxu0 0
  %2439 = vmatprep.subr.bf16.mxu0 0
  %2440 = vmatpush2.bf16.msra.mxu0 0
  %2441 = vmatprep.mubr.bf16.mxu0 0
  %2442 = vmatmul.mubr.bf16.gmra.mxu0 %v2301
  %v2443 = vpop.f32.mrf.mxu0
  %v2444 = vadd.f32 %v2359, %v2443
  %v2445 = vpop.f32.mrf.mxu0
  %v2446 = vpop.f32.mrf.mxu0
  %v2447 = vadd.f32 %v2359, %v2446
  %v2448 = vpop.f32.mrf.mxu0
  %2449 = vmatprep.mubr.bf16.mxu0 0
  %2450 = vmatmul.mubr.bf16.gmra.mxu0 %v2302
  %v2451 = vpop.f32.mrf.mxu0
  %v2452 = vadd.f32 %v2359, %v2451
  %v2453 = vpop.f32.mrf.mxu0
  %v2454 = vpop.f32.mrf.mxu0
  %v2455 = vadd.f32 %v2359, %v2454
  %v2456 = vpop.f32.mrf.mxu0
  %2457 = vmatprep.mubr.bf16.mxu0 0
  %2458 = vmatmul.mubr.bf16.gmra.mxu0 %v2303
  %v2459 = vpop.f32.mrf.mxu0
  %v2460 = vadd.f32 %v2359, %v2459
  %v2461 = vpop.f32.mrf.mxu0
  %v2462 = vpop.f32.mrf.mxu0
  %v2463 = vadd.f32 %v2359, %v2462
  %v2464 = vpop.f32.mrf.mxu0
  %2465 = vmatprep.mubr.bf16.mxu0 0
  %2466 = vmatmul.mubr.bf16.gmra.mxu0 %v2304
  %v2467 = vpop.f32.mrf.mxu0
  %v2468 = vadd.f32 %v2359, %v2467
  %v2469 = vpop.f32.mrf.mxu0
  %v2470 = vpop.f32.mrf.mxu0
  %v2471 = vadd.f32 %v2359, %v2470
  %v2472 = vpop.f32.mrf.mxu0
  %2473 = vmatprep.mubr.bf16.mxu0 0
  %2474 = vmatmul.mubr.bf16.gmra.mxu0 %v2305
  %v2475 = vpop.f32.mrf.mxu0
  %v2476 = vadd.f32 %v2359, %v2475
  %v2477 = vpop.f32.mrf.mxu0
  %v2478 = vpop.f32.mrf.mxu0
  %v2479 = vadd.f32 %v2359, %v2478
  %v2480 = vpop.f32.mrf.mxu0
  %2481 = vmatprep.mubr.bf16.mxu0 0
  %2482 = vmatmul.mubr.bf16.gmra.mxu0 %v2306
  %v2483 = vpop.f32.mrf.mxu0
  %v2484 = vadd.f32 %v2359, %v2483
  %v2485 = vpop.f32.mrf.mxu0
  %v2486 = vpop.f32.mrf.mxu0
  %v2487 = vadd.f32 %v2359, %v2486
  %v2488 = vpop.f32.mrf.mxu0
  %2489 = vmatprep.mubr.bf16.mxu0 0
  %2490 = vmatmul.mubr.bf16.gmra.mxu0 %v2307
  %v2491 = vpop.f32.mrf.mxu0
  %v2492 = vadd.f32 %v2359, %v2491
  %v2493 = vpop.f32.mrf.mxu0
  %v2494 = vpop.f32.mrf.mxu0
  %v2495 = vadd.f32 %v2359, %v2494
  %v2496 = vpop.f32.mrf.mxu0
  %2497 = vmatprep.mubr.bf16.mxu0 0
  %2498 = vmatmul.mubr.bf16.gmra.mxu0 %v2308
  %v2499 = vpop.f32.mrf.mxu0
  %v2500 = vadd.f32 %v2359, %v2499
  %v2501 = vpop.f32.mrf.mxu0
  %v2502 = vpop.f32.mrf.mxu0
  %v2503 = vadd.f32 %v2359, %v2502
  %v2504 = vpop.f32.mrf.mxu0
  %2505 = vmatprep.mubr.bf16.mxu0 0
  %2506 = vmatmul.mubr.bf16.gmra.mxu0 %v2309
  %v2507 = vpop.f32.mrf.mxu0
  %v2508 = vadd.f32 %v2359, %v2507
  %v2509 = vpop.f32.mrf.mxu0
  %v2510 = vpop.f32.mrf.mxu0
  %v2511 = vadd.f32 %v2359, %v2510
  %v2512 = vpop.f32.mrf.mxu0
  %2513 = vmatprep.mubr.bf16.mxu0 0
  %2514 = vmatmul.mubr.bf16.gmra.mxu0 %v2310
  %v2515 = vpop.f32.mrf.mxu0
  %v2516 = vadd.f32 %v2359, %v2515
  %v2517 = vpop.f32.mrf.mxu0
  %v2518 = vpop.f32.mrf.mxu0
  %v2519 = vadd.f32 %v2359, %v2518
  %v2520 = vpop.f32.mrf.mxu0
  %2521 = vmatprep.mubr.bf16.mxu0 0
  %2522 = vmatmul.mubr.bf16.gmra.mxu0 %v2311
  %v2523 = vpop.f32.mrf.mxu0
  %v2524 = vadd.f32 %v2359, %v2523
  %v2525 = vpop.f32.mrf.mxu0
  %v2526 = vpop.f32.mrf.mxu0
  %v2527 = vadd.f32 %v2359, %v2526
  %v2528 = vpop.f32.mrf.mxu0
  %2529 = vmatprep.mubr.bf16.mxu0 0
  %2530 = vmatmul.mubr.bf16.gmra.mxu0 %v2312
  %v2531 = vpop.f32.mrf.mxu0
  %v2532 = vadd.f32 %v2359, %v2531
  %v2533 = vpop.f32.mrf.mxu0
  %v2534 = vpop.f32.mrf.mxu0
  %v2535 = vadd.f32 %v2359, %v2534
  %v2536 = vpop.f32.mrf.mxu0
  %2537 = vmatprep.mubr.bf16.mxu0 0
  %2538 = vmatmul.mubr.bf16.gmra.mxu0 %v2313
  %v2539 = vpop.f32.mrf.mxu0
  %v2540 = vadd.f32 %v2359, %v2539
  %v2541 = vpop.f32.mrf.mxu0
  %v2542 = vpop.f32.mrf.mxu0
  %v2543 = vadd.f32 %v2359, %v2542
  %v2544 = vpop.f32.mrf.mxu0
  %2545 = vmatprep.mubr.bf16.mxu0 0
  %2546 = vmatmul.mubr.bf16.gmra.mxu0 %v2314
  %v2547 = vpop.f32.mrf.mxu0
  %v2548 = vadd.f32 %v2359, %v2547
  %v2549 = vpop.f32.mrf.mxu0
  %v2550 = vpop.f32.mrf.mxu0
  %v2551 = vadd.f32 %v2359, %v2550
  %v2552 = vpop.f32.mrf.mxu0
  %2553 = vmatprep.mubr.bf16.mxu0 0
  %2554 = vmatmul.mubr.bf16.gmra.mxu0 %v2315
  %v2555 = vpop.f32.mrf.mxu0
  %v2556 = vadd.f32 %v2359, %v2555
  %v2557 = vpop.f32.mrf.mxu0
  %v2558 = vpop.f32.mrf.mxu0
  %v2559 = vadd.f32 %v2359, %v2558
  %v2560 = vpop.f32.mrf.mxu0
  %2561 = vmatprep.mubr.bf16.mxu0 0
  %2562 = vmatmul.mubr.bf16.gmra.mxu0 %v2316
  %v2563 = vpop.f32.mrf.mxu0
  %v2564 = vadd.f32 %v2359, %v2563
  %v2565 = vpop.f32.mrf.mxu0
  %v2566 = vpop.f32.mrf.mxu0
  %v2567 = vadd.f32 %v2359, %v2566
  %v2568 = vpop.f32.mrf.mxu0
  %2569 = vmatprep.mubr.bf16.mxu0 0
  %2570 = vmatmul.mubr.bf16.gmra.mxu0 %v2317
  %v2571 = vpop.f32.mrf.mxu0
  %v2572 = vadd.f32 %v2359, %v2571
  %v2573 = vpop.f32.mrf.mxu0
  %v2574 = vpop.f32.mrf.mxu0
  %v2575 = vadd.f32 %v2359, %v2574
  %v2576 = vpop.f32.mrf.mxu0
  %2577 = vmatprep.mubr.bf16.mxu0 0
  %2578 = vmatmul.mubr.bf16.gmra.mxu0 %v2318
  %v2579 = vpop.f32.mrf.mxu0
  %v2580 = vadd.f32 %v2359, %v2579
  %v2581 = vpop.f32.mrf.mxu0
  %v2582 = vpop.f32.mrf.mxu0
  %v2583 = vadd.f32 %v2359, %v2582
  %v2584 = vpop.f32.mrf.mxu0
  %2585 = vmatprep.mubr.bf16.mxu0 0
  %2586 = vmatmul.mubr.bf16.gmra.mxu0 %v2319
  %v2587 = vpop.f32.mrf.mxu0
  %v2588 = vadd.f32 %v2359, %v2587
  %v2589 = vpop.f32.mrf.mxu0
  %v2590 = vpop.f32.mrf.mxu0
  %v2591 = vadd.f32 %v2359, %v2590
  %v2592 = vpop.f32.mrf.mxu0
  %2593 = vmatprep.mubr.bf16.mxu0 0
  %2594 = vmatmul.mubr.bf16.gmra.mxu0 %v2320
  %v2595 = vpop.f32.mrf.mxu0
  %v2596 = vadd.f32 %v2359, %v2595
  %v2597 = vpop.f32.mrf.mxu0
  %v2598 = vpop.f32.mrf.mxu0
  %v2599 = vadd.f32 %v2359, %v2598
  %v2600 = vpop.f32.mrf.mxu0
  %2601 = vmatprep.mubr.bf16.mxu0 0
  %2602 = vmatmul.mubr.bf16.gmra.mxu0 %v2321
  %v2603 = vpop.f32.mrf.mxu0
  %v2604 = vadd.f32 %v2359, %v2603
  %v2605 = vpop.f32.mrf.mxu0
  %v2606 = vpop.f32.mrf.mxu0
  %v2607 = vadd.f32 %v2359, %v2606
  %v2608 = vpop.f32.mrf.mxu0
  %2609 = vmatprep.mubr.bf16.mxu0 0
  %2610 = vmatmul.mubr.bf16.gmra.mxu0 %v2322
  %v2611 = vpop.f32.mrf.mxu0
  %v2612 = vadd.f32 %v2359, %v2611
  %v2613 = vpop.f32.mrf.mxu0
  %v2614 = vpop.f32.mrf.mxu0
  %v2615 = vadd.f32 %v2359, %v2614
  %v2616 = vpop.f32.mrf.mxu0
  %2617 = vmatprep.mubr.bf16.mxu0 0
  %2618 = vmatmul.mubr.bf16.gmra.mxu0 %v2323
  %v2619 = vpop.f32.mrf.mxu0
  %v2620 = vadd.f32 %v2359, %v2619
  %v2621 = vpop.f32.mrf.mxu0
  %v2622 = vpop.f32.mrf.mxu0
  %v2623 = vadd.f32 %v2359, %v2622
  %v2624 = vpop.f32.mrf.mxu0
  %2625 = vmatprep.mubr.bf16.mxu0 0
  %2626 = vmatmul.mubr.bf16.gmra.mxu0 %v2324
  %v2627 = vpop.f32.mrf.mxu0
  %v2628 = vadd.f32 %v2359, %v2627
  %v2629 = vpop.f32.mrf.mxu0
  %v2630 = vpop.f32.mrf.mxu0
  %v2631 = vadd.f32 %v2359, %v2630
  %v2632 = vpop.f32.mrf.mxu0
  %2633 = vmatprep.mubr.bf16.mxu0 0
  %2634 = vmatmul.mubr.bf16.gmra.mxu0 %v2325
  %v2635 = vpop.f32.mrf.mxu0
  %v2636 = vadd.f32 %v2359, %v2635
  %v2637 = vpop.f32.mrf.mxu0
  %v2638 = vpop.f32.mrf.mxu0
  %v2639 = vadd.f32 %v2359, %v2638
  %v2640 = vpop.f32.mrf.mxu0
  %2641 = vmatprep.mubr.bf16.mxu0 0
  %2642 = vmatmul.mubr.bf16.gmra.mxu0 %v2326
  %v2643 = vpop.f32.mrf.mxu0
  %v2644 = vadd.f32 %v2359, %v2643
  %v2645 = vpop.f32.mrf.mxu0
  %v2646 = vpop.f32.mrf.mxu0
  %v2647 = vadd.f32 %v2359, %v2646
  %v2648 = vpop.f32.mrf.mxu0
  %2649 = vmatprep.mubr.bf16.mxu0 0
  %2650 = vmatmul.mubr.bf16.gmra.mxu0 %v2327
  %v2651 = vpop.f32.mrf.mxu0
  %v2652 = vadd.f32 %v2359, %v2651
  %v2653 = vpop.f32.mrf.mxu0
  %v2654 = vpop.f32.mrf.mxu0
  %v2655 = vadd.f32 %v2359, %v2654
  %v2656 = vpop.f32.mrf.mxu0
  %2657 = vmatprep.mubr.bf16.mxu0 0
  %2658 = vmatmul.mubr.bf16.gmra.mxu0 %v2328
  %v2659 = vpop.f32.mrf.mxu0
  %v2660 = vadd.f32 %v2359, %v2659
  %v2661 = vpop.f32.mrf.mxu0
  %v2662 = vpop.f32.mrf.mxu0
  %v2663 = vadd.f32 %v2359, %v2662
  %v2664 = vpop.f32.mrf.mxu0
  %2665 = vmatprep.mubr.bf16.mxu0 0
  %2666 = vmatmul.mubr.bf16.gmra.mxu0 %v2329
  %v2667 = vpop.f32.mrf.mxu0
  %v2668 = vadd.f32 %v2359, %v2667
  %v2669 = vpop.f32.mrf.mxu0
  %v2670 = vpop.f32.mrf.mxu0
  %v2671 = vadd.f32 %v2359, %v2670
  %v2672 = vpop.f32.mrf.mxu0
  %2673 = vmatprep.mubr.bf16.mxu0 0
  %2674 = vmatmul.mubr.bf16.gmra.mxu0 %v2330
  %v2675 = vpop.f32.mrf.mxu0
  %v2676 = vadd.f32 %v2359, %v2675
  %v2677 = vpop.f32.mrf.mxu0
  %v2678 = vpop.f32.mrf.mxu0
  %v2679 = vadd.f32 %v2359, %v2678
  %v2680 = vpop.f32.mrf.mxu0
  %2681 = vmatprep.mubr.bf16.mxu0 0
  %2682 = vmatmul.mubr.bf16.gmra.mxu0 %v2331
  %v2683 = vpop.f32.mrf.mxu0
  %v2684 = vadd.f32 %v2359, %v2683
  %v2685 = vpop.f32.mrf.mxu0
  %v2686 = vpop.f32.mrf.mxu0
  %v2687 = vadd.f32 %v2359, %v2686
  %v2688 = vpop.f32.mrf.mxu0
  %2689 = vmatprep.mubr.bf16.mxu0 0
  %2690 = vmatmul.mubr.bf16.gmra.mxu0 %v2332
  %v2691 = vpop.f32.mrf.mxu0
  %v2692 = vadd.f32 %v2359, %v2691
  %v2693 = vpop.f32.mrf.mxu0
  %v2694 = vpop.f32.mrf.mxu0
  %v2695 = vadd.f32 %v2359, %v2694
  %v2696 = vpop.f32.mrf.mxu0
  %2697 = vmatprep.mubr.bf16.mxu0 0
  %2698 = vmatmul.mubr.bf16.gmra.mxu0 %v2333
  %v2699 = vpop.f32.mrf.mxu0
  %v2700 = vadd.f32 %v2359, %v2699
  %v2701 = vpop.f32.mrf.mxu0
  %v2702 = vpop.f32.mrf.mxu0
  %v2703 = vadd.f32 %v2359, %v2702
  %v2704 = vpop.f32.mrf.mxu0
  %2705 = vmatprep.mubr.bf16.mxu0 0
  %2706 = vmatmul.mubr.bf16.gmra.mxu0 %v2334
  %v2707 = vpop.f32.mrf.mxu0
  %v2708 = vadd.f32 %v2359, %v2707
  %v2709 = vpop.f32.mrf.mxu0
  %v2710 = vpop.f32.mrf.mxu0
  %v2711 = vadd.f32 %v2359, %v2710
  %v2712 = vpop.f32.mrf.mxu0
  %2713 = vmatprep.mubr.bf16.mxu0 0
  %2714 = vmatmul.mubr.bf16.gmra.mxu0 %v2335
  %v2715 = vpop.f32.mrf.mxu0
  %v2716 = vadd.f32 %v2359, %v2715
  %v2717 = vpop.f32.mrf.mxu0
  %v2718 = vpop.f32.mrf.mxu0
  %v2719 = vadd.f32 %v2359, %v2718
  %v2720 = vpop.f32.mrf.mxu0
  %2721 = vmatprep.mubr.bf16.mxu0 0
  %2722 = vmatmul.mubr.bf16.gmra.mxu0 %v2336
  %v2723 = vpop.f32.mrf.mxu0
  %v2724 = vadd.f32 %v2359, %v2723
  %v2725 = vpop.f32.mrf.mxu0
  %v2726 = vpop.f32.mrf.mxu0
  %v2727 = vadd.f32 %v2359, %v2726
  %v2728 = vpop.f32.mrf.mxu0
  %2729 = vmatprep.mubr.bf16.mxu0 0
  %2730 = vmatmul.mubr.bf16.gmra.mxu0 %v2337
  %v2731 = vpop.f32.mrf.mxu0
  %v2732 = vadd.f32 %v2359, %v2731
  %v2733 = vpop.f32.mrf.mxu0
  %v2734 = vpop.f32.mrf.mxu0
  %v2735 = vpop.f32.mrf.mxu0
  %2736 = vdwg.mxu0
  %2737 = vst [vmem:[%s7] sm:$0xff] %v2444
  %2738 = vst [vmem:[%s7 + $0x8] sm:$0xff] %v2447
  %2739 = vst [vmem:[%s7 + $0x10] sm:$0xff] %v2452
  %2740 = vst [vmem:[%s7 + $0x18] sm:$0xff] %v2455
  %2741 = vst [vmem:[%s7 + $0x20] sm:$0xff] %v2460
  %2742 = vst [vmem:[%s7 + $0x28] sm:$0xff] %v2463
  %2743 = vst [vmem:[%s7 + $0x30] sm:$0xff] %v2468
  %2744 = vst [vmem:[%s7 + $0x38] sm:$0xff] %v2471
  %2745 = vst [vmem:[%s7 + $0x40] sm:$0xff] %v2476
  %2746 = vst [vmem:[%s7 + $0x48] sm:$0xff] %v2479
  %2747 = vst [vmem:[%s7 + $0x50] sm:$0xff] %v2484
  %2748 = vst [vmem:[%s7 + $0x58] sm:$0xff] %v2487
  %2749 = vst [vmem:[%s7 + $0x60] sm:$0xff] %v2492
  %2750 = vst [vmem:[%s7 + $0x68] sm:$0xff] %v2495
  %2751 = vst [vmem:[%s7 + $0x70] sm:$0xff] %v2500
  %2752 = vst [vmem:[%s7 + $0x78] sm:$0xff] %v2503
  %2753 = vst [vmem:[%s7 + $0x80] sm:$0xff] %v2508
  %2754 = vst [vmem:[%s7 + $0x88] sm:$0xff] %v2511
  %2755 = vst [vmem:[%s7 + $0x90] sm:$0xff] %v2516
  %2756 = vst [vmem:[%s7 + $0x98] sm:$0xff] %v2519
  %2757 = vst [vmem:[%s7 + $0xa0] sm:$0xff] %v2524
  %2758 = vst [vmem:[%s7 + $0xa8] sm:$0xff] %v2527
  %2759 = vst [vmem:[%s7 + $0xb0] sm:$0xff] %v2532
  %2760 = vst [vmem:[%s7 + $0xb8] sm:$0xff] %v2535
  %2761 = vst [vmem:[%s7 + $0xc0] sm:$0xff] %v2540
  %2762 = vst [vmem:[%s7 + $0xc8] sm:$0xff] %v2543
  %2763 = vst [vmem:[%s7 + $0xd0] sm:$0xff] %v2548
  %2764 = vst [vmem:[%s7 + $0xd8] sm:$0xff] %v2551
  %2765 = vst [vmem:[%s7 + $0xe0] sm:$0xff] %v2556
  %2766 = vst [vmem:[%s7 + $0xe8] sm:$0xff] %v2559
  %2767 = vst [vmem:[%s7 + $0xf0] sm:$0xff] %v2564
  %2768 = vst [vmem:[%s7 + $0xf8] sm:$0xff] %v2567
  %2769 = vst [vmem:[%s7 + $0x100] sm:$0xff] %v2572
  %2770 = vst [vmem:[%s7 + $0x108] sm:$0xff] %v2575
  %2771 = vst [vmem:[%s7 + $0x110] sm:$0xff] %v2580
  %2772 = vst [vmem:[%s7 + $0x118] sm:$0xff] %v2583
  %2773 = vst [vmem:[%s7 + $0x120] sm:$0xff] %v2588
  %2774 = vst [vmem:[%s7 + $0x128] sm:$0xff] %v2591
  %2775 = vst [vmem:[%s7 + $0x130] sm:$0xff] %v2596
  %2776 = vst [vmem:[%s7 + $0x138] sm:$0xff] %v2599
  %2777 = vst [vmem:[%s7 + $0x140] sm:$0xff] %v2604
  %2778 = vst [vmem:[%s7 + $0x148] sm:$0xff] %v2607
  %2779 = vst [vmem:[%s7 + $0x150] sm:$0xff] %v2612
  %2780 = vst [vmem:[%s7 + $0x158] sm:$0xff] %v2615
  %2781 = vst [vmem:[%s7 + $0x160] sm:$0xff] %v2620
  %2782 = vst [vmem:[%s7 + $0x168] sm:$0xff] %v2623
  %2783 = vst [vmem:[%s7 + $0x170] sm:$0xff] %v2628
  %2784 = vst [vmem:[%s7 + $0x178] sm:$0xff] %v2631
  %2785 = vst [vmem:[%s7 + $0x180] sm:$0xff] %v2636
  %2786 = vst [vmem:[%s7 + $0x188] sm:$0xff] %v2639
  %2787 = vst [vmem:[%s7 + $0x190] sm:$0xff] %v2644
  %2788 = vst [vmem:[%s7 + $0x198] sm:$0xff] %v2647
  %2789 = vst [vmem:[%s7 + $0x1a0] sm:$0xff] %v2652
  %2790 = vst [vmem:[%s7 + $0x1a8] sm:$0xff] %v2655
  %2791 = vst [vmem:[%s7 + $0x1b0] sm:$0xff] %v2660
  %2792 = vst [vmem:[%s7 + $0x1b8] sm:$0xff] %v2663
  %2793 = vst [vmem:[%s7 + $0x1c0] sm:$0xff] %v2668
  %2794 = vst [vmem:[%s7 + $0x1c8] sm:$0xff] %v2671
  %2795 = vst [vmem:[%s7 + $0x1d0] sm:$0xff] %v2676
  %2796 = vst [vmem:[%s7 + $0x1d8] sm:$0xff] %v2679
  %2797 = vst [vmem:[%s7 + $0x1e0] sm:$0xff] %v2684
  %2798 = vst [vmem:[%s7 + $0x1e8] sm:$0xff] %v2687
  %2799 = vst [vmem:[%s7 + $0x1f0] sm:$0xff] %v2692
  %2800 = vst [vmem:[%s7 + $0x1f8] sm:$0xff] %v2695
  %2801 = vst [vmem:[%s7 + $0x200] sm:$0xff] %v2700
  %2802 = vst [vmem:[%s7 + $0x208] sm:$0xff] %v2703
  %2803 = vst [vmem:[%s7 + $0x210] sm:$0xff] %v2708
  %2804 = vst [vmem:[%s7 + $0x218] sm:$0xff] %v2711
  %2805 = vst [vmem:[%s7 + $0x220] sm:$0xff] %v2716
  %2806 = vst [vmem:[%s7 + $0x228] sm:$0xff] %v2719
  %2807 = vst [vmem:[%s7 + $0x230] sm:$0xff] %v2724
  %2808 = vst [vmem:[%s7 + $0x238] sm:$0xff] %v2727
  %2809 = vst [vmem:[%s7 + $0x240] sm:$0x3] %v2732
  // Predicated region
  $region30: #{fcn8s_forward.11} parent=0 // pred_check
    _
  $region31: #{fcn8s_forward.11} parent=0 // pred_check_branch
    %2811 = sbr.rel (0) target = $region33
  $region32: #{fcn8s_forward.11} parent=0 // pred_region
    _
  $region33: #{fcn8s_forward.11} parent=0 // pred_fallthru
    _
  // Predicated region
  $region34: #{fcn8s_forward.11} parent=0 // pred_check
    _
  $region35: #{fcn8s_forward.11} parent=0 // pred_check_branch
    %2813 = sbr.rel (0) target = $region37
  $region36: #{fcn8s_forward.11} parent=0 // pred_region
    _
  $region37: #{fcn8s_forward.11} parent=0 // pred_fallthru
    _

</llo_original>
